<compile_context>
chip_gen: v7x
topology: tpu7x:2x2x1
jax: 0.10.0
libtpu: 0.0.40
codegen_flags: <defaults>
</compile_context>

<pallas_src>
import functools

import numpy as np
import jax
import jax.numpy as jnp
from jax import lax
from jax.experimental import pallas as pl
from jax.experimental.pallas import tpu as pltpu

SELU_ALPHA = 1.6732632423543772848170429916717
SELU_SCALE = 1.0507009873554804934193349852946
BN_EPS = 1e-3


def _selu(y):
    return SELU_SCALE * jnp.where(y > 0, y, SELU_ALPHA * (jnp.exp(y) - 1.0))


# ------------- pass A: full 3x3 conv as lane-dense block-Toeplitz matmul ----
def _conv_kernel(H, WC, x_ref, wt_ref, y1_ref, st_ref, lhs_ref):
    """conv3x3 (pad=1) = (H, 3*WC) row-shifted LHS @ (3*WC, WC) Toeplitz W."""
    x = x_ref[0]                                            # (H, WC) f32
    zrow = jnp.zeros((1, WC), jnp.float32)
    # LHS row h = [x[h-1] | x[h] | x[h+1]] (zero rows outside the image).
    # All stores are full-width and lane-aligned (offsets 0, WC, 2*WC).
    lhs_ref[:, WC:2 * WC] = x
    lhs_ref[0:1, 0:WC] = zrow
    lhs_ref[1:H, 0:WC] = x[:H - 1]
    lhs_ref[0:H - 1, 2 * WC:3 * WC] = x[1:]
    lhs_ref[H - 1:H, 2 * WC:3 * WC] = zrow

    y = jnp.dot(lhs_ref[...].astype(wt_ref.dtype), wt_ref[...],
                preferred_element_type=jnp.float32)         # (H, WC) f32
    y1_ref[0] = y
    # fused one-pass BN1 moments (per image, per (w, c) column; host folds W)
    st_ref[0, 0:1, :] = jnp.sum(y, axis=0, keepdims=True)
    st_ref[0, 1:2, :] = jnp.sum(y * y, axis=0, keepdims=True)


# ------------- pass B: BN1+SELU and both depthwise 3x3 branches -------------
def _dw_kernel(H, W, C, y1_ref, a1_ref, b1_ref, wd_ref, wdd_ref,
               d1_ref, d2_ref, st_ref, pad_ref):
    """Lane-merged (H, W*C) layout; all tap reads are aligned 128-lane slabs."""
    WC = W * C
    br = _selu(a1_ref[...] * y1_ref[0] + b1_ref[...])       # (H, WC) f32

    # +/-1-pixel lane shifts built once via XLU rotate + halo-pixel masking.
    lane = lax.broadcasted_iota(jnp.int32, (H, WC), 1)
    sh_r = jnp.where(lane >= C,                              # dx = 0 tap (w-1)
                     pltpu.roll(br, shift=C, axis=1), 0.0)
    sh_l = jnp.where(lane < WC - C,                          # dx = 2 tap (w+1)
                     pltpu.roll(br, shift=WC - C, axis=1), 0.0)

    zrow = jnp.zeros((1, WC), jnp.float32)
    for dx, v in enumerate((sh_r, br, sh_l)):
        pad_ref[dx, 0:1, :] = zrow
        pad_ref[dx, H + 1:H + 2, :] = zrow
        pad_ref[dx, 1:H + 1, :] = v

    # TODO(synk): dilation d>1 would need d-pixel rolls and a d-row halo.
    wd = wd_ref[...]                                         # (9, WC)
    wdd = wdd_ref[...]
    acc1 = jnp.zeros((H, WC), jnp.float32)
    acc2 = jnp.zeros((H, WC), jnp.float32)
    for dy in range(3):
        for dx in range(3):
            t = dy * 3 + dx
            slab = pad_ref[dx, dy:dy + H, :]     # aligned slab, read once,
            acc1 = acc1 + slab * wd[t:t + 1, :]  # MAC against both weights
            acc2 = acc2 + slab * wdd[t:t + 1, :]
    d1_ref[0] = acc1
    d2_ref[0] = acc2

    st_ref[0, 0:1, :] = jnp.sum(acc1, axis=0, keepdims=True)
    st_ref[0, 1:2, :] = jnp.sum(acc1 * acc1, axis=0, keepdims=True)
    st_ref[0, 2:3, :] = jnp.sum(acc2, axis=0, keepdims=True)
    st_ref[0, 3:4, :] = jnp.sum(acc2 * acc2, axis=0, keepdims=True)


# --------------------- pass C: residual sum + BN4 stats ---------------------
def _sum_kernel(y1_ref, d1_ref, d2_ref, a1_ref, b1_ref, a2_ref, b2_ref,
                a3_ref, b3_ref, s_ref, st_ref):
    br = _selu(a1_ref[...] * y1_ref[...] + b1_ref[...])
    br1 = _selu(a2_ref[...] * d1_ref[...] + b2_ref[...])
    br2 = _selu(a3_ref[...] * d2_ref[...] + b3_ref[...])
    s = br + br1 + br2
    s_ref[...] = s
    st_ref[0, 0:1, :] = jnp.sum(s, axis=0, keepdims=True)
    st_ref[0, 1:2, :] = jnp.sum(s * s, axis=0, keepdims=True)


# ------------------------- pass D: final BN4 + SELU -------------------------
def _final_kernel(s_ref, a4_ref, b4_ref, out_ref):
    out_ref[...] = _selu(a4_ref[...] * s_ref[...] + b4_ref[...])


# ------------------------------ host-side glue ------------------------------
def _bn_scale_shift(total_sum, total_sq, count, gamma, beta):
    """Training-mode BN (biased variance) folded into per-channel scale/shift."""
    mean = total_sum / count
    var = jnp.maximum(total_sq / count - mean * mean, 0.0)   # clamp vs. rounding
    scale = gamma.reshape(-1) * lax.rsqrt(var + BN_EPS)
    shift = beta.reshape(-1) - mean * scale
    return scale, shift


def _fold_stats(st, W, C):
    """(G, k, W*C) partial stats -> (k, C): sum over blocks and W lane groups."""
    return jnp.sum(st.reshape(st.shape[0], st.shape[1], W, C), axis=(0, 2))


def _tile_lanes(v, W):
    """(C,) per-channel vector -> (1, W*C) matching the lane-merged layout."""
    return jnp.tile(jnp.reshape(v, (1, 1, -1)), (1, W, 1)).reshape(1, -1)


def _pick_row_block(rows, wc, max_bytes=1 << 20):
    """Largest row block that divides `rows`, is a multiple of 8, keeps >= 2
    grid steps (both v7x TensorCores busy) and <= ~1 MiB per array per step."""
    best = rows
    for tr in range(8, rows // 2 + 1, 8):
        if rows % tr == 0 and tr * wc * 4 <= max_bytes:
            best = tr
    return best


def tca_forward(x_nchw, params, mxu_dtype=jnp.bfloat16):
    """x_nchw: (N, C, H, W) float32 -> (N, C, H, W) float32.

    mxu_dtype: operand dtype fed to the MXU for the pass-A conv (bf16 default
    for full MXU rate on v5e/v6e/v7x; accumulation stays f32).  Pass
    jnp.float32 for a bit-tighter match to the f32 reference.
    """
    x_nchw = x_nchw.astype(jnp.float32)
    N, C, H, W = x_nchw.shape
    WC = W * C
    count = float(N * H * W)

    cparams = pltpu.CompilerParams(
        dimension_semantics=("parallel",),            # megacore sharding (v7x)
        vmem_limit_bytes=32 * 1024 * 1024)

    def img_spec(*shape):
        return pl.BlockSpec((1,) + shape, lambda n: (n,) + (0,) * len(shape))

    def const_spec(*shape):
        return pl.BlockSpec(shape, lambda n: (0,) * len(shape))

    # Lane-merged NHWC view: (N, H, W*C); C is the fastest lane axis.
    x_hwc = jnp.transpose(x_nchw, (0, 2, 3, 1)).reshape(N, H, WC)

    # ----- pass A: full 3x3 conv (block-Toeplitz matmul) + BN1 stats --------
    # Toeplitz weight (3*W*C, W*C): rows ordered (dy, w_in, c_in), columns
    # (w_out, c_out); zero-padding along width is encoded by absent blocks.
    m = np.zeros((3, W, W), np.float32)
    for dx in range(3):
        for wo in range(W):
            wi = wo + dx - 1
            if 0 <= wi < W:
                m[dx, wi, wo] = 1.0
    wt = jnp.einsum('xab,yxio->yaibo', jnp.asarray(m), params['w1'])
    wt = wt.reshape(3 * WC, WC).astype(mxu_dtype)

    y1, st_a = pl.pallas_call(
        functools.partial(_conv_kernel, H, WC),
        grid=(N,),
        in_specs=[img_spec(H, WC), const_spec(3 * WC, WC)],
        out_specs=[img_spec(H, WC), img_spec(2, WC)],
        out_shape=[jax.ShapeDtypeStruct((N, H, WC), jnp.float32),
                   jax.ShapeDtypeStruct((N, 2, WC), jnp.float32)],
        scratch_shapes=[pltpu.VMEM((H, 3 * WC), jnp.float32)],
        compiler_params=cparams,
    )(x_hwc, wt)

    sa = _fold_stats(st_a, W, C)
    sc1, sh1 = _bn_scale_shift(sa[0], sa[1], count, params['g1'], params['b1'])
    a1t, b1t = _tile_lanes(sc1, W), _tile_lanes(sh1, W)

    # ----- pass B: BN1+SELU, both depthwise branches, BN2/BN3 stats ---------
    wd9 = jnp.tile(params['wd'].reshape(9, 1, C), (1, W, 1)).reshape(9, WC)
    wdd9 = jnp.tile(params['wdd'].reshape(9, 1, C), (1, W, 1)).reshape(9, WC)
    d1, d2, st_b = pl.pallas_call(
        functools.partial(_dw_kernel, H, W, C),
        grid=(N,),
        in_specs=[img_spec(H, WC), const_spec(1, WC), const_spec(1, WC),
                  const_spec(9, WC), const_spec(9, WC)],
        out_specs=[img_spec(H, WC), img_spec(H, WC), img_spec(4, WC)],
        out_shape=[jax.ShapeDtypeStruct((N, H, WC), jnp.float32),
                   jax.ShapeDtypeStruct((N, H, WC), jnp.float32),
                   jax.ShapeDtypeStruct((N, 4, WC), jnp.float32)],
        scratch_shapes=[pltpu.VMEM((3, H + 2, WC), jnp.float32)],
        compiler_params=cparams,
    )(y1, a1t, b1t, wd9, wdd9)

    sb = _fold_stats(st_b, W, C)
    sc2, sh2 = _bn_scale_shift(sb[0], sb[1], count, params['g2'], params['b2'])
    sc3, sh3 = _bn_scale_shift(sb[2], sb[3], count, params['g3'], params['b3'])

    # ----- passes C/D: bandwidth-only elementwise work on big row blocks ----
    rows = N * H
    tr = _pick_row_block(rows, WC)
    g = rows // tr
    row_spec = pl.BlockSpec((tr, WC), lambda r: (r, 0))
    cvec_spec = pl.BlockSpec((1, WC), lambda r: (0, 0))

    s_out, st_c = pl.pallas_call(
        _sum_kernel,
        grid=(g,),
        in_specs=[row_spec] * 3 + [cvec_spec] * 6,
        out_specs=[row_spec, pl.BlockSpec((1, 2, WC), lambda r: (r, 0, 0))],
        out_shape=[jax.ShapeDtypeStruct((rows, WC), jnp.float32),
                   jax.ShapeDtypeStruct((g, 2, WC), jnp.float32)],
        compiler_params=cparams,
    )(y1.reshape(rows, WC), d1.reshape(rows, WC), d2.reshape(rows, WC),
      a1t, b1t, _tile_lanes(sc2, W), _tile_lanes(sh2, W),
      _tile_lanes(sc3, W), _tile_lanes(sh3, W))

    sfin = _fold_stats(st_c, W, C)
    sc4, sh4 = _bn_scale_shift(sfin[0], sfin[1], count,
                               params['g4'], params['b4'])

    out = pl.pallas_call(
        _final_kernel,
        grid=(g,),
        in_specs=[row_spec, cvec_spec, cvec_spec],
        out_specs=row_spec,
        out_shape=jax.ShapeDtypeStruct((rows, WC), jnp.float32),
        compiler_params=cparams,
    )(s_out, _tile_lanes(sc4, W), _tile_lanes(sh4, W))

    out = out.reshape(N, H, W, C)
    return jnp.transpose(out, (0, 3, 1, 2))                   # -> NCHW


# ------------------------------ pure-JAX reference --------------------------
def _ref_bn_selu(x, gamma, beta):
    mean = jnp.mean(x, axis=(0, 1, 2), keepdims=True)
    var = jnp.mean((x - mean) ** 2, axis=(0, 1, 2), keepdims=True)
    y = gamma.reshape(1, 1, 1, -1) * (x - mean) / jnp.sqrt(var + BN_EPS) \
        + beta.reshape(1, 1, 1, -1)
    return SELU_SCALE * jnp.where(y > 0, y, SELU_ALPHA * (jnp.exp(y) - 1.0))


def tca_reference(x_nchw, p):
    x = jnp.transpose(x_nchw, (0, 2, 3, 1)).astype(jnp.float32)
    C = x.shape[-1]
    dn = ('NHWC', 'HWIO', 'NHWC')
    pad = ((1, 1), (1, 1))
    br = lax.conv_general_dilated(x, p['w1'], (1, 1), pad, dimension_numbers=dn)
    br = _ref_bn_selu(br, p['g1'], p['b1'])
    br1 = lax.conv_general_dilated(br, p['wd'].reshape(3, 3, 1, C), (1, 1), pad,
                                   dimension_numbers=dn, feature_group_count=C)
    br1 = _ref_bn_selu(br1, p['g2'], p['b2'])
    br2 = lax.conv_general_dilated(br, p['wdd'].reshape(3, 3, 1, C), (1, 1), pad,
                                   dimension_numbers=dn, feature_group_count=C)
    br2 = _ref_bn_selu(br2, p['g3'], p['b3'])
    out = _ref_bn_selu(br + br1 + br2, p['g4'], p['b4'])
    return jnp.transpose(out, (0, 3, 1, 2))


def init_params(key, C):
    ks = jax.random.split(key, 11)
    p = {
        'w1':  0.1 * jax.random.normal(ks[0], (3, 3, C, C), jnp.float32),  # HWIO
        'wd':  0.1 * jax.random.normal(ks[1], (3, 3, C), jnp.float32),     # depthwise
        'wdd': 0.1 * jax.random.normal(ks[2], (3, 3, C), jnp.float32),
    }
    for i, name in enumerate(('1', '2', '3', '4')):
        p['g' + name] = (1.0 + 0.1 * jax.random.normal(ks[3 + 2 * i], (1, C),
                                                       jnp.float32))
        p['b' + name] = 0.1 * jax.random.normal(ks[4 + 2 * i], (1, C),
                                                jnp.float32)
    return p


if __name__ == "__main__":
    # TODO(synk): BN is evaluated in training mode (fresh module); eval mode
    # with running statistics would need precomputed mean/var inputs instead.
    N, C, H, W = 2, 8, 16, 16        # W*C = 128 -> lane-dense internal layout
    key = jax.random.PRNGKey(0)
    kx, kp = jax.random.split(key)
    x = jax.random.normal(kx, (N, C, H, W), jnp.float32)
    params = init_params(kp, C)

    ref = jax.block_until_ready(tca_reference(x, params))

    # Tight check with f32 MXU operands.
    fwd_f32 = jax.jit(functools.partial(tca_forward, mxu_dtype=jnp.float32))
    out_f32 = jax.block_until_ready(fwd_f32(x, params))
    assert out_f32.shape == (N, C, H, W), out_f32.shape
    err_f32 = float(jnp.max(jnp.abs(out_f32 - ref)))
    assert jnp.allclose(out_f32, ref, rtol=1e-3, atol=1e-3), err_f32

    # Performance default: bf16 MXU operands (f32 accumulation) -> slightly
    # looser tolerance vs. the f32 reference.
    fwd = jax.jit(tca_forward)
    out = jax.block_until_ready(fwd(x, params))
    assert out.shape == (N, C, H, W), out.shape
    err_bf16 = float(jnp.max(jnp.abs(out - ref)))
    assert jnp.allclose(out, ref, rtol=2e-2, atol=2e-2), err_bf16

    print("KERNEL_OK")
</pallas_src>

<mosaic_0001>
module attributes {stable_mosaic.version = 11 : i64} {
  func.func @_conv_kernel(%arg0: i32, %arg1: memref<1x16x128xf32, #tpu.memory_space<vmem>>, %arg2: memref<384x128xf32, #tpu.memory_space<vmem>>, %arg3: memref<1x16x128xf32, #tpu.memory_space<vmem>>, %arg4: memref<1x2x128xf32, #tpu.memory_space<vmem>>, %arg5: memref<16x384xf32, #tpu.memory_space<vmem>>) attributes {dimension_semantics = [#tpu.dimension_semantics<parallel>], iteration_bounds = array<i64: 2>, scalar_prefetch = 0 : i64, scratch_operands = 1 : i64, tpu.core_type = #tpu.core_type<tc>, window_params = [{transform_indices = @transform_0, window_bounds = array<i64: 1, 16, 128>}, {pipeline_mode = #tpu.pipeline_mode<synchronous>, transform_indices = @transform_1, window_bounds = array<i64: 384, 128>}, {transform_indices = @transform_2, window_bounds = array<i64: 1, 16, 128>}, {transform_indices = @transform_3, window_bounds = array<i64: 1, 2, 128>}]} {
    %c0 = arith.constant 0 : index
    %c0_0 = arith.constant 0 : index
    %c0_1 = arith.constant 0 : index
    %0 = vector.load %arg1[%c0, %c0_0, %c0_1] : memref<1x16x128xf32, #tpu.memory_space<vmem>>, vector<1x16x128xf32>
    %1 = vector.shape_cast %0 : vector<1x16x128xf32> to vector<16x128xf32>
    %cst = arith.constant 0.000000e+00 : f32
    %2 = vector.broadcast %cst : f32 to vector<1x128xf32>
    %c0_2 = arith.constant 0 : index
    %c128 = arith.constant 128 : index
    %3 = vector.load %arg5[%c0_2, %c128] : memref<16x384xf32, #tpu.memory_space<vmem>>, vector<16x128xf32>
    tpu.vector_store %arg5[%c0_2, %c128], %1 {strides = array<i32>} : memref<16x384xf32, #tpu.memory_space<vmem>>, vector<16x128xf32>,
    %c0_3 = arith.constant 0 : index
    %c0_4 = arith.constant 0 : index
    %4 = vector.load %arg5[%c0_3, %c0_4] : memref<16x384xf32, #tpu.memory_space<vmem>>, vector<1x128xf32>
    tpu.vector_store %arg5[%c0_3, %c0_4], %2 {strides = array<i32>} : memref<16x384xf32, #tpu.memory_space<vmem>>, vector<1x128xf32>,
    %5 = vector.extract_strided_slice %1 {offsets = [0, 0], sizes = [15, 128], strides = [1, 1]} : vector<16x128xf32> to vector<15x128xf32>
    %c1 = arith.constant 1 : index
    %c0_5 = arith.constant 0 : index
    %6 = vector.load %arg5[%c1, %c0_5] : memref<16x384xf32, #tpu.memory_space<vmem>>, vector<15x128xf32>
    tpu.vector_store %arg5[%c1, %c0_5], %5 {strides = array<i32>} : memref<16x384xf32, #tpu.memory_space<vmem>>, vector<15x128xf32>,
    %7 = vector.extract_strided_slice %1 {offsets = [1, 0], sizes = [15, 128], strides = [1, 1]} : vector<16x128xf32> to vector<15x128xf32>
    %c0_6 = arith.constant 0 : index
    %c256 = arith.constant 256 : index
    %8 = vector.load %arg5[%c0_6, %c256] : memref<16x384xf32, #tpu.memory_space<vmem>>, vector<15x128xf32>
    tpu.vector_store %arg5[%c0_6, %c256], %7 {strides = array<i32>} : memref<16x384xf32, #tpu.memory_space<vmem>>, vector<15x128xf32>,
    %c15 = arith.constant 15 : index
    %c256_7 = arith.constant 256 : index
    %9 = vector.load %arg5[%c15, %c256_7] : memref<16x384xf32, #tpu.memory_space<vmem>>, vector<1x128xf32>
    tpu.vector_store %arg5[%c15, %c256_7], %2 {strides = array<i32>} : memref<16x384xf32, #tpu.memory_space<vmem>>, vector<1x128xf32>,
    %c0_8 = arith.constant 0 : index
    %c0_9 = arith.constant 0 : index
    %10 = vector.load %arg5[%c0_8, %c0_9] : memref<16x384xf32, #tpu.memory_space<vmem>>, vector<16x384xf32>
    %c0_10 = arith.constant 0 : index
    %c0_11 = arith.constant 0 : index
    %11 = vector.load %arg2[%c0_10, %c0_11] : memref<384x128xf32, #tpu.memory_space<vmem>>, vector<384x128xf32>
    %cst_12 = arith.constant dense<0.000000e+00> : vector<16x128xf32>
    %12 = tpu.matmul %10, %11, %cst_12 {dimension_numbers = #tpu.dot_dimension_numbers<[1], [0], [0], [1], [0, 0, 1, 1], [], []>} : vector<16x384xf32>, vector<384x128xf32>, vector<16x128xf32> -> vector<16x128xf32>
    %c0_13 = arith.constant 0 : index
    %c0_14 = arith.constant 0 : index
    %c0_15 = arith.constant 0 : index
    %13 = vector.load %arg3[%c0_13, %c0_14, %c0_15] : memref<1x16x128xf32, #tpu.memory_space<vmem>>, vector<1x16x128xf32>
    %14 = vector.shape_cast %13 : vector<1x16x128xf32> to vector<16x128xf32>
    %15 = vector.shape_cast %12 : vector<16x128xf32> to vector<1x16x128xf32>
    tpu.vector_store %arg3[%c0_13, %c0_14, %c0_15], %15 {strides = array<i32>} : memref<1x16x128xf32, #tpu.memory_space<vmem>>, vector<1x16x128xf32>,
    %cst_16 = arith.constant dense<0.000000e+00> : vector<128xf32>
    %16 = vector.multi_reduction <add>, %12, %cst_16 [0] : vector<16x128xf32> to vector<128xf32>
    %17 = vector.shape_cast %16 : vector<128xf32> to vector<1x128xf32>
    %c0_17 = arith.constant 0 : index
    %c0_18 = arith.constant 0 : index
    %c0_19 = arith.constant 0 : index
    %18 = vector.load %arg4[%c0_17, %c0_18, %c0_19] : memref<1x2x128xf32, #tpu.memory_space<vmem>>, vector<1x1x128xf32>
    %19 = vector.shape_cast %18 : vector<1x1x128xf32> to vector<1x128xf32>
    %20 = vector.shape_cast %17 : vector<1x128xf32> to vector<1x1x128xf32>
    tpu.vector_store %arg4[%c0_17, %c0_18, %c0_19], %20 {strides = array<i32>} : memref<1x2x128xf32, #tpu.memory_space<vmem>>, vector<1x1x128xf32>,
    %21 = arith.mulf %12, %12 : vector<16x128xf32>
    %cst_20 = arith.constant dense<0.000000e+00> : vector<128xf32>
    %22 = vector.multi_reduction <add>, %21, %cst_20 [0] : vector<16x128xf32> to vector<128xf32>
    %23 = vector.shape_cast %22 : vector<128xf32> to vector<1x128xf32>
    %c0_21 = arith.constant 0 : index
    %c1_22 = arith.constant 1 : index
    %c0_23 = arith.constant 0 : index
    %24 = vector.load %arg4[%c0_21, %c1_22, %c0_23] : memref<1x2x128xf32, #tpu.memory_space<vmem>>, vector<1x1x128xf32>
    %25 = vector.shape_cast %24 : vector<1x1x128xf32> to vector<1x128xf32>
    %26 = vector.shape_cast %23 : vector<1x128xf32> to vector<1x1x128xf32>
    tpu.vector_store %arg4[%c0_21, %c1_22, %c0_23], %26 {strides = array<i32>} : memref<1x2x128xf32, #tpu.memory_space<vmem>>, vector<1x1x128xf32>,
    return
  }
  func.func @transform_0(%arg0: i32) -> (i32, i32, i32) {
    %c0_i32 = arith.constant 0 : i32
    %c0_i32_0 = arith.constant 0 : i32
    %c0_i32_1 = arith.constant 0 : i32
    return %arg0, %c0_i32, %c0_i32_0 : i32, i32, i32
  }
  func.func @transform_1(%arg0: i32) -> (i32, i32) {
    %c0_i32 = arith.constant 0 : i32
    %c0_i32_0 = arith.constant 0 : i32
    %c0_i32_1 = arith.constant 0 : i32
    return %c0_i32, %c0_i32_0 : i32, i32
  }
  func.func @transform_2(%arg0: i32) -> (i32, i32, i32) {
    %c0_i32 = arith.constant 0 : i32
    %c0_i32_0 = arith.constant 0 : i32
    %c0_i32_1 = arith.constant 0 : i32
    return %arg0, %c0_i32, %c0_i32_0 : i32, i32, i32
  }
  func.func @transform_3(%arg0: i32) -> (i32, i32, i32) {
    %c0_i32 = arith.constant 0 : i32
    %c0_i32_0 = arith.constant 0 : i32
    %c0_i32_1 = arith.constant 0 : i32
    return %arg0, %c0_i32, %c0_i32_0 : i32, i32, i32
  }
}

module attributes {stable_mosaic.version = 11 : i64} {
  func.func @_dw_kernel(%arg0: i32, %arg1: memref<1x16x128xf32, #tpu.memory_space<vmem>>, %arg2: memref<1x128xf32, #tpu.memory_space<vmem>>, %arg3: memref<1x128xf32, #tpu.memory_space<vmem>>, %arg4: memref<9x128xf32, #tpu.memory_space<vmem>>, %arg5: memref<9x128xf32, #tpu.memory_space<vmem>>, %arg6: memref<1x16x128xf32, #tpu.memory_space<vmem>>, %arg7: memref<1x16x128xf32, #tpu.memory_space<vmem>>, %arg8: memref<1x4x128xf32, #tpu.memory_space<vmem>>, %arg9: memref<3x18x128xf32, #tpu.memory_space<vmem>>) attributes {dimension_semantics = [#tpu.dimension_semantics<parallel>], iteration_bounds = array<i64: 2>, scalar_prefetch = 0 : i64, scratch_operands = 1 : i64, tpu.core_type = #tpu.core_type<tc>, window_params = [{transform_indices = @transform_0, window_bounds = array<i64: 1, 16, 128>}, {pipeline_mode = #tpu.pipeline_mode<synchronous>, transform_indices = @transform_1, window_bounds = array<i64: 1, 128>}, {pipeline_mode = #tpu.pipeline_mode<synchronous>, transform_indices = @transform_2, window_bounds = array<i64: 1, 128>}, {pipeline_mode = #tpu.pipeline_mode<synchronous>, transform_indices = @transform_3, window_bounds = array<i64: 9, 128>}, {pipeline_mode = #tpu.pipeline_mode<synchronous>, transform_indices = @transform_4, window_bounds = array<i64: 9, 128>}, {transform_indices = @transform_5, window_bounds = array<i64: 1, 16, 128>}, {transform_indices = @transform_6, window_bounds = array<i64: 1, 16, 128>}, {transform_indices = @transform_7, window_bounds = array<i64: 1, 4, 128>}]} {
    %c0 = arith.constant 0 : index
    %c0_0 = arith.constant 0 : index
    %0 = vector.load %arg2[%c0, %c0_0] : memref<1x128xf32, #tpu.memory_space<vmem>>, vector<1x128xf32>
    %c0_1 = arith.constant 0 : index
    %c0_2 = arith.constant 0 : index
    %c0_3 = arith.constant 0 : index
    %1 = vector.load %arg1[%c0_1, %c0_2, %c0_3] : memref<1x16x128xf32, #tpu.memory_space<vmem>>, vector<1x16x128xf32>
    %2 = vector.shape_cast %1 : vector<1x16x128xf32> to vector<16x128xf32>
    %3 = vector.broadcast %0 : vector<1x128xf32> to vector<16x128xf32>
    %4 = arith.mulf %3, %2 : vector<16x128xf32>
    %c0_4 = arith.constant 0 : index
    %c0_5 = arith.constant 0 : index
    %5 = vector.load %arg3[%c0_4, %c0_5] : memref<1x128xf32, #tpu.memory_space<vmem>>, vector<1x128xf32>
    %6 = vector.broadcast %5 : vector<1x128xf32> to vector<16x128xf32>
    %7 = arith.addf %4, %6 : vector<16x128xf32>
    %cst = arith.constant 0.000000e+00 : f32
    %8 = vector.broadcast %cst : f32 to vector<16x128xf32>
    %9 = arith.cmpf ogt, %7, %8 : vector<16x128xf32>
    %10 = math.exp %7 : vector<16x128xf32>
    %cst_6 = arith.constant 1.000000e+00 : f32
    %11 = vector.broadcast %cst_6 : f32 to vector<16x128xf32>
    %12 = arith.subf %10, %11 : vector<16x128xf32>
    %cst_7 = arith.constant 1.67326319 : f32
    %13 = vector.broadcast %cst_7 : f32 to vector<16x128xf32>
    %14 = arith.mulf %13, %12 : vector<16x128xf32>
    %15 = arith.select %9, %7, %14 : vector<16x128xi1>, vector<16x128xf32>
    %cst_8 = arith.constant 1.05070102 : f32
    %16 = vector.broadcast %cst_8 : f32 to vector<16x128xf32>
    %17 = arith.mulf %16, %15 : vector<16x128xf32>
    %18 = tpu.iota {dimensions = array<i32: 1>} : vector<16x128xi32>
    %c8_i32 = arith.constant 8 : i32
    %19 = vector.broadcast %c8_i32 : i32 to vector<16x128xi32>
    %20 = arith.cmpi sge, %18, %19 : vector<16x128xi32>
    %c8_i32_9 = arith.constant 8 : i32
    %21 = tpu.dynamic_rotate %17 by %c8_i32_9 dim 1 : vector<16x128xf32>, i32 -> vector<16x128xf32>
    %cst_10 = arith.constant 0.000000e+00 : f32
    %22 = vector.broadcast %cst_10 : f32 to vector<16x128xf32>
    %23 = arith.select %20, %21, %22 : vector<16x128xi1>, vector<16x128xf32>
    %c120_i32 = arith.constant 120 : i32
    %24 = vector.broadcast %c120_i32 : i32 to vector<16x128xi32>
    %25 = arith.cmpi slt, %18, %24 : vector<16x128xi32>
    %c120_i32_11 = arith.constant 120 : i32
    %26 = tpu.dynamic_rotate %17 by %c120_i32_11 dim 1 : vector<16x128xf32>, i32 -> vector<16x128xf32>
    %cst_12 = arith.constant 0.000000e+00 : f32
    %27 = vector.broadcast %cst_12 : f32 to vector<16x128xf32>
    %28 = arith.select %25, %26, %27 : vector<16x128xi1>, vector<16x128xf32>
    %cst_13 = arith.constant 0.000000e+00 : f32
    %29 = vector.broadcast %cst_13 : f32 to vector<1x128xf32>
    %c0_14 = arith.constant 0 : index
    %c0_15 = arith.constant 0 : index
    %c0_16 = arith.constant 0 : index
    %30 = vector.load %arg9[%c0_14, %c0_15, %c0_16] : memref<3x18x128xf32, #tpu.memory_space<vmem>>, vector<1x1x128xf32>
    %31 = vector.shape_cast %30 : vector<1x1x128xf32> to vector<1x128xf32>
    %32 = vector.shape_cast %29 : vector<1x128xf32> to vector<1x1x128xf32>
    tpu.vector_store %arg9[%c0_14, %c0_15, %c0_16], %32 {strides = array<i32>} : memref<3x18x128xf32, #tpu.memory_space<vmem>>, vector<1x1x128xf32>,
    %c0_17 = arith.constant 0 : index
    %c17 = arith.constant 17 : index
    %c0_18 = arith.constant 0 : index
    %33 = vector.load %arg9[%c0_17, %c17, %c0_18] : memref<3x18x128xf32, #tpu.memory_space<vmem>>, vector<1x1x128xf32>
    %34 = vector.shape_cast %33 : vector<1x1x128xf32> to vector<1x128xf32>
    %35 = vector.shape_cast %29 : vector<1x128xf32> to vector<1x1x128xf32>
    tpu.vector_store %arg9[%c0_17, %c17, %c0_18], %35 {strides = array<i32>} : memref<3x18x128xf32, #tpu.memory_space<vmem>>, vector<1x1x128xf32>,
    %c0_19 = arith.constant 0 : index
    %c1 = arith.constant 1 : index
    %c0_20 = arith.constant 0 : index
    %36 = vector.load %arg9[%c0_19, %c1, %c0_20] : memref<3x18x128xf32, #tpu.memory_space<vmem>>, vector<1x16x128xf32>
    %37 = vector.shape_cast %36 : vector<1x16x128xf32> to vector<16x128xf32>
    %38 = vector.shape_cast %23 : vector<16x128xf32> to vector<1x16x128xf32>
    tpu.vector_store %arg9[%c0_19, %c1, %c0_20], %38 {strides = array<i32>} : memref<3x18x128xf32, #tpu.memory_space<vmem>>, vector<1x16x128xf32>,
    %c1_21 = arith.constant 1 : index
    %c0_22 = arith.constant 0 : index
    %c0_23 = arith.constant 0 : index
    %39 = vector.load %arg9[%c1_21, %c0_22, %c0_23] : memref<3x18x128xf32, #tpu.memory_space<vmem>>, vector<1x1x128xf32>
    %40 = vector.shape_cast %39 : vector<1x1x128xf32> to vector<1x128xf32>
    %41 = vector.shape_cast %29 : vector<1x128xf32> to vector<1x1x128xf32>
    tpu.vector_store %arg9[%c1_21, %c0_22, %c0_23], %41 {strides = array<i32>} : memref<3x18x128xf32, #tpu.memory_space<vmem>>, vector<1x1x128xf32>,
    %c1_24 = arith.constant 1 : index
    %c17_25 = arith.constant 17 : index
    %c0_26 = arith.constant 0 : index
    %42 = vector.load %arg9[%c1_24, %c17_25, %c0_26] : memref<3x18x128xf32, #tpu.memory_space<vmem>>, vector<1x1x128xf32>
    %43 = vector.shape_cast %42 : vector<1x1x128xf32> to vector<1x128xf32>
    %44 = vector.shape_cast %29 : vector<1x128xf32> to vector<1x1x128xf32>
    tpu.vector_store %arg9[%c1_24, %c17_25, %c0_26], %44 {strides = array<i32>} : memref<3x18x128xf32, #tpu.memory_space<vmem>>, vector<1x1x128xf32>,
    %c1_27 = arith.constant 1 : index
    %c1_28 = arith.constant 1 : index
    %c0_29 = arith.constant 0 : index
    %45 = vector.load %arg9[%c1_27, %c1_28, %c0_29] : memref<3x18x128xf32, #tpu.memory_space<vmem>>, vector<1x16x128xf32>
    %46 = vector.shape_cast %45 : vector<1x16x128xf32> to vector<16x128xf32>
    %47 = vector.shape_cast %17 : vector<16x128xf32> to vector<1x16x128xf32>
    tpu.vector_store %arg9[%c1_27, %c1_28, %c0_29], %47 {strides = array<i32>} : memref<3x18x128xf32, #tpu.memory_space<vmem>>, vector<1x16x128xf32>,
    %c2 = arith.constant 2 : index
    %c0_30 = arith.constant 0 : index
    %c0_31 = arith.constant 0 : index
    %48 = vector.load %arg9[%c2, %c0_30, %c0_31] : memref<3x18x128xf32, #tpu.memory_space<vmem>>, vector<1x1x128xf32>
    %49 = vector.shape_cast %48 : vector<1x1x128xf32> to vector<1x128xf32>
    %50 = vector.shape_cast %29 : vector<1x128xf32> to vector<1x1x128xf32>
    tpu.vector_store %arg9[%c2, %c0_30, %c0_31], %50 {strides = array<i32>} : memref<3x18x128xf32, #tpu.memory_space<vmem>>, vector<1x1x128xf32>,
    %c2_32 = arith.constant 2 : index
    %c17_33 = arith.constant 17 : index
    %c0_34 = arith.constant 0 : index
    %51 = vector.load %arg9[%c2_32, %c17_33, %c0_34] : memref<3x18x128xf32, #tpu.memory_space<vmem>>, vector<1x1x128xf32>
    %52 = vector.shape_cast %51 : vector<1x1x128xf32> to vector<1x128xf32>
    %53 = vector.shape_cast %29 : vector<1x128xf32> to vector<1x1x128xf32>
    tpu.vector_store %arg9[%c2_32, %c17_33, %c0_34], %53 {strides = array<i32>} : memref<3x18x128xf32, #tpu.memory_space<vmem>>, vector<1x1x128xf32>,
    %c2_35 = arith.constant 2 : index
    %c1_36 = arith.constant 1 : index
    %c0_37 = arith.constant 0 : index
    %54 = vector.load %arg9[%c2_35, %c1_36, %c0_37] : memref<3x18x128xf32, #tpu.memory_space<vmem>>, vector<1x16x128xf32>
    %55 = vector.shape_cast %54 : vector<1x16x128xf32> to vector<16x128xf32>
    %56 = vector.shape_cast %28 : vector<16x128xf32> to vector<1x16x128xf32>
    tpu.vector_store %arg9[%c2_35, %c1_36, %c0_37], %56 {strides = array<i32>} : memref<3x18x128xf32, #tpu.memory_space<vmem>>, vector<1x16x128xf32>,
    %c0_38 = arith.constant 0 : index
    %c0_39 = arith.constant 0 : index
    %57 = vector.load %arg4[%c0_38, %c0_39] : memref<9x128xf32, #tpu.memory_space<vmem>>, vector<9x128xf32>
    %c0_40 = arith.constant 0 : index
    %c0_41 = arith.constant 0 : index
    %58 = vector.load %arg5[%c0_40, %c0_41] : memref<9x128xf32, #tpu.memory_space<vmem>>, vector<9x128xf32>
    %cst_42 = arith.constant 0.000000e+00 : f32
    %59 = vector.broadcast %cst_42 : f32 to vector<16x128xf32>
    %cst_43 = arith.constant 0.000000e+00 : f32
    %60 = vector.broadcast %cst_43 : f32 to vector<16x128xf32>
    %c0_44 = arith.constant 0 : index
    %c0_45 = arith.constant 0 : index
    %c0_46 = arith.constant 0 : index
    %61 = vector.load %arg9[%c0_44, %c0_45, %c0_46] : memref<3x18x128xf32, #tpu.memory_space<vmem>>, vector<1x16x128xf32>
    %62 = vector.shape_cast %61 : vector<1x16x128xf32> to vector<16x128xf32>
    %63 = vector.extract_strided_slice %57 {offsets = [0, 0], sizes = [1, 128], strides = [1, 1]} : vector<9x128xf32> to vector<1x128xf32>
    %64 = vector.broadcast %63 : vector<1x128xf32> to vector<16x128xf32>
    %65 = arith.mulf %62, %64 : vector<16x128xf32>
    %66 = arith.addf %59, %65 : vector<16x128xf32>
    %67 = vector.extract_strided_slice %58 {offsets = [0, 0], sizes = [1, 128], strides = [1, 1]} : vector<9x128xf32> to vector<1x128xf32>
    %68 = vector.broadcast %67 : vector<1x128xf32> to vector<16x128xf32>
    %69 = arith.mulf %62, %68 : vector<16x128xf32>
    %70 = arith.addf %60, %69 : vector<16x128xf32>
    %c1_47 = arith.constant 1 : index
    %c0_48 = arith.constant 0 : index
    %c0_49 = arith.constant 0 : index
    %71 = vector.load %arg9[%c1_47, %c0_48, %c0_49] : memref<3x18x128xf32, #tpu.memory_space<vmem>>, vector<1x16x128xf32>
    %72 = vector.shape_cast %71 : vector<1x16x128xf32> to vector<16x128xf32>
    %73 = vector.extract_strided_slice %57 {offsets = [1, 0], sizes = [1, 128], strides = [1, 1]} : vector<9x128xf32> to vector<1x128xf32>
    %74 = vector.broadcast %73 : vector<1x128xf32> to vector<16x128xf32>
    %75 = arith.mulf %72, %74 : vector<16x128xf32>
    %76 = arith.addf %66, %75 : vector<16x128xf32>
    %77 = vector.extract_strided_slice %58 {offsets = [1, 0], sizes = [1, 128], strides = [1, 1]} : vector<9x128xf32> to vector<1x128xf32>
    %78 = vector.broadcast %77 : vector<1x128xf32> to vector<16x128xf32>
    %79 = arith.mulf %72, %78 : vector<16x128xf32>
    %80 = arith.addf %70, %79 : vector<16x128xf32>
    %c2_50 = arith.constant 2 : index
    %c0_51 = arith.constant 0 : index
    %c0_52 = arith.constant 0 : index
    %81 = vector.load %arg9[%c2_50, %c0_51, %c0_52] : memref<3x18x128xf32, #tpu.memory_space<vmem>>, vector<1x16x128xf32>
    %82 = vector.shape_cast %81 : vector<1x16x128xf32> to vector<16x128xf32>
    %83 = vector.extract_strided_slice %57 {offsets = [2, 0], sizes = [1, 128], strides = [1, 1]} : vector<9x128xf32> to vector<1x128xf32>
    %84 = vector.broadcast %83 : vector<1x128xf32> to vector<16x128xf32>
    %85 = arith.mulf %82, %84 : vector<16x128xf32>
    %86 = arith.addf %76, %85 : vector<16x128xf32>
    %87 = vector.extract_strided_slice %58 {offsets = [2, 0], sizes = [1, 128], strides = [1, 1]} : vector<9x128xf32> to vector<1x128xf32>
    %88 = vector.broadcast %87 : vector<1x128xf32> to vector<16x128xf32>
    %89 = arith.mulf %82, %88 : vector<16x128xf32>
    %90 = arith.addf %80, %89 : vector<16x128xf32>
    %c0_53 = arith.constant 0 : index
    %c1_54 = arith.constant 1 : index
    %c0_55 = arith.constant 0 : index
    %91 = vector.load %arg9[%c0_53, %c1_54, %c0_55] : memref<3x18x128xf32, #tpu.memory_space<vmem>>, vector<1x16x128xf32>
    %92 = vector.shape_cast %91 : vector<1x16x128xf32> to vector<16x128xf32>
    %93 = vector.extract_strided_slice %57 {offsets = [3, 0], sizes = [1, 128], strides = [1, 1]} : vector<9x128xf32> to vector<1x128xf32>
    %94 = vector.broadcast %93 : vector<1x128xf32> to vector<16x128xf32>
    %95 = arith.mulf %92, %94 : vector<16x128xf32>
    %96 = arith.addf %86, %95 : vector<16x128xf32>
    %97 = vector.extract_strided_slice %58 {offsets = [3, 0], sizes = [1, 128], strides = [1, 1]} : vector<9x128xf32> to vector<1x128xf32>
    %98 = vector.broadcast %97 : vector<1x128xf32> to vector<16x128xf32>
    %99 = arith.mulf %92, %98 : vector<16x128xf32>
    %100 = arith.addf %90, %99 : vector<16x128xf32>
    %c1_56 = arith.constant 1 : index
    %c1_57 = arith.constant 1 : index
    %c0_58 = arith.constant 0 : index
    %101 = vector.load %arg9[%c1_56, %c1_57, %c0_58] : memref<3x18x128xf32, #tpu.memory_space<vmem>>, vector<1x16x128xf32>
    %102 = vector.shape_cast %101 : vector<1x16x128xf32> to vector<16x128xf32>
    %103 = vector.extract_strided_slice %57 {offsets = [4, 0], sizes = [1, 128], strides = [1, 1]} : vector<9x128xf32> to vector<1x128xf32>
    %104 = vector.broadcast %103 : vector<1x128xf32> to vector<16x128xf32>
    %105 = arith.mulf %102, %104 : vector<16x128xf32>
    %106 = arith.addf %96, %105 : vector<16x128xf32>
    %107 = vector.extract_strided_slice %58 {offsets = [4, 0], sizes = [1, 128], strides = [1, 1]} : vector<9x128xf32> to vector<1x128xf32>
    %108 = vector.broadcast %107 : vector<1x128xf32> to vector<16x128xf32>
    %109 = arith.mulf %102, %108 : vector<16x128xf32>
    %110 = arith.addf %100, %109 : vector<16x128xf32>
    %c2_59 = arith.constant 2 : index
    %c1_60 = arith.constant 1 : index
    %c0_61 = arith.constant 0 : index
    %111 = vector.load %arg9[%c2_59, %c1_60, %c0_61] : memref<3x18x128xf32, #tpu.memory_space<vmem>>, vector<1x16x128xf32>
    %112 = vector.shape_cast %111 : vector<1x16x128xf32> to vector<16x128xf32>
    %113 = vector.extract_strided_slice %57 {offsets = [5, 0], sizes = [1, 128], strides = [1, 1]} : vector<9x128xf32> to vector<1x128xf32>
    %114 = vector.broadcast %113 : vector<1x128xf32> to vector<16x128xf32>
    %115 = arith.mulf %112, %114 : vector<16x128xf32>
    %116 = arith.addf %106, %115 : vector<16x128xf32>
    %117 = vector.extract_strided_slice %58 {offsets = [5, 0], sizes = [1, 128], strides = [1, 1]} : vector<9x128xf32> to vector<1x128xf32>
    %118 = vector.broadcast %117 : vector<1x128xf32> to vector<16x128xf32>
    %119 = arith.mulf %112, %118 : vector<16x128xf32>
    %120 = arith.addf %110, %119 : vector<16x128xf32>
    %c0_62 = arith.constant 0 : index
    %c2_63 = arith.constant 2 : index
    %c0_64 = arith.constant 0 : index
    %121 = vector.load %arg9[%c0_62, %c2_63, %c0_64] : memref<3x18x128xf32, #tpu.memory_space<vmem>>, vector<1x16x128xf32>
    %122 = vector.shape_cast %121 : vector<1x16x128xf32> to vector<16x128xf32>
    %123 = vector.extract_strided_slice %57 {offsets = [6, 0], sizes = [1, 128], strides = [1, 1]} : vector<9x128xf32> to vector<1x128xf32>
    %124 = vector.broadcast %123 : vector<1x128xf32> to vector<16x128xf32>
    %125 = arith.mulf %122, %124 : vector<16x128xf32>
    %126 = arith.addf %116, %125 : vector<16x128xf32>
    %127 = vector.extract_strided_slice %58 {offsets = [6, 0], sizes = [1, 128], strides = [1, 1]} : vector<9x128xf32> to vector<1x128xf32>
    %128 = vector.broadcast %127 : vector<1x128xf32> to vector<16x128xf32>
    %129 = arith.mulf %122, %128 : vector<16x128xf32>
    %130 = arith.addf %120, %129 : vector<16x128xf32>
    %c1_65 = arith.constant 1 : index
    %c2_66 = arith.constant 2 : index
    %c0_67 = arith.constant 0 : index
    %131 = vector.load %arg9[%c1_65, %c2_66, %c0_67] : memref<3x18x128xf32, #tpu.memory_space<vmem>>, vector<1x16x128xf32>
    %132 = vector.shape_cast %131 : vector<1x16x128xf32> to vector<16x128xf32>
    %133 = vector.extract_strided_slice %57 {offsets = [7, 0], sizes = [1, 128], strides = [1, 1]} : vector<9x128xf32> to vector<1x128xf32>
    %134 = vector.broadcast %133 : vector<1x128xf32> to vector<16x128xf32>
    %135 = arith.mulf %132, %134 : vector<16x128xf32>
    %136 = arith.addf %126, %135 : vector<16x128xf32>
    %137 = vector.extract_strided_slice %58 {offsets = [7, 0], sizes = [1, 128], strides = [1, 1]} : vector<9x128xf32> to vector<1x128xf32>
    %138 = vector.broadcast %137 : vector<1x128xf32> to vector<16x128xf32>
    %139 = arith.mulf %132, %138 : vector<16x128xf32>
    %140 = arith.addf %130, %139 : vector<16x128xf32>
    %c2_68 = arith.constant 2 : index
    %c2_69 = arith.constant 2 : index
    %c0_70 = arith.constant 0 : index
    %141 = vector.load %arg9[%c2_68, %c2_69, %c0_70] : memref<3x18x128xf32, #tpu.memory_space<vmem>>, vector<1x16x128xf32>
    %142 = vector.shape_cast %141 : vector<1x16x128xf32> to vector<16x128xf32>
    %143 = vector.extract_strided_slice %57 {offsets = [8, 0], sizes = [1, 128], strides = [1, 1]} : vector<9x128xf32> to vector<1x128xf32>
    %144 = vector.broadcast %143 : vector<1x128xf32> to vector<16x128xf32>
    %145 = arith.mulf %142, %144 : vector<16x128xf32>
    %146 = arith.addf %136, %145 : vector<16x128xf32>
    %147 = vector.extract_strided_slice %58 {offsets = [8, 0], sizes = [1, 128], strides = [1, 1]} : vector<9x128xf32> to vector<1x128xf32>
    %148 = vector.broadcast %147 : vector<1x128xf32> to vector<16x128xf32>
    %149 = arith.mulf %142, %148 : vector<16x128xf32>
    %150 = arith.addf %140, %149 : vector<16x128xf32>
    %c0_71 = arith.constant 0 : index
    %c0_72 = arith.constant 0 : index
    %c0_73 = arith.constant 0 : index
    %151 = vector.load %arg6[%c0_71, %c0_72, %c0_73] : memref<1x16x128xf32, #tpu.memory_space<vmem>>, vector<1x16x128xf32>
    %152 = vector.shape_cast %151 : vector<1x16x128xf32> to vector<16x128xf32>
    %153 = vector.shape_cast %146 : vector<16x128xf32> to vector<1x16x128xf32>
    tpu.vector_store %arg6[%c0_71, %c0_72, %c0_73], %153 {strides = array<i32>} : memref<1x16x128xf32, #tpu.memory_space<vmem>>, vector<1x16x128xf32>,
    %c0_74 = arith.constant 0 : index
    %c0_75 = arith.constant 0 : index
    %c0_76 = arith.constant 0 : index
    %154 = vector.load %arg7[%c0_74, %c0_75, %c0_76] : memref<1x16x128xf32, #tpu.memory_space<vmem>>, vector<1x16x128xf32>
    %155 = vector.shape_cast %154 : vector<1x16x128xf32> to vector<16x128xf32>
    %156 = vector.shape_cast %150 : vector<16x128xf32> to vector<1x16x128xf32>
    tpu.vector_store %arg7[%c0_74, %c0_75, %c0_76], %156 {strides = array<i32>} : memref<1x16x128xf32, #tpu.memory_space<vmem>>, vector<1x16x128xf32>,
    %cst_77 = arith.constant dense<0.000000e+00> : vector<128xf32>
    %157 = vector.multi_reduction <add>, %146, %cst_77 [0] : vector<16x128xf32> to vector<128xf32>
    %158 = vector.shape_cast %157 : vector<128xf32> to vector<1x128xf32>
    %c0_78 = arith.constant 0 : index
    %c0_79 = arith.constant 0 : index
    %c0_80 = arith.constant 0 : index
    %159 = vector.load %arg8[%c0_78, %c0_79, %c0_80] : memref<1x4x128xf32, #tpu.memory_space<vmem>>, vector<1x1x128xf32>
    %160 = vector.shape_cast %159 : vector<1x1x128xf32> to vector<1x128xf32>
    %161 = vector.shape_cast %158 : vector<1x128xf32> to vector<1x1x128xf32>
    tpu.vector_store %arg8[%c0_78, %c0_79, %c0_80], %161 {strides = array<i32>} : memref<1x4x128xf32, #tpu.memory_space<vmem>>, vector<1x1x128xf32>,
    %162 = arith.mulf %146, %146 : vector<16x128xf32>
    %cst_81 = arith.constant dense<0.000000e+00> : vector<128xf32>
    %163 = vector.multi_reduction <add>, %162, %cst_81 [0] : vector<16x128xf32> to vector<128xf32>
    %164 = vector.shape_cast %163 : vector<128xf32> to vector<1x128xf32>
    %c0_82 = arith.constant 0 : index
    %c1_83 = arith.constant 1 : index
    %c0_84 = arith.constant 0 : index
    %165 = vector.load %arg8[%c0_82, %c1_83, %c0_84] : memref<1x4x128xf32, #tpu.memory_space<vmem>>, vector<1x1x128xf32>
    %166 = vector.shape_cast %165 : vector<1x1x128xf32> to vector<1x128xf32>
    %167 = vector.shape_cast %164 : vector<1x128xf32> to vector<1x1x128xf32>
    tpu.vector_store %arg8[%c0_82, %c1_83, %c0_84], %167 {strides = array<i32>} : memref<1x4x128xf32, #tpu.memory_space<vmem>>, vector<1x1x128xf32>,
    %cst_85 = arith.constant dense<0.000000e+00> : vector<128xf32>
    %168 = vector.multi_reduction <add>, %150, %cst_85 [0] : vector<16x128xf32> to vector<128xf32>
    %169 = vector.shape_cast %168 : vector<128xf32> to vector<1x128xf32>
    %c0_86 = arith.constant 0 : index
    %c2_87 = arith.constant 2 : index
    %c0_88 = arith.constant 0 : index
    %170 = vector.load %arg8[%c0_86, %c2_87, %c0_88] : memref<1x4x128xf32, #tpu.memory_space<vmem>>, vector<1x1x128xf32>
    %171 = vector.shape_cast %170 : vector<1x1x128xf32> to vector<1x128xf32>
    %172 = vector.shape_cast %169 : vector<1x128xf32> to vector<1x1x128xf32>
    tpu.vector_store %arg8[%c0_86, %c2_87, %c0_88], %172 {strides = array<i32>} : memref<1x4x128xf32, #tpu.memory_space<vmem>>, vector<1x1x128xf32>,
    %173 = arith.mulf %150, %150 : vector<16x128xf32>
    %cst_89 = arith.constant dense<0.000000e+00> : vector<128xf32>
    %174 = vector.multi_reduction <add>, %173, %cst_89 [0] : vector<16x128xf32> to vector<128xf32>
    %175 = vector.shape_cast %174 : vector<128xf32> to vector<1x128xf32>
    %c0_90 = arith.constant 0 : index
    %c3 = arith.constant 3 : index
    %c0_91 = arith.constant 0 : index
    %176 = vector.load %arg8[%c0_90, %c3, %c0_91] : memref<1x4x128xf32, #tpu.memory_space<vmem>>, vector<1x1x128xf32>
    %177 = vector.shape_cast %176 : vector<1x1x128xf32> to vector<1x128xf32>
    %178 = vector.shape_cast %175 : vector<1x128xf32> to vector<1x1x128xf32>
    tpu.vector_store %arg8[%c0_90, %c3, %c0_91], %178 {strides = array<i32>} : memref<1x4x128xf32, #tpu.memory_space<vmem>>, vector<1x1x128xf32>,
    return
  }
  func.func @transform_0(%arg0: i32) -> (i32, i32, i32) {
    %c0_i32 = arith.constant 0 : i32
    %c0_i32_0 = arith.constant 0 : i32
    %c0_i32_1 = arith.constant 0 : i32
    return %arg0, %c0_i32, %c0_i32_0 : i32, i32, i32
  }
  func.func @transform_1(%arg0: i32) -> (i32, i32) {
    %c0_i32 = arith.constant 0 : i32
    %c0_i32_0 = arith.constant 0 : i32
    %c0_i32_1 = arith.constant 0 : i32
    return %c0_i32, %c0_i32_0 : i32, i32
  }
  func.func @transform_2(%arg0: i32) -> (i32, i32) {
    %c0_i32 = arith.constant 0 : i32
    %c0_i32_0 = arith.constant 0 : i32
    %c0_i32_1 = arith.constant 0 : i32
    return %c0_i32, %c0_i32_0 : i32, i32
  }
  func.func @transform_3(%arg0: i32) -> (i32, i32) {
    %c0_i32 = arith.constant 0 : i32
    %c0_i32_0 = arith.constant 0 : i32
    %c0_i32_1 = arith.constant 0 : i32
    return %c0_i32, %c0_i32_0 : i32, i32
  }
  func.func @transform_4(%arg0: i32) -> (i32, i32) {
    %c0_i32 = arith.constant 0 : i32
    %c0_i32_0 = arith.constant 0 : i32
    %c0_i32_1 = arith.constant 0 : i32
    return %c0_i32, %c0_i32_0 : i32, i32
  }
  func.func @transform_5(%arg0: i32) -> (i32, i32, i32) {
    %c0_i32 = arith.constant 0 : i32
    %c0_i32_0 = arith.constant 0 : i32
    %c0_i32_1 = arith.constant 0 : i32
    return %arg0, %c0_i32, %c0_i32_0 : i32, i32, i32
  }
  func.func @transform_6(%arg0: i32) -> (i32, i32, i32) {
    %c0_i32 = arith.constant 0 : i32
    %c0_i32_0 = arith.constant 0 : i32
    %c0_i32_1 = arith.constant 0 : i32
    return %arg0, %c0_i32, %c0_i32_0 : i32, i32, i32
  }
  func.func @transform_7(%arg0: i32) -> (i32, i32, i32) {
    %c0_i32 = arith.constant 0 : i32
    %c0_i32_0 = arith.constant 0 : i32
    %c0_i32_1 = arith.constant 0 : i32
    return %arg0, %c0_i32, %c0_i32_0 : i32, i32, i32
  }
}

module attributes {stable_mosaic.version = 11 : i64} {
  func.func @_final_kernel(%arg0: i32, %arg1: memref<16x128xf32, #tpu.memory_space<vmem>>, %arg2: memref<1x128xf32, #tpu.memory_space<vmem>>, %arg3: memref<1x128xf32, #tpu.memory_space<vmem>>, %arg4: memref<16x128xf32, #tpu.memory_space<vmem>>) attributes {dimension_semantics = [#tpu.dimension_semantics<parallel>], iteration_bounds = array<i64: 2>, scalar_prefetch = 0 : i64, scratch_operands = 0 : i64, tpu.core_type = #tpu.core_type<tc>, window_params = [{transform_indices = @transform_0, window_bounds = array<i64: 16, 128>}, {pipeline_mode = #tpu.pipeline_mode<synchronous>, transform_indices = @transform_1, window_bounds = array<i64: 1, 128>}, {pipeline_mode = #tpu.pipeline_mode<synchronous>, transform_indices = @transform_2, window_bounds = array<i64: 1, 128>}, {transform_indices = @transform_3, window_bounds = array<i64: 16, 128>}]} {
    %c0 = arith.constant 0 : index
    %c0_0 = arith.constant 0 : index
    %0 = vector.load %arg2[%c0, %c0_0] : memref<1x128xf32, #tpu.memory_space<vmem>>, vector<1x128xf32>
    %c0_1 = arith.constant 0 : index
    %c0_2 = arith.constant 0 : index
    %1 = vector.load %arg1[%c0_1, %c0_2] : memref<16x128xf32, #tpu.memory_space<vmem>>, vector<16x128xf32>
    %2 = vector.broadcast %0 : vector<1x128xf32> to vector<16x128xf32>
    %3 = arith.mulf %2, %1 : vector<16x128xf32>
    %c0_3 = arith.constant 0 : index
    %c0_4 = arith.constant 0 : index
    %4 = vector.load %arg3[%c0_3, %c0_4] : memref<1x128xf32, #tpu.memory_space<vmem>>, vector<1x128xf32>
    %5 = vector.broadcast %4 : vector<1x128xf32> to vector<16x128xf32>
    %6 = arith.addf %3, %5 : vector<16x128xf32>
    %cst = arith.constant 0.000000e+00 : f32
    %7 = vector.broadcast %cst : f32 to vector<16x128xf32>
    %8 = arith.cmpf ogt, %6, %7 : vector<16x128xf32>
    %9 = math.exp %6 : vector<16x128xf32>
    %cst_5 = arith.constant 1.000000e+00 : f32
    %10 = vector.broadcast %cst_5 : f32 to vector<16x128xf32>
    %11 = arith.subf %9, %10 : vector<16x128xf32>
    %cst_6 = arith.constant 1.67326319 : f32
    %12 = vector.broadcast %cst_6 : f32 to vector<16x128xf32>
    %13 = arith.mulf %12, %11 : vector<16x128xf32>
    %14 = arith.select %8, %6, %13 : vector<16x128xi1>, vector<16x128xf32>
    %cst_7 = arith.constant 1.05070102 : f32
    %15 = vector.broadcast %cst_7 : f32 to vector<16x128xf32>
    %16 = arith.mulf %15, %14 : vector<16x128xf32>
    %c0_8 = arith.constant 0 : index
    %c0_9 = arith.constant 0 : index
    %17 = vector.load %arg4[%c0_8, %c0_9] : memref<16x128xf32, #tpu.memory_space<vmem>>, vector<16x128xf32>
    tpu.vector_store %arg4[%c0_8, %c0_9], %16 {strides = array<i32>} : memref<16x128xf32, #tpu.memory_space<vmem>>, vector<16x128xf32>,
    return
  }
  func.func @transform_0(%arg0: i32) -> (i32, i32) {
    %c0_i32 = arith.constant 0 : i32
    %c0_i32_0 = arith.constant 0 : i32
    return %arg0, %c0_i32 : i32, i32
  }
  func.func @transform_1(%arg0: i32) -> (i32, i32) {
    %c0_i32 = arith.constant 0 : i32
    %c0_i32_0 = arith.constant 0 : i32
    %c0_i32_1 = arith.constant 0 : i32
    return %c0_i32, %c0_i32_0 : i32, i32
  }
  func.func @transform_2(%arg0: i32) -> (i32, i32) {
    %c0_i32 = arith.constant 0 : i32
    %c0_i32_0 = arith.constant 0 : i32
    %c0_i32_1 = arith.constant 0 : i32
    return %c0_i32, %c0_i32_0 : i32, i32
  }
  func.func @transform_3(%arg0: i32) -> (i32, i32) {
    %c0_i32 = arith.constant 0 : i32
    %c0_i32_0 = arith.constant 0 : i32
    return %arg0, %c0_i32 : i32, i32
  }
}

module attributes {stable_mosaic.version = 11 : i64} {
  func.func @_sum_kernel(%arg0: i32, %arg1: memref<16x128xf32, #tpu.memory_space<vmem>>, %arg2: memref<16x128xf32, #tpu.memory_space<vmem>>, %arg3: memref<16x128xf32, #tpu.memory_space<vmem>>, %arg4: memref<1x128xf32, #tpu.memory_space<vmem>>, %arg5: memref<1x128xf32, #tpu.memory_space<vmem>>, %arg6: memref<1x128xf32, #tpu.memory_space<vmem>>, %arg7: memref<1x128xf32, #tpu.memory_space<vmem>>, %arg8: memref<1x128xf32, #tpu.memory_space<vmem>>, %arg9: memref<1x128xf32, #tpu.memory_space<vmem>>, %arg10: memref<16x128xf32, #tpu.memory_space<vmem>>, %arg11: memref<1x2x128xf32, #tpu.memory_space<vmem>>) attributes {dimension_semantics = [#tpu.dimension_semantics<parallel>], iteration_bounds = array<i64: 2>, scalar_prefetch = 0 : i64, scratch_operands = 0 : i64, tpu.core_type = #tpu.core_type<tc>, window_params = [{transform_indices = @transform_0, window_bounds = array<i64: 16, 128>}, {transform_indices = @transform_1, window_bounds = array<i64: 16, 128>}, {transform_indices = @transform_2, window_bounds = array<i64: 16, 128>}, {pipeline_mode = #tpu.pipeline_mode<synchronous>, transform_indices = @transform_3, window_bounds = array<i64: 1, 128>}, {pipeline_mode = #tpu.pipeline_mode<synchronous>, transform_indices = @transform_4, window_bounds = array<i64: 1, 128>}, {pipeline_mode = #tpu.pipeline_mode<synchronous>, transform_indices = @transform_5, window_bounds = array<i64: 1, 128>}, {pipeline_mode = #tpu.pipeline_mode<synchronous>, transform_indices = @transform_6, window_bounds = array<i64: 1, 128>}, {pipeline_mode = #tpu.pipeline_mode<synchronous>, transform_indices = @transform_7, window_bounds = array<i64: 1, 128>}, {pipeline_mode = #tpu.pipeline_mode<synchronous>, transform_indices = @transform_8, window_bounds = array<i64: 1, 128>}, {transform_indices = @transform_9, window_bounds = array<i64: 16, 128>}, {transform_indices = @transform_10, window_bounds = array<i64: 1, 2, 128>}]} {
    %c0 = arith.constant 0 : index
    %c0_0 = arith.constant 0 : index
    %0 = vector.load %arg4[%c0, %c0_0] : memref<1x128xf32, #tpu.memory_space<vmem>>, vector<1x128xf32>
    %c0_1 = arith.constant 0 : index
    %c0_2 = arith.constant 0 : index
    %1 = vector.load %arg1[%c0_1, %c0_2] : memref<16x128xf32, #tpu.memory_space<vmem>>, vector<16x128xf32>
    %2 = vector.broadcast %0 : vector<1x128xf32> to vector<16x128xf32>
    %3 = arith.mulf %2, %1 : vector<16x128xf32>
    %c0_3 = arith.constant 0 : index
    %c0_4 = arith.constant 0 : index
    %4 = vector.load %arg5[%c0_3, %c0_4] : memref<1x128xf32, #tpu.memory_space<vmem>>, vector<1x128xf32>
    %5 = vector.broadcast %4 : vector<1x128xf32> to vector<16x128xf32>
    %6 = arith.addf %3, %5 : vector<16x128xf32>
    %cst = arith.constant 0.000000e+00 : f32
    %7 = vector.broadcast %cst : f32 to vector<16x128xf32>
    %8 = arith.cmpf ogt, %6, %7 : vector<16x128xf32>
    %9 = math.exp %6 : vector<16x128xf32>
    %cst_5 = arith.constant 1.000000e+00 : f32
    %10 = vector.broadcast %cst_5 : f32 to vector<16x128xf32>
    %11 = arith.subf %9, %10 : vector<16x128xf32>
    %cst_6 = arith.constant 1.67326319 : f32
    %12 = vector.broadcast %cst_6 : f32 to vector<16x128xf32>
    %13 = arith.mulf %12, %11 : vector<16x128xf32>
    %14 = arith.select %8, %6, %13 : vector<16x128xi1>, vector<16x128xf32>
    %cst_7 = arith.constant 1.05070102 : f32
    %15 = vector.broadcast %cst_7 : f32 to vector<16x128xf32>
    %16 = arith.mulf %15, %14 : vector<16x128xf32>
    %c0_8 = arith.constant 0 : index
    %c0_9 = arith.constant 0 : index
    %17 = vector.load %arg6[%c0_8, %c0_9] : memref<1x128xf32, #tpu.memory_space<vmem>>, vector<1x128xf32>
    %c0_10 = arith.constant 0 : index
    %c0_11 = arith.constant 0 : index
    %18 = vector.load %arg2[%c0_10, %c0_11] : memref<16x128xf32, #tpu.memory_space<vmem>>, vector<16x128xf32>
    %19 = vector.broadcast %17 : vector<1x128xf32> to vector<16x128xf32>
    %20 = arith.mulf %19, %18 : vector<16x128xf32>
    %c0_12 = arith.constant 0 : index
    %c0_13 = arith.constant 0 : index
    %21 = vector.load %arg7[%c0_12, %c0_13] : memref<1x128xf32, #tpu.memory_space<vmem>>, vector<1x128xf32>
    %22 = vector.broadcast %21 : vector<1x128xf32> to vector<16x128xf32>
    %23 = arith.addf %20, %22 : vector<16x128xf32>
    %cst_14 = arith.constant 0.000000e+00 : f32
    %24 = vector.broadcast %cst_14 : f32 to vector<16x128xf32>
    %25 = arith.cmpf ogt, %23, %24 : vector<16x128xf32>
    %26 = math.exp %23 : vector<16x128xf32>
    %cst_15 = arith.constant 1.000000e+00 : f32
    %27 = vector.broadcast %cst_15 : f32 to vector<16x128xf32>
    %28 = arith.subf %26, %27 : vector<16x128xf32>
    %cst_16 = arith.constant 1.67326319 : f32
    %29 = vector.broadcast %cst_16 : f32 to vector<16x128xf32>
    %30 = arith.mulf %29, %28 : vector<16x128xf32>
    %31 = arith.select %25, %23, %30 : vector<16x128xi1>, vector<16x128xf32>
    %cst_17 = arith.constant 1.05070102 : f32
    %32 = vector.broadcast %cst_17 : f32 to vector<16x128xf32>
    %33 = arith.mulf %32, %31 : vector<16x128xf32>
    %c0_18 = arith.constant 0 : index
    %c0_19 = arith.constant 0 : index
    %34 = vector.load %arg8[%c0_18, %c0_19] : memref<1x128xf32, #tpu.memory_space<vmem>>, vector<1x128xf32>
    %c0_20 = arith.constant 0 : index
    %c0_21 = arith.constant 0 : index
    %35 = vector.load %arg3[%c0_20, %c0_21] : memref<16x128xf32, #tpu.memory_space<vmem>>, vector<16x128xf32>
    %36 = vector.broadcast %34 : vector<1x128xf32> to vector<16x128xf32>
    %37 = arith.mulf %36, %35 : vector<16x128xf32>
    %c0_22 = arith.constant 0 : index
    %c0_23 = arith.constant 0 : index
    %38 = vector.load %arg9[%c0_22, %c0_23] : memref<1x128xf32, #tpu.memory_space<vmem>>, vector<1x128xf32>
    %39 = vector.broadcast %38 : vector<1x128xf32> to vector<16x128xf32>
    %40 = arith.addf %37, %39 : vector<16x128xf32>
    %cst_24 = arith.constant 0.000000e+00 : f32
    %41 = vector.broadcast %cst_24 : f32 to vector<16x128xf32>
    %42 = arith.cmpf ogt, %40, %41 : vector<16x128xf32>
    %43 = math.exp %40 : vector<16x128xf32>
    %cst_25 = arith.constant 1.000000e+00 : f32
    %44 = vector.broadcast %cst_25 : f32 to vector<16x128xf32>
    %45 = arith.subf %43, %44 : vector<16x128xf32>
    %cst_26 = arith.constant 1.67326319 : f32
    %46 = vector.broadcast %cst_26 : f32 to vector<16x128xf32>
    %47 = arith.mulf %46, %45 : vector<16x128xf32>
    %48 = arith.select %42, %40, %47 : vector<16x128xi1>, vector<16x128xf32>
    %cst_27 = arith.constant 1.05070102 : f32
    %49 = vector.broadcast %cst_27 : f32 to vector<16x128xf32>
    %50 = arith.mulf %49, %48 : vector<16x128xf32>
    %51 = arith.addf %16, %33 : vector<16x128xf32>
    %52 = arith.addf %51, %50 : vector<16x128xf32>
    %c0_28 = arith.constant 0 : index
    %c0_29 = arith.constant 0 : index
    %53 = vector.load %arg10[%c0_28, %c0_29] : memref<16x128xf32, #tpu.memory_space<vmem>>, vector<16x128xf32>
    tpu.vector_store %arg10[%c0_28, %c0_29], %52 {strides = array<i32>} : memref<16x128xf32, #tpu.memory_space<vmem>>, vector<16x128xf32>,
    %cst_30 = arith.constant dense<0.000000e+00> : vector<128xf32>
    %54 = vector.multi_reduction <add>, %52, %cst_30 [0] : vector<16x128xf32> to vector<128xf32>
    %55 = vector.shape_cast %54 : vector<128xf32> to vector<1x128xf32>
    %c0_31 = arith.constant 0 : index
    %c0_32 = arith.constant 0 : index
    %c0_33 = arith.constant 0 : index
    %56 = vector.load %arg11[%c0_31, %c0_32, %c0_33] : memref<1x2x128xf32, #tpu.memory_space<vmem>>, vector<1x1x128xf32>
    %57 = vector.shape_cast %56 : vector<1x1x128xf32> to vector<1x128xf32>
    %58 = vector.shape_cast %55 : vector<1x128xf32> to vector<1x1x128xf32>
    tpu.vector_store %arg11[%c0_31, %c0_32, %c0_33], %58 {strides = array<i32>} : memref<1x2x128xf32, #tpu.memory_space<vmem>>, vector<1x1x128xf32>,
    %59 = arith.mulf %52, %52 : vector<16x128xf32>
    %cst_34 = arith.constant dense<0.000000e+00> : vector<128xf32>
    %60 = vector.multi_reduction <add>, %59, %cst_34 [0] : vector<16x128xf32> to vector<128xf32>
    %61 = vector.shape_cast %60 : vector<128xf32> to vector<1x128xf32>
    %c0_35 = arith.constant 0 : index
    %c1 = arith.constant 1 : index
    %c0_36 = arith.constant 0 : index
    %62 = vector.load %arg11[%c0_35, %c1, %c0_36] : memref<1x2x128xf32, #tpu.memory_space<vmem>>, vector<1x1x128xf32>
    %63 = vector.shape_cast %62 : vector<1x1x128xf32> to vector<1x128xf32>
    %64 = vector.shape_cast %61 : vector<1x128xf32> to vector<1x1x128xf32>
    tpu.vector_store %arg11[%c0_35, %c1, %c0_36], %64 {strides = array<i32>} : memref<1x2x128xf32, #tpu.memory_space<vmem>>, vector<1x1x128xf32>,
    return
  }
  func.func @transform_0(%arg0: i32) -> (i32, i32) {
    %c0_i32 = arith.constant 0 : i32
    %c0_i32_0 = arith.constant 0 : i32
    return %arg0, %c0_i32 : i32, i32
  }
  func.func @transform_1(%arg0: i32) -> (i32, i32) {
    %c0_i32 = arith.constant 0 : i32
    %c0_i32_0 = arith.constant 0 : i32
    return %arg0, %c0_i32 : i32, i32
  }
  func.func @transform_2(%arg0: i32) -> (i32, i32) {
    %c0_i32 = arith.constant 0 : i32
    %c0_i32_0 = arith.constant 0 : i32
    return %arg0, %c0_i32 : i32, i32
  }
  func.func @transform_3(%arg0: i32) -> (i32, i32) {
    %c0_i32 = arith.constant 0 : i32
    %c0_i32_0 = arith.constant 0 : i32
    %c0_i32_1 = arith.constant 0 : i32
    return %c0_i32, %c0_i32_0 : i32, i32
  }
  func.func @transform_4(%arg0: i32) -> (i32, i32) {
    %c0_i32 = arith.constant 0 : i32
    %c0_i32_0 = arith.constant 0 : i32
    %c0_i32_1 = arith.constant 0 : i32
    return %c0_i32, %c0_i32_0 : i32, i32
  }
  func.func @transform_5(%arg0: i32) -> (i32, i32) {
    %c0_i32 = arith.constant 0 : i32
    %c0_i32_0 = arith.constant 0 : i32
    %c0_i32_1 = arith.constant 0 : i32
    return %c0_i32, %c0_i32_0 : i32, i32
  }
  func.func @transform_6(%arg0: i32) -> (i32, i32) {
    %c0_i32 = arith.constant 0 : i32
    %c0_i32_0 = arith.constant 0 : i32
    %c0_i32_1 = arith.constant 0 : i32
    return %c0_i32, %c0_i32_0 : i32, i32
  }
  func.func @transform_7(%arg0: i32) -> (i32, i32) {
    %c0_i32 = arith.constant 0 : i32
    %c0_i32_0 = arith.constant 0 : i32
    %c0_i32_1 = arith.constant 0 : i32
    return %c0_i32, %c0_i32_0 : i32, i32
  }
  func.func @transform_8(%arg0: i32) -> (i32, i32) {
    %c0_i32 = arith.constant 0 : i32
    %c0_i32_0 = arith.constant 0 : i32
    %c0_i32_1 = arith.constant 0 : i32
    return %c0_i32, %c0_i32_0 : i32, i32
  }
  func.func @transform_9(%arg0: i32) -> (i32, i32) {
    %c0_i32 = arith.constant 0 : i32
    %c0_i32_0 = arith.constant 0 : i32
    return %arg0, %c0_i32 : i32, i32
  }
  func.func @transform_10(%arg0: i32) -> (i32, i32, i32) {
    %c0_i32 = arith.constant 0 : i32
    %c0_i32_0 = arith.constant 0 : i32
    %c0_i32_1 = arith.constant 0 : i32
    return %arg0, %c0_i32, %c0_i32_0 : i32, i32, i32
  }
}

</mosaic_0001>

<llo_original>
// kernel: tile.51
$region0: #{tile.51}
  %s0 = inlined_call_operand.vmem [shape: f32[9,16,1,1,8], index: 0, kind: input, shape index: {}]
  %s1 = inlined_call_operand.vmem [shape: f32[9,128], index: 1, kind: output, shape index: {}]
  %s2 = smov 3
  %v3 = vld [vmem:[%s0] ss:$16 sm:%s2]
  %s4 = smov 12
  %v5 = vld [vmem:[%s0] ss:$16 sm:%s4]
  %vm6 = vcmask 1043458
  %v7 = vsel %vm6, %v5, %v3
  %s8 = smov 48
  %v9 = vld [vmem:[%s0] ss:$16 sm:%s8]
  %vm10 = vcmask 1045508
  %v11 = vsel %vm10, %v9, %v7
  %s12 = smov 192
  %v13 = vld [vmem:[%s0] ss:$16 sm:%s12]
  %vm14 = vcmask 1047558
  %v15 = vsel %vm14, %v13, %v11
  %vm16 = vcmask 64512
  %17 = vst.msk [vmem:[%s1] sm:$0xff] %vm16, %v15
  %s18 = scalar_lea.vmem %s0, 128
  %v19 = vld [vmem:[%s18] sm:$0x1]
  %vm20 = vcmask 64512
  %s21 = scalar_lea.vmem %s1, 8
  %22 = vst.msk [vmem:[%s21] sm:$0x1] %vm20, %v19
  %s23 = scalar_lea.vmem %s0, 15
  %s24 = smov 3
  %v25 = vld [vmem:[%s23] ss:$16 sm:%s24]
  %s26 = scalar_lea.vmem %s0, 15
  %s27 = smov 12
  %v28 = vld [vmem:[%s26] ss:$16 sm:%s27]
  %vm29 = vcmask 1043458
  %v30 = vsel %vm29, %v28, %v25
  %s31 = scalar_lea.vmem %s0, 15
  %s32 = smov 48
  %v33 = vld [vmem:[%s31] ss:$16 sm:%s32]
  %vm34 = vcmask 1045508
  %v35 = vsel %vm34, %v33, %v30
  %s36 = scalar_lea.vmem %s0, 15
  %s37 = smov 192
  %v38 = vld [vmem:[%s36] ss:$16 sm:%s37]
  %vm39 = vcmask 1047558
  %v40 = vsel %vm39, %v38, %v35
  %41 = vrot.lane.b32.xlu0 %v40, 120
  %v42 = vpop.permute.xlu0 %41
  %vm43 = vcmask 1048512
  %44 = vst.msk [vmem:[%s1] sm:$0xff] %vm43, %v42
  %s45 = scalar_lea.vmem %s0, 143
  %v46 = vld [vmem:[%s45] sm:$0x1]
  %47 = vrot.lane.b32.xlu0 %v46, 120
  %v48 = vpop.permute.xlu0 %47
  %vm49 = vcmask 1048512
  %s50 = scalar_lea.vmem %s1, 8
  %51 = vst.msk [vmem:[%s50] sm:$0x1] %vm49, %v48
  %s52 = scalar_lea.vmem %s0, 14
  %s53 = smov 3
  %v54 = vld [vmem:[%s52] ss:$16 sm:%s53]
  %s55 = scalar_lea.vmem %s0, 14
  %s56 = smov 12
  %v57 = vld [vmem:[%s55] ss:$16 sm:%s56]
  %vm58 = vcmask 1043458
  %v59 = vsel %vm58, %v57, %v54
  %s60 = scalar_lea.vmem %s0, 14
  %s61 = smov 48
  %v62 = vld [vmem:[%s60] ss:$16 sm:%s61]
  %vm63 = vcmask 1045508
  %v64 = vsel %vm63, %v62, %v59
  %s65 = scalar_lea.vmem %s0, 14
  %s66 = smov 192
  %v67 = vld [vmem:[%s65] ss:$16 sm:%s66]
  %vm68 = vcmask 1047558
  %v69 = vsel %vm68, %v67, %v64
  %70 = vrot.lane.b32.xlu0 %v69, 112
  %v71 = vpop.permute.xlu0 %70
  %vm72 = vcmask 982912
  %73 = vst.msk [vmem:[%s1] sm:$0xff] %vm72, %v71
  %s74 = scalar_lea.vmem %s0, 142
  %v75 = vld [vmem:[%s74] sm:$0x1]
  %76 = vrot.lane.b32.xlu0 %v75, 112
  %v77 = vpop.permute.xlu0 %76
  %vm78 = vcmask 982912
  %s79 = scalar_lea.vmem %s1, 8
  %80 = vst.msk [vmem:[%s79] sm:$0x1] %vm78, %v77
  %s81 = scalar_lea.vmem %s0, 13
  %s82 = smov 3
  %v83 = vld [vmem:[%s81] ss:$16 sm:%s82]
  %s84 = scalar_lea.vmem %s0, 13
  %s85 = smov 12
  %v86 = vld [vmem:[%s84] ss:$16 sm:%s85]
  %vm87 = vcmask 1043458
  %v88 = vsel %vm87, %v86, %v83
  %s89 = scalar_lea.vmem %s0, 13
  %s90 = smov 48
  %v91 = vld [vmem:[%s89] ss:$16 sm:%s90]
  %vm92 = vcmask 1045508
  %v93 = vsel %vm92, %v91, %v88
  %s94 = scalar_lea.vmem %s0, 13
  %s95 = smov 192
  %v96 = vld [vmem:[%s94] ss:$16 sm:%s95]
  %vm97 = vcmask 1047558
  %v98 = vsel %vm97, %v96, %v93
  %99 = vrot.lane.b32.xlu0 %v98, 104
  %v100 = vpop.permute.xlu0 %99
  %vm101 = vcmask 917312
  %102 = vst.msk [vmem:[%s1] sm:$0xff] %vm101, %v100
  %s103 = scalar_lea.vmem %s0, 141
  %v104 = vld [vmem:[%s103] sm:$0x1]
  %105 = vrot.lane.b32.xlu0 %v104, 104
  %v106 = vpop.permute.xlu0 %105
  %vm107 = vcmask 917312
  %s108 = scalar_lea.vmem %s1, 8
  %109 = vst.msk [vmem:[%s108] sm:$0x1] %vm107, %v106
  %s110 = scalar_lea.vmem %s0, 12
  %s111 = smov 3
  %v112 = vld [vmem:[%s110] ss:$16 sm:%s111]
  %s113 = scalar_lea.vmem %s0, 12
  %s114 = smov 12
  %v115 = vld [vmem:[%s113] ss:$16 sm:%s114]
  %vm116 = vcmask 1043458
  %v117 = vsel %vm116, %v115, %v112
  %s118 = scalar_lea.vmem %s0, 12
  %s119 = smov 48
  %v120 = vld [vmem:[%s118] ss:$16 sm:%s119]
  %vm121 = vcmask 1045508
  %v122 = vsel %vm121, %v120, %v117
  %s123 = scalar_lea.vmem %s0, 12
  %s124 = smov 192
  %v125 = vld [vmem:[%s123] ss:$16 sm:%s124]
  %vm126 = vcmask 1047558
  %v127 = vsel %vm126, %v125, %v122
  %128 = vrot.lane.b32.xlu0 %v127, 96
  %v129 = vpop.permute.xlu0 %128
  %vm130 = vcmask 851712
  %131 = vst.msk [vmem:[%s1] sm:$0xff] %vm130, %v129
  %s132 = scalar_lea.vmem %s0, 140
  %v133 = vld [vmem:[%s132] sm:$0x1]
  %134 = vrot.lane.b32.xlu0 %v133, 96
  %v135 = vpop.permute.xlu0 %134
  %vm136 = vcmask 851712
  %s137 = scalar_lea.vmem %s1, 8
  %138 = vst.msk [vmem:[%s137] sm:$0x1] %vm136, %v135
  %s139 = scalar_lea.vmem %s0, 11
  %s140 = smov 3
  %v141 = vld [vmem:[%s139] ss:$16 sm:%s140]
  %s142 = scalar_lea.vmem %s0, 11
  %s143 = smov 12
  %v144 = vld [vmem:[%s142] ss:$16 sm:%s143]
  %vm145 = vcmask 1043458
  %v146 = vsel %vm145, %v144, %v141
  %s147 = scalar_lea.vmem %s0, 11
  %s148 = smov 48
  %v149 = vld [vmem:[%s147] ss:$16 sm:%s148]
  %vm150 = vcmask 1045508
  %v151 = vsel %vm150, %v149, %v146
  %s152 = scalar_lea.vmem %s0, 11
  %s153 = smov 192
  %v154 = vld [vmem:[%s152] ss:$16 sm:%s153]
  %vm155 = vcmask 1047558
  %v156 = vsel %vm155, %v154, %v151
  %157 = vrot.lane.b32.xlu0 %v156, 88
  %v158 = vpop.permute.xlu0 %157
  %vm159 = vcmask 786112
  %160 = vst.msk [vmem:[%s1] sm:$0xff] %vm159, %v158
  %s161 = scalar_lea.vmem %s0, 139
  %v162 = vld [vmem:[%s161] sm:$0x1]
  %163 = vrot.lane.b32.xlu0 %v162, 88
  %v164 = vpop.permute.xlu0 %163
  %vm165 = vcmask 786112
  %s166 = scalar_lea.vmem %s1, 8
  %167 = vst.msk [vmem:[%s166] sm:$0x1] %vm165, %v164
  %s168 = scalar_lea.vmem %s0, 10
  %s169 = smov 3
  %v170 = vld [vmem:[%s168] ss:$16 sm:%s169]
  %s171 = scalar_lea.vmem %s0, 10
  %s172 = smov 12
  %v173 = vld [vmem:[%s171] ss:$16 sm:%s172]
  %vm174 = vcmask 1043458
  %v175 = vsel %vm174, %v173, %v170
  %s176 = scalar_lea.vmem %s0, 10
  %s177 = smov 48
  %v178 = vld [vmem:[%s176] ss:$16 sm:%s177]
  %vm179 = vcmask 1045508
  %v180 = vsel %vm179, %v178, %v175
  %s181 = scalar_lea.vmem %s0, 10
  %s182 = smov 192
  %v183 = vld [vmem:[%s181] ss:$16 sm:%s182]
  %vm184 = vcmask 1047558
  %v185 = vsel %vm184, %v183, %v180
  %186 = vrot.lane.b32.xlu0 %v185, 80
  %v187 = vpop.permute.xlu0 %186
  %vm188 = vcmask 720512
  %189 = vst.msk [vmem:[%s1] sm:$0xff] %vm188, %v187
  %s190 = scalar_lea.vmem %s0, 138
  %v191 = vld [vmem:[%s190] sm:$0x1]
  %192 = vrot.lane.b32.xlu0 %v191, 80
  %v193 = vpop.permute.xlu0 %192
  %vm194 = vcmask 720512
  %s195 = scalar_lea.vmem %s1, 8
  %196 = vst.msk [vmem:[%s195] sm:$0x1] %vm194, %v193
  %s197 = scalar_lea.vmem %s0, 9
  %s198 = smov 3
  %v199 = vld [vmem:[%s197] ss:$16 sm:%s198]
  %s200 = scalar_lea.vmem %s0, 9
  %s201 = smov 12
  %v202 = vld [vmem:[%s200] ss:$16 sm:%s201]
  %vm203 = vcmask 1043458
  %v204 = vsel %vm203, %v202, %v199
  %s205 = scalar_lea.vmem %s0, 9
  %s206 = smov 48
  %v207 = vld [vmem:[%s205] ss:$16 sm:%s206]
  %vm208 = vcmask 1045508
  %v209 = vsel %vm208, %v207, %v204
  %s210 = scalar_lea.vmem %s0, 9
  %s211 = smov 192
  %v212 = vld [vmem:[%s210] ss:$16 sm:%s211]
  %vm213 = vcmask 1047558
  %v214 = vsel %vm213, %v212, %v209
  %215 = vrot.lane.b32.xlu0 %v214, 72
  %v216 = vpop.permute.xlu0 %215
  %vm217 = vcmask 654912
  %218 = vst.msk [vmem:[%s1] sm:$0xff] %vm217, %v216
  %s219 = scalar_lea.vmem %s0, 137
  %v220 = vld [vmem:[%s219] sm:$0x1]
  %221 = vrot.lane.b32.xlu0 %v220, 72
  %v222 = vpop.permute.xlu0 %221
  %vm223 = vcmask 654912
  %s224 = scalar_lea.vmem %s1, 8
  %225 = vst.msk [vmem:[%s224] sm:$0x1] %vm223, %v222
  %s226 = scalar_lea.vmem %s0, 8
  %s227 = smov 3
  %v228 = vld [vmem:[%s226] ss:$16 sm:%s227]
  %s229 = scalar_lea.vmem %s0, 8
  %s230 = smov 12
  %v231 = vld [vmem:[%s229] ss:$16 sm:%s230]
  %vm232 = vcmask 1043458
  %v233 = vsel %vm232, %v231, %v228
  %s234 = scalar_lea.vmem %s0, 8
  %s235 = smov 48
  %v236 = vld [vmem:[%s234] ss:$16 sm:%s235]
  %vm237 = vcmask 1045508
  %v238 = vsel %vm237, %v236, %v233
  %s239 = scalar_lea.vmem %s0, 8
  %s240 = smov 192
  %v241 = vld [vmem:[%s239] ss:$16 sm:%s240]
  %vm242 = vcmask 1047558
  %v243 = vsel %vm242, %v241, %v238
  %244 = vrot.lane.b32.xlu0 %v243, 64
  %v245 = vpop.permute.xlu0 %244
  %vm246 = vcmask 589312
  %247 = vst.msk [vmem:[%s1] sm:$0xff] %vm246, %v245
  %s248 = scalar_lea.vmem %s0, 136
  %v249 = vld [vmem:[%s248] sm:$0x1]
  %250 = vrot.lane.b32.xlu0 %v249, 64
  %v251 = vpop.permute.xlu0 %250
  %vm252 = vcmask 589312
  %s253 = scalar_lea.vmem %s1, 8
  %254 = vst.msk [vmem:[%s253] sm:$0x1] %vm252, %v251
  %s255 = scalar_lea.vmem %s0, 7
  %s256 = smov 3
  %v257 = vld [vmem:[%s255] ss:$16 sm:%s256]
  %s258 = scalar_lea.vmem %s0, 7
  %s259 = smov 12
  %v260 = vld [vmem:[%s258] ss:$16 sm:%s259]
  %vm261 = vcmask 1043458
  %v262 = vsel %vm261, %v260, %v257
  %s263 = scalar_lea.vmem %s0, 7
  %s264 = smov 48
  %v265 = vld [vmem:[%s263] ss:$16 sm:%s264]
  %vm266 = vcmask 1045508
  %v267 = vsel %vm266, %v265, %v262
  %s268 = scalar_lea.vmem %s0, 7
  %s269 = smov 192
  %v270 = vld [vmem:[%s268] ss:$16 sm:%s269]
  %vm271 = vcmask 1047558
  %v272 = vsel %vm271, %v270, %v267
  %273 = vrot.lane.b32.xlu0 %v272, 56
  %v274 = vpop.permute.xlu0 %273
  %vm275 = vcmask 523712
  %276 = vst.msk [vmem:[%s1] sm:$0xff] %vm275, %v274
  %s277 = scalar_lea.vmem %s0, 135
  %v278 = vld [vmem:[%s277] sm:$0x1]
  %279 = vrot.lane.b32.xlu0 %v278, 56
  %v280 = vpop.permute.xlu0 %279
  %vm281 = vcmask 523712
  %s282 = scalar_lea.vmem %s1, 8
  %283 = vst.msk [vmem:[%s282] sm:$0x1] %vm281, %v280
  %s284 = scalar_lea.vmem %s0, 6
  %s285 = smov 3
  %v286 = vld [vmem:[%s284] ss:$16 sm:%s285]
  %s287 = scalar_lea.vmem %s0, 6
  %s288 = smov 12
  %v289 = vld [vmem:[%s287] ss:$16 sm:%s288]
  %vm290 = vcmask 1043458
  %v291 = vsel %vm290, %v289, %v286
  %s292 = scalar_lea.vmem %s0, 6
  %s293 = smov 48
  %v294 = vld [vmem:[%s292] ss:$16 sm:%s293]
  %vm295 = vcmask 1045508
  %v296 = vsel %vm295, %v294, %v291
  %s297 = scalar_lea.vmem %s0, 6
  %s298 = smov 192
  %v299 = vld [vmem:[%s297] ss:$16 sm:%s298]
  %vm300 = vcmask 1047558
  %v301 = vsel %vm300, %v299, %v296
  %302 = vrot.lane.b32.xlu0 %v301, 48
  %v303 = vpop.permute.xlu0 %302
  %vm304 = vcmask 458112
  %305 = vst.msk [vmem:[%s1] sm:$0xff] %vm304, %v303
  %s306 = scalar_lea.vmem %s0, 134
  %v307 = vld [vmem:[%s306] sm:$0x1]
  %308 = vrot.lane.b32.xlu0 %v307, 48
  %v309 = vpop.permute.xlu0 %308
  %vm310 = vcmask 458112
  %s311 = scalar_lea.vmem %s1, 8
  %312 = vst.msk [vmem:[%s311] sm:$0x1] %vm310, %v309
  %s313 = scalar_lea.vmem %s0, 5
  %s314 = smov 3
  %v315 = vld [vmem:[%s313] ss:$16 sm:%s314]
  %s316 = scalar_lea.vmem %s0, 5
  %s317 = smov 12
  %v318 = vld [vmem:[%s316] ss:$16 sm:%s317]
  %vm319 = vcmask 1043458
  %v320 = vsel %vm319, %v318, %v315
  %s321 = scalar_lea.vmem %s0, 5
  %s322 = smov 48
  %v323 = vld [vmem:[%s321] ss:$16 sm:%s322]
  %vm324 = vcmask 1045508
  %v325 = vsel %vm324, %v323, %v320
  %s326 = scalar_lea.vmem %s0, 5
  %s327 = smov 192
  %v328 = vld [vmem:[%s326] ss:$16 sm:%s327]
  %vm329 = vcmask 1047558
  %v330 = vsel %vm329, %v328, %v325
  %331 = vrot.lane.b32.xlu0 %v330, 40
  %v332 = vpop.permute.xlu0 %331
  %vm333 = vcmask 392512
  %334 = vst.msk [vmem:[%s1] sm:$0xff] %vm333, %v332
  %s335 = scalar_lea.vmem %s0, 133
  %v336 = vld [vmem:[%s335] sm:$0x1]
  %337 = vrot.lane.b32.xlu0 %v336, 40
  %v338 = vpop.permute.xlu0 %337
  %vm339 = vcmask 392512
  %s340 = scalar_lea.vmem %s1, 8
  %341 = vst.msk [vmem:[%s340] sm:$0x1] %vm339, %v338
  %s342 = scalar_lea.vmem %s0, 4
  %s343 = smov 3
  %v344 = vld [vmem:[%s342] ss:$16 sm:%s343]
  %s345 = scalar_lea.vmem %s0, 4
  %s346 = smov 12
  %v347 = vld [vmem:[%s345] ss:$16 sm:%s346]
  %vm348 = vcmask 1043458
  %v349 = vsel %vm348, %v347, %v344
  %s350 = scalar_lea.vmem %s0, 4
  %s351 = smov 48
  %v352 = vld [vmem:[%s350] ss:$16 sm:%s351]
  %vm353 = vcmask 1045508
  %v354 = vsel %vm353, %v352, %v349
  %s355 = scalar_lea.vmem %s0, 4
  %s356 = smov 192
  %v357 = vld [vmem:[%s355] ss:$16 sm:%s356]
  %vm358 = vcmask 1047558
  %v359 = vsel %vm358, %v357, %v354
  %360 = vrot.lane.b32.xlu0 %v359, 32
  %v361 = vpop.permute.xlu0 %360
  %vm362 = vcmask 326912
  %363 = vst.msk [vmem:[%s1] sm:$0xff] %vm362, %v361
  %s364 = scalar_lea.vmem %s0, 132
  %v365 = vld [vmem:[%s364] sm:$0x1]
  %366 = vrot.lane.b32.xlu0 %v365, 32
  %v367 = vpop.permute.xlu0 %366
  %vm368 = vcmask 326912
  %s369 = scalar_lea.vmem %s1, 8
  %370 = vst.msk [vmem:[%s369] sm:$0x1] %vm368, %v367
  %s371 = scalar_lea.vmem %s0, 3
  %s372 = smov 3
  %v373 = vld [vmem:[%s371] ss:$16 sm:%s372]
  %s374 = scalar_lea.vmem %s0, 3
  %s375 = smov 12
  %v376 = vld [vmem:[%s374] ss:$16 sm:%s375]
  %vm377 = vcmask 1043458
  %v378 = vsel %vm377, %v376, %v373
  %s379 = scalar_lea.vmem %s0, 3
  %s380 = smov 48
  %v381 = vld [vmem:[%s379] ss:$16 sm:%s380]
  %vm382 = vcmask 1045508
  %v383 = vsel %vm382, %v381, %v378
  %s384 = scalar_lea.vmem %s0, 3
  %s385 = smov 192
  %v386 = vld [vmem:[%s384] ss:$16 sm:%s385]
  %vm387 = vcmask 1047558
  %v388 = vsel %vm387, %v386, %v383
  %389 = vrot.lane.b32.xlu0 %v388, 24
  %v390 = vpop.permute.xlu0 %389
  %vm391 = vcmask 261312
  %392 = vst.msk [vmem:[%s1] sm:$0xff] %vm391, %v390
  %s393 = scalar_lea.vmem %s0, 131
  %v394 = vld [vmem:[%s393] sm:$0x1]
  %395 = vrot.lane.b32.xlu0 %v394, 24
  %v396 = vpop.permute.xlu0 %395
  %vm397 = vcmask 261312
  %s398 = scalar_lea.vmem %s1, 8
  %399 = vst.msk [vmem:[%s398] sm:$0x1] %vm397, %v396
  %s400 = scalar_lea.vmem %s0, 2
  %s401 = smov 3
  %v402 = vld [vmem:[%s400] ss:$16 sm:%s401]
  %s403 = scalar_lea.vmem %s0, 2
  %s404 = smov 12
  %v405 = vld [vmem:[%s403] ss:$16 sm:%s404]
  %vm406 = vcmask 1043458
  %v407 = vsel %vm406, %v405, %v402
  %s408 = scalar_lea.vmem %s0, 2
  %s409 = smov 48
  %v410 = vld [vmem:[%s408] ss:$16 sm:%s409]
  %vm411 = vcmask 1045508
  %v412 = vsel %vm411, %v410, %v407
  %s413 = scalar_lea.vmem %s0, 2
  %s414 = smov 192
  %v415 = vld [vmem:[%s413] ss:$16 sm:%s414]
  %vm416 = vcmask 1047558
  %v417 = vsel %vm416, %v415, %v412
  %418 = vrot.lane.b32.xlu0 %v417, 16
  %v419 = vpop.permute.xlu0 %418
  %vm420 = vcmask 195712
  %421 = vst.msk [vmem:[%s1] sm:$0xff] %vm420, %v419
  %s422 = scalar_lea.vmem %s0, 130
  %v423 = vld [vmem:[%s422] sm:$0x1]
  %424 = vrot.lane.b32.xlu0 %v423, 16
  %v425 = vpop.permute.xlu0 %424
  %vm426 = vcmask 195712
  %s427 = scalar_lea.vmem %s1, 8
  %428 = vst.msk [vmem:[%s427] sm:$0x1] %vm426, %v425
  %s429 = scalar_lea.vmem %s0, 1
  %s430 = smov 3
  %v431 = vld [vmem:[%s429] ss:$16 sm:%s430]
  %s432 = scalar_lea.vmem %s0, 1
  %s433 = smov 12
  %v434 = vld [vmem:[%s432] ss:$16 sm:%s433]
  %vm435 = vcmask 1043458
  %v436 = vsel %vm435, %v434, %v431
  %s437 = scalar_lea.vmem %s0, 1
  %s438 = smov 48
  %v439 = vld [vmem:[%s437] ss:$16 sm:%s438]
  %vm440 = vcmask 1045508
  %v441 = vsel %vm440, %v439, %v436
  %s442 = scalar_lea.vmem %s0, 1
  %s443 = smov 192
  %v444 = vld [vmem:[%s442] ss:$16 sm:%s443]
  %vm445 = vcmask 1047558
  %v446 = vsel %vm445, %v444, %v441
  %447 = vrot.lane.b32.xlu0 %v446, 8
  %v448 = vpop.permute.xlu0 %447
  %vm449 = vcmask 130112
  %450 = vst.msk [vmem:[%s1] sm:$0xff] %vm449, %v448
  %s451 = scalar_lea.vmem %s0, 129
  %v452 = vld [vmem:[%s451] sm:$0x1]
  %453 = vrot.lane.b32.xlu0 %v452, 8
  %v454 = vpop.permute.xlu0 %453
  %vm455 = vcmask 130112
  %s456 = scalar_lea.vmem %s1, 8
  %457 = vst.msk [vmem:[%s456] sm:$0x1] %vm455, %v454

// kernel: tca_forward.4
$region0: #{tca_forward.4}
  #allocation0 [shape = 'u32[]', space=smem, size = 0x4, offset = 0x4, fixed_abs, tag = 'smem constant byte address 0x4 - core index']
  #allocation1 [shape = 'u32[144,128]{1,0:T(1,128)}', space=vmem, size = 0x12000, scoped, tag = 'internal scratch']
  #allocation2 [shape = 'f32[16,384]{1,0:T(8,128)}', space=vmem, size = 0x6000, scoped, tag = 'scratch operand']
  %s0 = inlined_call_operand.vmem [shape: f32[2,16,128], index: 0, kind: input, shape index: {}]
  %s1 = inlined_call_operand.vmem [shape: f32[384,128], index: 1, kind: input, shape index: {}]
  %s2 = inlined_call_operand.vmem [shape: f32[2,16,128], index: 2, kind: output, shape index: {0}]
  %s3 = inlined_call_operand.vmem [shape: f32[2,2,128], index: 3, kind: output, shape index: {1}]
  %4 = xla_tuple %s2, %s3
  %s5 = sld [smem:[#allocation0]]
  $region49: #{tca_forward.4} parent=0
    _
  %s7 = ssub.s32 1, %s5
  %s8 = scalar_select 0, %s7, %s5
  loop: start=0, step=1, limit=4
  $region2: #{tca_forward.4} parent=0 // loop_pre_header
    _
  $region3: #{tca_forward.4} parent=0 // loop_header
    %s10 = sphi 0, %s14
    %p11 = scmp.ge.s32.totalorder %s10, 4
    %s20 = sphi 0, %s22
    %s23 = sphi 0, %s20
    %s24 = sphi 0, %s23
    %s40 = sphi 0, %s24
    %s44 = sphi 0, %s44
    %s46 = sphi 0, %s44
    %s47 = sphi 0, %s46
    %s61 = sphi 0, %s47
    %s67 = sphi 0, %s69
    %s70 = sphi 0, %s67
    %s71 = sphi 0, %s70
    %s87 = sphi 0, %s71
    %s93 = sphi 0, %s95
    %s96 = sphi 0, %s93
    %s97 = sphi 0, %s96
    %s113 = sphi 0, %s97
  $region4: #{tca_forward.4} parent=0 // loop_header_branch
    %13 = sbr.rel (%p11) target = $region8
  $region5: #{tca_forward.4} parent=0 // loop_body
    %s15 = ssub.s32 %s10, 1
    %s16 = ssub.s32 %s10, 2
    %s17 = sadd.s32 %s10, 1
    %s18 = ssub.s32 %s10, %s17
    %p19 = scmp.eq.s32.totalorder %s18, 0
    %s21 = sadd.s32 %s20, 1
    %s22 = scalar_select %p19, %s20, %s21
    %p25 = pneg %p19
    %p26 = scmp.eq.s32.totalorder %s10, 1
    %p27 = por %p25, %p26
    %p28 = scmp.ne.s32.totalorder %s20, %s23
    %p29 = scmp.eq.s32.totalorder %s10, 0
    %p30 = por %p28, %p29
    %p31 = scmp.ne.s32.totalorder %s20, %s23
    %p32 = scmp.eq.s32.totalorder %s15, 1
    %p33 = por %p31, %p32
    %p34 = scmp.ne.s32.totalorder %s23, %s24
    %p35 = scmp.eq.s32.totalorder %s15, 0
    %p36 = por %p34, %p35
    %p37 = scmp.ne.s32.totalorder %s23, %s24
    %p38 = scmp.eq.s32.totalorder %s16, 1
    %p39 = por %p37, %p38
    %p41 = scmp.ne.s32.totalorder %s24, %s40
    %p42 = scmp.eq.s32.totalorder %s16, 0
    %p43 = por %p41, %p42
    %s45 = sadd.s32 %s44, 1
    %p48 = scmp.eq.s32.totalorder %s10, 1
    %p49 = scmp.ne.s32.totalorder %s44, %s46
    %p50 = scmp.eq.s32.totalorder %s10, 0
    %p51 = por %p49, %p50
    %p52 = scmp.ne.s32.totalorder %s44, %s46
    %p53 = scmp.eq.s32.totalorder %s15, 1
    %p54 = por %p52, %p53
    %p55 = scmp.ne.s32.totalorder %s46, %s47
    %p56 = scmp.eq.s32.totalorder %s15, 0
    %p57 = por %p55, %p56
    %p58 = scmp.ne.s32.totalorder %s46, %s47
    %p59 = scmp.eq.s32.totalorder %s16, 1
    %p60 = por %p58, %p59
    %p62 = scmp.ne.s32.totalorder %s47, %s61
    %p63 = scmp.eq.s32.totalorder %s16, 0
    %p64 = por %p62, %p63
    %s65 = ssub.s32 %s10, %s17
    %p66 = scmp.eq.s32.totalorder %s65, 0
    %s68 = sadd.s32 %s67, 1
    %s69 = scalar_select %p66, %s67, %s68
    %p72 = pneg %p66
    %p73 = scmp.eq.s32.totalorder %s10, 1
    %p74 = por %p72, %p73
    %p75 = scmp.ne.s32.totalorder %s67, %s70
    %p76 = scmp.eq.s32.totalorder %s10, 0
    %p77 = por %p75, %p76
    %p78 = scmp.ne.s32.totalorder %s67, %s70
    %p79 = scmp.eq.s32.totalorder %s15, 1
    %p80 = por %p78, %p79
    %p81 = scmp.ne.s32.totalorder %s70, %s71
    %p82 = scmp.eq.s32.totalorder %s15, 0
    %p83 = por %p81, %p82
    %p84 = scmp.ne.s32.totalorder %s70, %s71
    %p85 = scmp.eq.s32.totalorder %s16, 1
    %p86 = por %p84, %p85
    %p88 = scmp.ne.s32.totalorder %s71, %s87
    %p89 = scmp.eq.s32.totalorder %s16, 0
    %p90 = por %p88, %p89
    %s91 = ssub.s32 %s10, %s17
    %p92 = scmp.eq.s32.totalorder %s91, 0
    %s94 = sadd.s32 %s93, 1
    %s95 = scalar_select %p92, %s93, %s94
    %p98 = pneg %p92
    %p99 = scmp.eq.s32.totalorder %s10, 1
    %p100 = por %p98, %p99
    %p101 = scmp.ne.s32.totalorder %s93, %s96
    %p102 = scmp.eq.s32.totalorder %s10, 0
    %p103 = por %p101, %p102
    %p104 = scmp.ne.s32.totalorder %s93, %s96
    %p105 = scmp.eq.s32.totalorder %s15, 1
    %p106 = por %p104, %p105
    %p107 = scmp.ne.s32.totalorder %s96, %s97
    %p108 = scmp.eq.s32.totalorder %s15, 0
    %p109 = por %p107, %p108
    %p110 = scmp.ne.s32.totalorder %s96, %s97
    %p111 = scmp.eq.s32.totalorder %s16, 1
    %p112 = por %p110, %p111
    %p114 = scmp.ne.s32.totalorder %s97, %s113
    %p115 = scmp.eq.s32.totalorder %s16, 0
    %p116 = por %p114, %p115
    %p117 = scmp.le.s32.totalorder 1, %s10
    %p118 = scmp.lt.s32.totalorder %s10, 3
    %p119 = pnand %p117, %p118
    %p120 = pneg %p119
    // Predicated region
    $region9: #{tca_forward.4} parent=5 // pred_check
      _
    $region10: #{tca_forward.4} parent=5 // pred_check_branch
      %122 = sbr.rel (%p119) target = $region12
    $region11: #{tca_forward.4} parent=5 // pred_region
      %s123 = ssub.s32 %s10, 1
      // Predicated region
      $region13: #{tca_forward.4} parent=11 // pred_check
        %p124 = pneg %p57
      $region14: #{tca_forward.4} parent=11 // pred_check_branch
        %126 = sbr.rel (%p124) target = $region16
      $region15: #{tca_forward.4} parent=11 // pred_region
        _
      $region16: #{tca_forward.4} parent=11 // pred_fallthru
        _
    $region12: #{tca_forward.4} parent=5 // pred_fallthru
      _
    %p127 = scmp.lt.s32.totalorder %s10, 2
    // Predicated region
    $region17: #{tca_forward.4} parent=5 // pred_check
      %p128 = pneg %p127
    $region18: #{tca_forward.4} parent=5 // pred_check_branch
      %130 = sbr.rel (%p128) target = $region20
    $region19: #{tca_forward.4} parent=5 // pred_region
      // Predicated region
      $region21: #{tca_forward.4} parent=19 // pred_check
        %p131 = pneg %p30
      $region22: #{tca_forward.4} parent=19 // pred_check_branch
        %133 = sbr.rel (%p131) target = $region24
      $region23: #{tca_forward.4} parent=19 // pred_region
        %p134 = scmp.lt.s32.totalorder %s10, 1
        %s135 = scalar_select %p134, %s10, 1
        %s136 = smul.addr %s135, 2
        %s137 = smul.addr %s136, 8
        %s138 = scalar_lea.vmem %s0, %s137
      $region24: #{tca_forward.4} parent=19 // pred_fallthru
        _
    $region20: #{tca_forward.4} parent=5 // pred_fallthru
      _
    %p139 = scmp.le.s32.totalorder 1, %s10
    %p140 = scmp.lt.s32.totalorder %s10, 3
    %p141 = pnand %p139, %p140
    %p142 = pneg %p141
    // Predicated region
    $region25: #{tca_forward.4} parent=5 // pred_check
      _
    $region26: #{tca_forward.4} parent=5 // pred_check_branch
      %144 = sbr.rel (%p141) target = $region28
    $region27: #{tca_forward.4} parent=5 // pred_region
      %s145 = ssub.s32 %s10, 1
      %p146 = scmp.lt.s32.totalorder %s15, 1
      %s147 = scalar_select %p146, %s15, 1
      %s148 = smul.addr %s147, 2
      %s149 = smul.addr %s148, 8
      %s150 = scalar_lea.vmem %s0, %s149
      %p151 = pneg %p36
      %p152 = pneg %p33
      %p153 = pneg %p57
      %p154 = pneg %p54
      %p155 = pneg %p83
      %p156 = pneg %p80
      %p157 = scmp.lt.s32.totalorder %s15, 1
      %s158 = scalar_select %p157, %s15, 1
      %s159 = smul.addr %s158, 2
      %s160 = smul.addr %s159, 8
      %s161 = scalar_lea.vmem %s2, %s160
      %p162 = pneg %p109
      %p163 = pneg %p106
      %p164 = scmp.lt.s32.totalorder %s15, 1
      %s165 = scalar_select %p164, %s15, 1
      %s166 = smul.addr %s165, 2
      %s167 = scalar_lea.vmem %s3, %s166
      %p168 = scmp.lt.s32.totalorder %s15, 1
      %s169 = scalar_select %p168, %s15, 1
      %s170 = smul.addr %s169, 2
      %s171 = smul.addr %s170, 8
      %s172 = scalar_lea.vmem %s0, %s171
      %p173 = scmp.lt.s32.totalorder %s15, 1
      %s174 = scalar_select %p173, %s15, 1
      %s175 = smul.addr %s174, 2
      %s176 = smul.addr %s175, 8
      %s177 = scalar_lea.vmem %s2, %s176
      %p178 = scmp.lt.s32.totalorder %s15, 1
      %s179 = scalar_select %p178, %s15, 1
      %s180 = smul.addr %s179, 2
      %s181 = scalar_lea.vmem %s3, %s180
      %v182 = vld [vmem:[%s172] sm:$0xff]
      %v183 = vld [vmem:[%s172 + $0x8] sm:$0xff]
      %184 = vst [vmem:[#allocation2 + $0x8] sm:$0xff] %v182
      %185 = vst [vmem:[#allocation2 + $0x20] sm:$0xff] %v183
      %186 = vst [vmem:[#allocation2] sm:$0x1] 0.0
      %vm189 = vcmask 1040384
      %v190 = vrot.slane %v182, 7
      %v191 = vrot.slane %v183, 7
      %v192 = vsel %vm189, %v190, %v191
      %195 = vst [vmem:[#allocation2] sm:$0xfe] %v190
      %196 = vst [vmem:[#allocation2 + $0x18] sm:$0xff] %v192
      %vm197 = vcmask 1046528
      %v198 = vrot.slane %v182, 1
      %v199 = vrot.slane %v183, 1
      %v200 = vsel %vm197, %v198, %v199
      %203 = vst [vmem:[#allocation2 + $0x10] sm:$0xff] %v200
      %204 = vst [vmem:[#allocation2 + $0x28] sm:$0x7f] %v199
      %205 = vst [vmem:[#allocation2 + $0x2f] sm:$0x1] 0.0
      %v206 = vld [vmem:[#allocation2] sm:$0xff]
      %v207 = vld [vmem:[#allocation2 + $0x8] sm:$0xff]
      %v208 = vld [vmem:[#allocation2 + $0x10] sm:$0xff]
      %v209 = vld [vmem:[#allocation2 + $0x18] sm:$0xff]
      %v210 = vld [vmem:[#allocation2 + $0x20] sm:$0xff]
      %v211 = vld [vmem:[#allocation2 + $0x28] sm:$0xff]
      %v212 = vld [vmem:[%s1] sm:$0xff]
      %v213 = vld [vmem:[%s1 + $0x8] sm:$0xff]
      %v214 = vld [vmem:[%s1 + $0x10] sm:$0xff]
      %v215 = vld [vmem:[%s1 + $0x18] sm:$0xff]
      %v216 = vld [vmem:[%s1 + $0x20] sm:$0xff]
      %v217 = vld [vmem:[%s1 + $0x28] sm:$0xff]
      %v218 = vld [vmem:[%s1 + $0x30] sm:$0xff]
      %v219 = vld [vmem:[%s1 + $0x38] sm:$0xff]
      %v220 = vld [vmem:[%s1 + $0x40] sm:$0xff]
      %v221 = vld [vmem:[%s1 + $0x48] sm:$0xff]
      %v222 = vld [vmem:[%s1 + $0x50] sm:$0xff]
      %v223 = vld [vmem:[%s1 + $0x58] sm:$0xff]
      %v224 = vld [vmem:[%s1 + $0x60] sm:$0xff]
      %v225 = vld [vmem:[%s1 + $0x68] sm:$0xff]
      %v226 = vld [vmem:[%s1 + $0x70] sm:$0xff]
      %v227 = vld [vmem:[%s1 + $0x78] sm:$0xff]
      %v228 = vld [vmem:[%s1 + $0x80] sm:$0xff]
      %v229 = vld [vmem:[%s1 + $0x88] sm:$0xff]
      %v230 = vld [vmem:[%s1 + $0x90] sm:$0xff]
      %v231 = vld [vmem:[%s1 + $0x98] sm:$0xff]
      %v232 = vld [vmem:[%s1 + $0xa0] sm:$0xff]
      %v233 = vld [vmem:[%s1 + $0xa8] sm:$0xff]
      %v234 = vld [vmem:[%s1 + $0xb0] sm:$0xff]
      %v235 = vld [vmem:[%s1 + $0xb8] sm:$0xff]
      %v236 = vld [vmem:[%s1 + $0xc0] sm:$0xff]
      %v237 = vld [vmem:[%s1 + $0xc8] sm:$0xff]
      %v238 = vld [vmem:[%s1 + $0xd0] sm:$0xff]
      %v239 = vld [vmem:[%s1 + $0xd8] sm:$0xff]
      %v240 = vld [vmem:[%s1 + $0xe0] sm:$0xff]
      %v241 = vld [vmem:[%s1 + $0xe8] sm:$0xff]
      %v242 = vld [vmem:[%s1 + $0xf0] sm:$0xff]
      %v243 = vld [vmem:[%s1 + $0xf8] sm:$0xff]
      %v244 = vld [vmem:[%s1 + $0x100] sm:$0xff]
      %v245 = vld [vmem:[%s1 + $0x108] sm:$0xff]
      %v246 = vld [vmem:[%s1 + $0x110] sm:$0xff]
      %v247 = vld [vmem:[%s1 + $0x118] sm:$0xff]
      %v248 = vld [vmem:[%s1 + $0x120] sm:$0xff]
      %v249 = vld [vmem:[%s1 + $0x128] sm:$0xff]
      %v250 = vld [vmem:[%s1 + $0x130] sm:$0xff]
      %v251 = vld [vmem:[%s1 + $0x138] sm:$0xff]
      %v252 = vld [vmem:[%s1 + $0x140] sm:$0xff]
      %v253 = vld [vmem:[%s1 + $0x148] sm:$0xff]
      %v254 = vld [vmem:[%s1 + $0x150] sm:$0xff]
      %v255 = vld [vmem:[%s1 + $0x158] sm:$0xff]
      %v256 = vld [vmem:[%s1 + $0x160] sm:$0xff]
      %v257 = vld [vmem:[%s1 + $0x168] sm:$0xff]
      %v258 = vld [vmem:[%s1 + $0x170] sm:$0xff]
      %v259 = vld [vmem:[%s1 + $0x178] sm:$0xff]
      %260 = vmatprep.subr.mxu0 0.0
      %261 = vmatpush1.msra.mxu0 %v212
      %262 = vmatprep.subr.mxu0 0.0
      %263 = vmatpush1.msra.mxu0 %v213
      %264 = vmatprep.subr.mxu0 0.0
      %265 = vmatpush1.msra.mxu0 %v214
      %266 = vmatprep.subr.mxu0 0.0
      %267 = vmatpush1.msra.mxu0 %v215
      %268 = vmatprep.subr.mxu0 0.0
      %269 = vmatpush1.msra.mxu0 %v216
      %270 = vmatprep.subr.mxu0 0.0
      %271 = vmatpush1.msra.mxu0 %v217
      %272 = vmatprep.subr.mxu0 0.0
      %273 = vmatpush1.msra.mxu0 %v218
      %274 = vmatprep.subr.mxu0 0.0
      %275 = vmatpush1.msra.mxu0 %v219
      %276 = vmatprep.subr.mxu0 0.0
      %277 = vmatpush1.msra.mxu0 %v220
      %278 = vmatprep.subr.mxu0 0.0
      %279 = vmatpush1.msra.mxu0 %v221
      %280 = vmatprep.subr.mxu0 0.0
      %281 = vmatpush1.msra.mxu0 %v222
      %282 = vmatprep.subr.mxu0 0.0
      %283 = vmatpush1.msra.mxu0 %v223
      %284 = vmatprep.subr.mxu0 0.0
      %285 = vmatpush1.msra.mxu0 %v224
      %286 = vmatprep.subr.mxu0 0.0
      %287 = vmatpush1.msra.mxu0 %v225
      %288 = vmatprep.subr.mxu0 0.0
      %289 = vmatpush1.msra.mxu0 %v226
      %290 = vmatprep.subr.mxu0 0.0
      %291 = vmatpush1.msra.mxu0 %v227
      %292 = vmatprep.subr.mxu0 0.0
      %293 = vmatpush1.msra.mxu0 %v228
      %294 = vmatprep.subr.mxu0 0.0
      %295 = vmatpush1.msra.mxu0 %v229
      %296 = vmatprep.subr.mxu0 0.0
      %297 = vmatpush1.msra.mxu0 %v230
      %298 = vmatprep.subr.mxu0 0.0
      %299 = vmatpush1.msra.mxu0 %v231
      %300 = vmatprep.subr.mxu0 0.0
      %301 = vmatpush1.msra.mxu0 %v232
      %302 = vmatprep.subr.mxu0 0.0
      %303 = vmatpush1.msra.mxu0 %v233
      %304 = vmatprep.subr.mxu0 0.0
      %305 = vmatpush1.msra.mxu0 %v234
      %306 = vmatprep.subr.mxu0 0.0
      %307 = vmatpush1.msra.mxu0 %v235
      %308 = vmatprep.subr.mxu0 0.0
      %309 = vmatpush1.msra.mxu0 %v236
      %310 = vmatprep.subr.mxu0 0.0
      %311 = vmatpush1.msra.mxu0 %v237
      %312 = vmatprep.subr.mxu0 0.0
      %313 = vmatpush1.msra.mxu0 %v238
      %314 = vmatprep.subr.mxu0 0.0
      %315 = vmatpush1.msra.mxu0 %v239
      %316 = vmatprep.subr.mxu0 0.0
      %317 = vmatpush1.msra.mxu0 %v240
      %318 = vmatprep.subr.mxu0 0.0
      %319 = vmatpush1.msra.mxu0 %v241
      %320 = vmatprep.subr.mxu0 0.0
      %321 = vmatpush1.msra.mxu0 %v242
      %322 = vmatprep.subr.mxu0 0.0
      %323 = vmatpush1.msra.mxu0 %v243
      %324 = vmatprep.mubr.f32.mxu0 %v207
      %325 = vmatmul.mubr.f32.gmra.mrb[0].mxu0 %v206
      %v326 = vpop.f32.mrb[0].mxu0
      %v327 = vadd.f32 0.0, %v326
      %v328 = vpop.f32.mrb[0].mxu0
      %329 = vmatprep.mubr.f32.mxu0 %v210
      %330 = vmatmul.mubr.f32.gmra.mrb[0].mxu0 %v209
      %v331 = vpop.f32.mrb[0].mxu0
      %v332 = vadd.f32 0.0, %v331
      %v333 = vpop.f32.mrb[0].mxu0
      %334 = vdwg.mxu0
      %335 = vmatprep.subr.mxu0 0.0
      %336 = vmatpush1.msra.mxu0 %v244
      %337 = vmatprep.subr.mxu0 0.0
      %338 = vmatpush1.msra.mxu0 %v245
      %339 = vmatprep.subr.mxu0 0.0
      %340 = vmatpush1.msra.mxu0 %v246
      %341 = vmatprep.subr.mxu0 0.0
      %342 = vmatpush1.msra.mxu0 %v247
      %343 = vmatprep.subr.mxu0 0.0
      %344 = vmatpush1.msra.mxu0 %v248
      %345 = vmatprep.subr.mxu0 0.0
      %346 = vmatpush1.msra.mxu0 %v249
      %347 = vmatprep.subr.mxu0 0.0
      %348 = vmatpush1.msra.mxu0 %v250
      %349 = vmatprep.subr.mxu0 0.0
      %350 = vmatpush1.msra.mxu0 %v251
      %351 = vmatprep.subr.mxu0 0.0
      %352 = vmatpush1.msra.mxu0 %v252
      %353 = vmatprep.subr.mxu0 0.0
      %354 = vmatpush1.msra.mxu0 %v253
      %355 = vmatprep.subr.mxu0 0.0
      %356 = vmatpush1.msra.mxu0 %v254
      %357 = vmatprep.subr.mxu0 0.0
      %358 = vmatpush1.msra.mxu0 %v255
      %359 = vmatprep.subr.mxu0 0.0
      %360 = vmatpush1.msra.mxu0 %v256
      %361 = vmatprep.subr.mxu0 0.0
      %362 = vmatpush1.msra.mxu0 %v257
      %363 = vmatprep.subr.mxu0 0.0
      %364 = vmatpush1.msra.mxu0 %v258
      %365 = vmatprep.subr.mxu0 0.0
      %366 = vmatpush1.msra.mxu0 %v259
      %367 = vmatprep.subr.mxu0 0.0
      %368 = vmatpush1.msra.mxu0 0.0
      %369 = vmatprep.subr.mxu0 0.0
      %370 = vmatpush1.msra.mxu0 0.0
      %371 = vmatprep.subr.mxu0 0.0
      %372 = vmatpush1.msra.mxu0 0.0
      %373 = vmatprep.subr.mxu0 0.0
      %374 = vmatpush1.msra.mxu0 0.0
      %375 = vmatprep.subr.mxu0 0.0
      %376 = vmatpush1.msra.mxu0 0.0
      %377 = vmatprep.subr.mxu0 0.0
      %378 = vmatpush1.msra.mxu0 0.0
      %379 = vmatprep.subr.mxu0 0.0
      %380 = vmatpush1.msra.mxu0 0.0
      %381 = vmatprep.subr.mxu0 0.0
      %382 = vmatpush1.msra.mxu0 0.0
      %383 = vmatprep.subr.mxu0 0.0
      %384 = vmatpush1.msra.mxu0 0.0
      %385 = vmatprep.subr.mxu0 0.0
      %386 = vmatpush1.msra.mxu0 0.0
      %387 = vmatprep.subr.mxu0 0.0
      %388 = vmatpush1.msra.mxu0 0.0
      %389 = vmatprep.subr.mxu0 0.0
      %390 = vmatpush1.msra.mxu0 0.0
      %391 = vmatprep.subr.mxu0 0.0
      %392 = vmatpush1.msra.mxu0 0.0
      %393 = vmatprep.subr.mxu0 0.0
      %394 = vmatpush1.msra.mxu0 0.0
      %395 = vmatprep.subr.mxu0 0.0
      %396 = vmatpush1.msra.mxu0 0.0
      %397 = vmatprep.subr.mxu0 0.0
      %398 = vmatpush1.msra.mxu0 0.0
      %399 = vmatprep.mubr.f32.mxu0 0.0
      %400 = vmatmul.mubr.f32.gmra.mrb[0].mxu0 %v208
      %v401 = vpop.f32.mrb[0].mxu0
      %v402 = vadd.f32 %v327, %v401
      %v403 = vpop.f32.mrb[0].mxu0
      %404 = vmatprep.mubr.f32.mxu0 0.0
      %405 = vmatmul.mubr.f32.gmra.mrb[0].mxu0 %v211
      %v406 = vpop.f32.mrb[0].mxu0
      %v407 = vadd.f32 %v332, %v406
      %v408 = vpop.f32.mrb[0].mxu0
      %409 = vdwg.mxu0
      %410 = vst [vmem:[%s177] sm:$0xff] %v402
      %411 = vst [vmem:[%s177 + $0x8] sm:$0xff] %v407
      %v412 = vadd.f32 %v402, %v407
      %v413 = vrot.slane %v412, 4
      %v414 = vadd.f32 %v412, %v413
      %v415 = vrot.slane %v414, 2
      %v416 = vadd.f32 %v414, %v415
      %v417 = vrot.slane %v416, 1
      %v418 = vadd.f32 %v416, %v417
      %419 = vst [vmem:[%s181] sm:$0x1] %v418
      %v420 = vmul.f32 %v402, %v402
      %v421 = vmul.f32 %v407, %v407
      %v422 = vadd.f32 %v420, %v421
      %v423 = vrot.slane %v422, 4
      %v424 = vadd.f32 %v422, %v423
      %v425 = vrot.slane %v424, 2
      %v426 = vadd.f32 %v424, %v425
      %v427 = vrot.slane %v426, 1
      %v428 = vadd.f32 %v426, %v427
      %429 = vst [vmem:[%s181 + $0x1] sm:$0x1] %v428
      %p430 = scmp.lt.s32.totalorder %s15, 1
      %s431 = scalar_select %p430, %s15, 1
      %s432 = smul.addr %s431, 2
      %s433 = smul.addr %s432, 8
      %s434 = scalar_lea.vmem %s2, %s433
      %p435 = scmp.lt.s32.totalorder %s15, 1
      %s436 = scalar_select %p435, %s15, 1
      %s437 = smul.addr %s436, 2
      %s438 = scalar_lea.vmem %s3, %s437
      // Predicated region
      $region29: #{tca_forward.4} parent=27 // pred_check
        %p439 = pneg %p80
      $region30: #{tca_forward.4} parent=27 // pred_check_branch
        %441 = sbr.rel (%p439) target = $region32
      $region31: #{tca_forward.4} parent=27 // pred_region
        _
      $region32: #{tca_forward.4} parent=27 // pred_fallthru
        _
      // Predicated region
      $region33: #{tca_forward.4} parent=27 // pred_check
        %p442 = pneg %p106
      $region34: #{tca_forward.4} parent=27 // pred_check_branch
        %444 = sbr.rel (%p442) target = $region36
      $region35: #{tca_forward.4} parent=27 // pred_region
        _
      $region36: #{tca_forward.4} parent=27 // pred_fallthru
        _
    $region28: #{tca_forward.4} parent=5 // pred_fallthru
      _
    %p445 = scmp.le.s32.totalorder 2, %s10
    // Predicated region
    $region37: #{tca_forward.4} parent=5 // pred_check
      %p446 = pneg %p445
    $region38: #{tca_forward.4} parent=5 // pred_check_branch
      %448 = sbr.rel (%p446) target = $region40
    $region39: #{tca_forward.4} parent=5 // pred_region
      %s449 = ssub.s32 %s10, 2
      // Predicated region
      $region41: #{tca_forward.4} parent=39 // pred_check
        %p450 = pneg %p86
      $region42: #{tca_forward.4} parent=39 // pred_check_branch
        %452 = sbr.rel (%p450) target = $region44
      $region43: #{tca_forward.4} parent=39 // pred_region
        %p453 = scmp.lt.s32.totalorder %s16, 1
        %s454 = scalar_select %p453, %s16, 1
        %s455 = smul.addr %s454, 2
        %s456 = smul.addr %s455, 8
        %s457 = scalar_lea.vmem %s2, %s456
      $region44: #{tca_forward.4} parent=39 // pred_fallthru
        _
      // Predicated region
      $region45: #{tca_forward.4} parent=39 // pred_check
        %p458 = pneg %p112
      $region46: #{tca_forward.4} parent=39 // pred_check_branch
        %460 = sbr.rel (%p458) target = $region48
      $region47: #{tca_forward.4} parent=39 // pred_region
        %p461 = scmp.lt.s32.totalorder %s16, 1
        %s462 = scalar_select %p461, %s16, 1
        %s463 = smul.addr %s462, 2
        %s464 = scalar_lea.vmem %s3, %s463
      $region48: #{tca_forward.4} parent=39 // pred_fallthru
        _
    $region40: #{tca_forward.4} parent=5 // pred_fallthru
      _
  $region6: #{tca_forward.4} parent=0 // loop_footer
    %s14 = sadd.s32 1, %s10
  $region7: #{tca_forward.4} parent=0 // loop_footer_branch
    %9 = sbr.rel target = $region3
  $region8: #{tca_forward.4} parent=0 // loop_exit
    _

// kernel: tca_forward.5
$region0: #{tca_forward.5}
  #allocation0 [shape = 'u32[]', space=smem, size = 0x4, offset = 0x4, fixed_abs, tag = 'smem constant byte address 0x4 - core index']
  #allocation1 [shape = 'u32[144,128]{1,0:T(1,128)}', space=vmem, size = 0x12000, scoped, tag = 'internal scratch']
  #allocation2 [shape = 'f32[3,18,128]{2,1,0:T(8,128)}', space=vmem, size = 0x9000, scoped, tag = 'scratch operand']
  %s0 = inlined_call_operand.vmem [shape: f32[2,16,128], index: 0, kind: input, shape index: {}]
  %s1 = inlined_call_operand.vmem [shape: f32[1,128], index: 1, kind: input, shape index: {}]
  %s2 = inlined_call_operand.vmem [shape: f32[1,128], index: 2, kind: input, shape index: {}]
  %s3 = inlined_call_operand.vmem [shape: f32[9,128], index: 3, kind: input, shape index: {}]
  %s4 = inlined_call_operand.vmem [shape: f32[9,128], index: 4, kind: input, shape index: {}]
  %s5 = inlined_call_operand.vmem [shape: f32[2,16,128], index: 5, kind: output, shape index: {0}]
  %s6 = inlined_call_operand.vmem [shape: f32[2,16,128], index: 6, kind: output, shape index: {1}]
  %s7 = inlined_call_operand.vmem [shape: f32[2,4,128], index: 7, kind: output, shape index: {2}]
  %8 = xla_tuple %s5, %s6, %s7
  %s9 = sld [smem:[#allocation0]]
  $region69: #{tca_forward.5} parent=0
    _
  %s11 = ssub.s32 1, %s9
  %s12 = scalar_select 0, %s11, %s9
  loop: start=0, step=1, limit=4
  $region2: #{tca_forward.5} parent=0 // loop_pre_header
    _
  $region3: #{tca_forward.5} parent=0 // loop_header
    %s14 = sphi 0, %s18
    %p15 = scmp.ge.s32.totalorder %s14, 4
    %s24 = sphi 0, %s26
    %s27 = sphi 0, %s24
    %s28 = sphi 0, %s27
    %s44 = sphi 0, %s28
    %s48 = sphi 0, %s48
    %s50 = sphi 0, %s48
    %s51 = sphi 0, %s50
    %s65 = sphi 0, %s51
    %s69 = sphi 0, %s69
    %s71 = sphi 0, %s69
    %s72 = sphi 0, %s71
    %s86 = sphi 0, %s72
    %s90 = sphi 0, %s90
    %s92 = sphi 0, %s90
    %s93 = sphi 0, %s92
    %s107 = sphi 0, %s93
    %s111 = sphi 0, %s111
    %s113 = sphi 0, %s111
    %s114 = sphi 0, %s113
    %s128 = sphi 0, %s114
    %s134 = sphi 0, %s136
    %s137 = sphi 0, %s134
    %s138 = sphi 0, %s137
    %s154 = sphi 0, %s138
    %s160 = sphi 0, %s162
    %s163 = sphi 0, %s160
    %s164 = sphi 0, %s163
    %s180 = sphi 0, %s164
    %s186 = sphi 0, %s188
    %s189 = sphi 0, %s186
    %s190 = sphi 0, %s189
    %s206 = sphi 0, %s190
  $region4: #{tca_forward.5} parent=0 // loop_header_branch
    %17 = sbr.rel (%p15) target = $region8
  $region5: #{tca_forward.5} parent=0 // loop_body
    %s19 = ssub.s32 %s14, 1
    %s20 = ssub.s32 %s14, 2
    %s21 = sadd.s32 %s14, 1
    %s22 = ssub.s32 %s14, %s21
    %p23 = scmp.eq.s32.totalorder %s22, 0
    %s25 = sadd.s32 %s24, 1
    %s26 = scalar_select %p23, %s24, %s25
    %p29 = pneg %p23
    %p30 = scmp.eq.s32.totalorder %s14, 1
    %p31 = por %p29, %p30
    %p32 = scmp.ne.s32.totalorder %s24, %s27
    %p33 = scmp.eq.s32.totalorder %s14, 0
    %p34 = por %p32, %p33
    %p35 = scmp.ne.s32.totalorder %s24, %s27
    %p36 = scmp.eq.s32.totalorder %s19, 1
    %p37 = por %p35, %p36
    %p38 = scmp.ne.s32.totalorder %s27, %s28
    %p39 = scmp.eq.s32.totalorder %s19, 0
    %p40 = por %p38, %p39
    %p41 = scmp.ne.s32.totalorder %s27, %s28
    %p42 = scmp.eq.s32.totalorder %s20, 1
    %p43 = por %p41, %p42
    %p45 = scmp.ne.s32.totalorder %s28, %s44
    %p46 = scmp.eq.s32.totalorder %s20, 0
    %p47 = por %p45, %p46
    %s49 = sadd.s32 %s48, 1
    %p52 = scmp.eq.s32.totalorder %s14, 1
    %p53 = scmp.ne.s32.totalorder %s48, %s50
    %p54 = scmp.eq.s32.totalorder %s14, 0
    %p55 = por %p53, %p54
    %p56 = scmp.ne.s32.totalorder %s48, %s50
    %p57 = scmp.eq.s32.totalorder %s19, 1
    %p58 = por %p56, %p57
    %p59 = scmp.ne.s32.totalorder %s50, %s51
    %p60 = scmp.eq.s32.totalorder %s19, 0
    %p61 = por %p59, %p60
    %p62 = scmp.ne.s32.totalorder %s50, %s51
    %p63 = scmp.eq.s32.totalorder %s20, 1
    %p64 = por %p62, %p63
    %p66 = scmp.ne.s32.totalorder %s51, %s65
    %p67 = scmp.eq.s32.totalorder %s20, 0
    %p68 = por %p66, %p67
    %s70 = sadd.s32 %s69, 1
    %p73 = scmp.eq.s32.totalorder %s14, 1
    %p74 = scmp.ne.s32.totalorder %s69, %s71
    %p75 = scmp.eq.s32.totalorder %s14, 0
    %p76 = por %p74, %p75
    %p77 = scmp.ne.s32.totalorder %s69, %s71
    %p78 = scmp.eq.s32.totalorder %s19, 1
    %p79 = por %p77, %p78
    %p80 = scmp.ne.s32.totalorder %s71, %s72
    %p81 = scmp.eq.s32.totalorder %s19, 0
    %p82 = por %p80, %p81
    %p83 = scmp.ne.s32.totalorder %s71, %s72
    %p84 = scmp.eq.s32.totalorder %s20, 1
    %p85 = por %p83, %p84
    %p87 = scmp.ne.s32.totalorder %s72, %s86
    %p88 = scmp.eq.s32.totalorder %s20, 0
    %p89 = por %p87, %p88
    %s91 = sadd.s32 %s90, 1
    %p94 = scmp.eq.s32.totalorder %s14, 1
    %p95 = scmp.ne.s32.totalorder %s90, %s92
    %p96 = scmp.eq.s32.totalorder %s14, 0
    %p97 = por %p95, %p96
    %p98 = scmp.ne.s32.totalorder %s90, %s92
    %p99 = scmp.eq.s32.totalorder %s19, 1
    %p100 = por %p98, %p99
    %p101 = scmp.ne.s32.totalorder %s92, %s93
    %p102 = scmp.eq.s32.totalorder %s19, 0
    %p103 = por %p101, %p102
    %p104 = scmp.ne.s32.totalorder %s92, %s93
    %p105 = scmp.eq.s32.totalorder %s20, 1
    %p106 = por %p104, %p105
    %p108 = scmp.ne.s32.totalorder %s93, %s107
    %p109 = scmp.eq.s32.totalorder %s20, 0
    %p110 = por %p108, %p109
    %s112 = sadd.s32 %s111, 1
    %p115 = scmp.eq.s32.totalorder %s14, 1
    %p116 = scmp.ne.s32.totalorder %s111, %s113
    %p117 = scmp.eq.s32.totalorder %s14, 0
    %p118 = por %p116, %p117
    %p119 = scmp.ne.s32.totalorder %s111, %s113
    %p120 = scmp.eq.s32.totalorder %s19, 1
    %p121 = por %p119, %p120
    %p122 = scmp.ne.s32.totalorder %s113, %s114
    %p123 = scmp.eq.s32.totalorder %s19, 0
    %p124 = por %p122, %p123
    %p125 = scmp.ne.s32.totalorder %s113, %s114
    %p126 = scmp.eq.s32.totalorder %s20, 1
    %p127 = por %p125, %p126
    %p129 = scmp.ne.s32.totalorder %s114, %s128
    %p130 = scmp.eq.s32.totalorder %s20, 0
    %p131 = por %p129, %p130
    %s132 = ssub.s32 %s14, %s21
    %p133 = scmp.eq.s32.totalorder %s132, 0
    %s135 = sadd.s32 %s134, 1
    %s136 = scalar_select %p133, %s134, %s135
    %p139 = pneg %p133
    %p140 = scmp.eq.s32.totalorder %s14, 1
    %p141 = por %p139, %p140
    %p142 = scmp.ne.s32.totalorder %s134, %s137
    %p143 = scmp.eq.s32.totalorder %s14, 0
    %p144 = por %p142, %p143
    %p145 = scmp.ne.s32.totalorder %s134, %s137
    %p146 = scmp.eq.s32.totalorder %s19, 1
    %p147 = por %p145, %p146
    %p148 = scmp.ne.s32.totalorder %s137, %s138
    %p149 = scmp.eq.s32.totalorder %s19, 0
    %p150 = por %p148, %p149
    %p151 = scmp.ne.s32.totalorder %s137, %s138
    %p152 = scmp.eq.s32.totalorder %s20, 1
    %p153 = por %p151, %p152
    %p155 = scmp.ne.s32.totalorder %s138, %s154
    %p156 = scmp.eq.s32.totalorder %s20, 0
    %p157 = por %p155, %p156
    %s158 = ssub.s32 %s14, %s21
    %p159 = scmp.eq.s32.totalorder %s158, 0
    %s161 = sadd.s32 %s160, 1
    %s162 = scalar_select %p159, %s160, %s161
    %p165 = pneg %p159
    %p166 = scmp.eq.s32.totalorder %s14, 1
    %p167 = por %p165, %p166
    %p168 = scmp.ne.s32.totalorder %s160, %s163
    %p169 = scmp.eq.s32.totalorder %s14, 0
    %p170 = por %p168, %p169
    %p171 = scmp.ne.s32.totalorder %s160, %s163
    %p172 = scmp.eq.s32.totalorder %s19, 1
    %p173 = por %p171, %p172
    %p174 = scmp.ne.s32.totalorder %s163, %s164
    %p175 = scmp.eq.s32.totalorder %s19, 0
    %p176 = por %p174, %p175
    %p177 = scmp.ne.s32.totalorder %s163, %s164
    %p178 = scmp.eq.s32.totalorder %s20, 1
    %p179 = por %p177, %p178
    %p181 = scmp.ne.s32.totalorder %s164, %s180
    %p182 = scmp.eq.s32.totalorder %s20, 0
    %p183 = por %p181, %p182
    %s184 = ssub.s32 %s14, %s21
    %p185 = scmp.eq.s32.totalorder %s184, 0
    %s187 = sadd.s32 %s186, 1
    %s188 = scalar_select %p185, %s186, %s187
    %p191 = pneg %p185
    %p192 = scmp.eq.s32.totalorder %s14, 1
    %p193 = por %p191, %p192
    %p194 = scmp.ne.s32.totalorder %s186, %s189
    %p195 = scmp.eq.s32.totalorder %s14, 0
    %p196 = por %p194, %p195
    %p197 = scmp.ne.s32.totalorder %s186, %s189
    %p198 = scmp.eq.s32.totalorder %s19, 1
    %p199 = por %p197, %p198
    %p200 = scmp.ne.s32.totalorder %s189, %s190
    %p201 = scmp.eq.s32.totalorder %s19, 0
    %p202 = por %p200, %p201
    %p203 = scmp.ne.s32.totalorder %s189, %s190
    %p204 = scmp.eq.s32.totalorder %s20, 1
    %p205 = por %p203, %p204
    %p207 = scmp.ne.s32.totalorder %s190, %s206
    %p208 = scmp.eq.s32.totalorder %s20, 0
    %p209 = por %p207, %p208
    %p210 = scmp.le.s32.totalorder 1, %s14
    %p211 = scmp.lt.s32.totalorder %s14, 3
    %p212 = pnand %p210, %p211
    %p213 = pneg %p212
    // Predicated region
    $region9: #{tca_forward.5} parent=5 // pred_check
      _
    $region10: #{tca_forward.5} parent=5 // pred_check_branch
      %215 = sbr.rel (%p212) target = $region12
    $region11: #{tca_forward.5} parent=5 // pred_region
      %s216 = ssub.s32 %s14, 1
      // Predicated region
      $region13: #{tca_forward.5} parent=11 // pred_check
        %p217 = pneg %p61
      $region14: #{tca_forward.5} parent=11 // pred_check_branch
        %219 = sbr.rel (%p217) target = $region16
      $region15: #{tca_forward.5} parent=11 // pred_region
        _
      $region16: #{tca_forward.5} parent=11 // pred_fallthru
        _
      // Predicated region
      $region17: #{tca_forward.5} parent=11 // pred_check
        %p220 = pneg %p82
      $region18: #{tca_forward.5} parent=11 // pred_check_branch
        %222 = sbr.rel (%p220) target = $region20
      $region19: #{tca_forward.5} parent=11 // pred_region
        _
      $region20: #{tca_forward.5} parent=11 // pred_fallthru
        _
      // Predicated region
      $region21: #{tca_forward.5} parent=11 // pred_check
        %p223 = pneg %p103
      $region22: #{tca_forward.5} parent=11 // pred_check_branch
        %225 = sbr.rel (%p223) target = $region24
      $region23: #{tca_forward.5} parent=11 // pred_region
        _
      $region24: #{tca_forward.5} parent=11 // pred_fallthru
        _
      // Predicated region
      $region25: #{tca_forward.5} parent=11 // pred_check
        %p226 = pneg %p124
      $region26: #{tca_forward.5} parent=11 // pred_check_branch
        %228 = sbr.rel (%p226) target = $region28
      $region27: #{tca_forward.5} parent=11 // pred_region
        _
      $region28: #{tca_forward.5} parent=11 // pred_fallthru
        _
    $region12: #{tca_forward.5} parent=5 // pred_fallthru
      _
    %p229 = scmp.lt.s32.totalorder %s14, 2
    // Predicated region
    $region29: #{tca_forward.5} parent=5 // pred_check
      %p230 = pneg %p229
    $region30: #{tca_forward.5} parent=5 // pred_check_branch
      %232 = sbr.rel (%p230) target = $region32
    $region31: #{tca_forward.5} parent=5 // pred_region
      // Predicated region
      $region33: #{tca_forward.5} parent=31 // pred_check
        %p233 = pneg %p34
      $region34: #{tca_forward.5} parent=31 // pred_check_branch
        %235 = sbr.rel (%p233) target = $region36
      $region35: #{tca_forward.5} parent=31 // pred_region
        %p236 = scmp.lt.s32.totalorder %s14, 1
        %s237 = scalar_select %p236, %s14, 1
        %s238 = smul.addr %s237, 2
        %s239 = smul.addr %s238, 8
        %s240 = scalar_lea.vmem %s0, %s239
      $region36: #{tca_forward.5} parent=31 // pred_fallthru
        _
    $region32: #{tca_forward.5} parent=5 // pred_fallthru
      _
    %p241 = scmp.le.s32.totalorder 1, %s14
    %p242 = scmp.lt.s32.totalorder %s14, 3
    %p243 = pnand %p241, %p242
    %p244 = pneg %p243
    // Predicated region
    $region37: #{tca_forward.5} parent=5 // pred_check
      _
    $region38: #{tca_forward.5} parent=5 // pred_check_branch
      %246 = sbr.rel (%p243) target = $region40
    $region39: #{tca_forward.5} parent=5 // pred_region
      %s247 = ssub.s32 %s14, 1
      %p248 = scmp.lt.s32.totalorder %s19, 1
      %s249 = scalar_select %p248, %s19, 1
      %s250 = smul.addr %s249, 2
      %s251 = smul.addr %s250, 8
      %s252 = scalar_lea.vmem %s0, %s251
      %p253 = pneg %p40
      %p254 = pneg %p37
      %p255 = pneg %p61
      %p256 = pneg %p58
      %p257 = pneg %p82
      %p258 = pneg %p79
      %p259 = pneg %p103
      %p260 = pneg %p100
      %p261 = pneg %p124
      %p262 = pneg %p121
      %p263 = pneg %p150
      %p264 = pneg %p147
      %p265 = scmp.lt.s32.totalorder %s19, 1
      %s266 = scalar_select %p265, %s19, 1
      %s267 = smul.addr %s266, 2
      %s268 = smul.addr %s267, 8
      %s269 = scalar_lea.vmem %s5, %s268
      %p270 = pneg %p176
      %p271 = pneg %p173
      %p272 = scmp.lt.s32.totalorder %s19, 1
      %s273 = scalar_select %p272, %s19, 1
      %s274 = smul.addr %s273, 2
      %s275 = smul.addr %s274, 8
      %s276 = scalar_lea.vmem %s6, %s275
      %p277 = pneg %p202
      %p278 = pneg %p199
      %p279 = scmp.lt.s32.totalorder %s19, 1
      %s280 = scalar_select %p279, %s19, 1
      %s281 = smul.addr %s280, 4
      %s282 = scalar_lea.vmem %s7, %s281
      %p283 = scmp.lt.s32.totalorder %s19, 1
      %s284 = scalar_select %p283, %s19, 1
      %s285 = smul.addr %s284, 2
      %s286 = smul.addr %s285, 8
      %s287 = scalar_lea.vmem %s0, %s286
      %p288 = scmp.lt.s32.totalorder %s19, 1
      %s289 = scalar_select %p288, %s19, 1
      %s290 = smul.addr %s289, 2
      %s291 = smul.addr %s290, 8
      %s292 = scalar_lea.vmem %s5, %s291
      %p293 = scmp.lt.s32.totalorder %s19, 1
      %s294 = scalar_select %p293, %s19, 1
      %s295 = smul.addr %s294, 2
      %s296 = smul.addr %s295, 8
      %s297 = scalar_lea.vmem %s6, %s296
      %p298 = scmp.lt.s32.totalorder %s19, 1
      %s299 = scalar_select %p298, %s19, 1
      %s300 = smul.addr %s299, 4
      %s301 = scalar_lea.vmem %s7, %s300
      %v302 = vld [vmem:[%s1] sm:$0x1]
      %v303 = vld [vmem:[%s287] sm:$0xff]
      %v304 = vld [vmem:[%s287 + $0x8] sm:$0xff]
      %v306 = vlaneseq
      %v307 = vshrl.u32 %v306, 7
      %v308 = vsub.s32 0, %v307
      %v309 = vrot.slane %v302, %v308
      %v311 = vmul.f32 %v309, %v303
      %v312 = vmul.f32 %v309, %v304
      %v313 = vld [vmem:[%s2] sm:$0x1]
      %v315 = vlaneseq
      %v316 = vshrl.u32 %v315, 7
      %v317 = vsub.s32 0, %v316
      %v318 = vrot.slane %v313, %v317
      %v320 = vadd.f32 %v311, %v318
      %v321 = vadd.f32 %v312, %v318
      %vm322 = vcmp.gt.f32.partialorder %v320, 0.0
      %vm323 = vcmp.gt.f32.partialorder %v321, 0.0
      %v324 = vmul.f32 %v320, 1.442695
      %v325 = vpow.pop %v324
      %v326 = vmul.f32 %v321, 1.442695
      %v327 = vpow.pop %v326
      %v328 = vsub.f32 %v325, 1.0
      %v329 = vsub.f32 %v327, 1.0
      %v330 = vmul.f32 %v328, 1.6732632
      %v331 = vmul.f32 %v329, 1.6732632
      %v332 = vsel %vm322, %v320, %v330
      %v333 = vsel %vm323, %v321, %v331
      %v334 = vmul.f32 %v332, 1.050701
      %v335 = vmul.f32 %v333, 1.050701
      %v336 = vlaneseq
      %v337 = vand.u32 %v336, 127
      %vm338 = vcmp.ge.s32.totalorder %v337, 8
      %339 = vrot.lane.b32.xlu0 %v334, 8
      %v340 = vpop.permute.xlu0 %339
      %341 = vrot.lane.b32.xlu0 %v335, 8
      %v342 = vpop.permute.xlu0 %341
      %v343 = vsel %vm338, %v340, 0.0
      %v344 = vsel %vm338, %v342, 0.0
      %vm345 = vcmp.lt.s32.totalorder %v337, 120
      %346 = vrot.lane.b32.xlu0 %v334, 120
      %v347 = vpop.permute.xlu0 %346
      %348 = vrot.lane.b32.xlu0 %v335, 120
      %v349 = vpop.permute.xlu0 %348
      %v350 = vsel %vm345, %v347, 0.0
      %v351 = vsel %vm345, %v349, 0.0
      %352 = vst [vmem:[#allocation2] sm:$0x1] 0.0
      %353 = vst [vmem:[#allocation2 + $0x11] sm:$0x1] 0.0
      %354 = vst [vmem:[#allocation2 + $0x1] sm:$0xff] %v343
      %355 = vst [vmem:[#allocation2 + $0x9] sm:$0xff] %v344
      %s356 = scalar_lea.vmem [#allocation2], 24
      %357 = vst [vmem:[%s356] sm:$0x1] 0.0
      %358 = vst [vmem:[%s356 + $0x11] sm:$0x1] 0.0
      %359 = vst [vmem:[%s356 + $0x1] sm:$0xff] %v334
      %360 = vst [vmem:[%s356 + $0x9] sm:$0xff] %v335
      %s361 = scalar_lea.vmem [#allocation2], 48
      %362 = vst [vmem:[%s361] sm:$0x1] 0.0
      %363 = vst [vmem:[%s361 + $0x11] sm:$0x1] 0.0
      %364 = vst [vmem:[%s361 + $0x1] sm:$0xff] %v350
      %365 = vst [vmem:[%s361 + $0x9] sm:$0xff] %v351
      %v366 = vld [vmem:[%s3] sm:$0xff]
      %v367 = vld [vmem:[%s3 + $0x8] sm:$0x1]
      %v368 = vld [vmem:[%s4] sm:$0xff]
      %v369 = vld [vmem:[%s4 + $0x8] sm:$0x1]
      %v370 = vld [vmem:[#allocation2] sm:$0xff]
      %v371 = vld [vmem:[#allocation2 + $0x8] sm:$0xff]
      %v372 = vlaneseq
      %v373 = vshrl.u32 %v372, 7
      %v374 = vsub.s32 0, %v373
      %v375 = vrot.slane %v366, %v374
      %v376 = vmul.f32 %v370, %v375
      %v377 = vmul.f32 %v371, %v375
      %v378 = vadd.f32 %v376, 0.0
      %v379 = vadd.f32 %v377, 0.0
      %v380 = vlaneseq
      %v381 = vshrl.u32 %v380, 7
      %v382 = vsub.s32 0, %v381
      %v383 = vrot.slane %v368, %v382
      %v384 = vmul.f32 %v370, %v383
      %v385 = vmul.f32 %v371, %v383
      %v386 = vadd.f32 %v384, 0.0
      %v387 = vadd.f32 %v385, 0.0
      %v388 = vld [vmem:[%s356] sm:$0xff]
      %v389 = vld [vmem:[%s356 + $0x8] sm:$0xff]
      %v390 = vlaneseq
      %v391 = vshrl.u32 %v390, 7
      %v392 = vsub.s32 1, %v391
      %v393 = vrot.slane %v366, %v392
      %v394 = vmul.f32 %v388, %v393
      %v395 = vmul.f32 %v389, %v393
      %v396 = vadd.f32 %v378, %v394
      %v397 = vadd.f32 %v379, %v395
      %v398 = vlaneseq
      %v399 = vshrl.u32 %v398, 7
      %v400 = vsub.s32 1, %v399
      %v401 = vrot.slane %v368, %v400
      %v402 = vmul.f32 %v388, %v401
      %v403 = vmul.f32 %v389, %v401
      %v404 = vadd.f32 %v386, %v402
      %v405 = vadd.f32 %v387, %v403
      %v406 = vld [vmem:[%s361] sm:$0xff]
      %v407 = vld [vmem:[%s361 + $0x8] sm:$0xff]
      %v408 = vlaneseq
      %v409 = vshrl.u32 %v408, 7
      %v410 = vsub.s32 2, %v409
      %v411 = vrot.slane %v366, %v410
      %v412 = vmul.f32 %v406, %v411
      %v413 = vmul.f32 %v407, %v411
      %v414 = vadd.f32 %v396, %v412
      %v415 = vadd.f32 %v397, %v413
      %v416 = vlaneseq
      %v417 = vshrl.u32 %v416, 7
      %v418 = vsub.s32 2, %v417
      %v419 = vrot.slane %v368, %v418
      %v420 = vmul.f32 %v406, %v419
      %v421 = vmul.f32 %v407, %v419
      %v422 = vadd.f32 %v404, %v420
      %v423 = vadd.f32 %v405, %v421
      %v424 = vld [vmem:[#allocation2 + $0x1] sm:$0xff]
      %v425 = vld [vmem:[#allocation2 + $0x9] sm:$0xff]
      %v426 = vlaneseq
      %v427 = vshrl.u32 %v426, 7
      %v428 = vsub.s32 3, %v427
      %v429 = vrot.slane %v366, %v428
      %v430 = vmul.f32 %v424, %v429
      %v431 = vmul.f32 %v425, %v429
      %v432 = vadd.f32 %v414, %v430
      %v433 = vadd.f32 %v415, %v431
      %v434 = vlaneseq
      %v435 = vshrl.u32 %v434, 7
      %v436 = vsub.s32 3, %v435
      %v437 = vrot.slane %v368, %v436
      %v438 = vmul.f32 %v424, %v437
      %v439 = vmul.f32 %v425, %v437
      %v440 = vadd.f32 %v422, %v438
      %v441 = vadd.f32 %v423, %v439
      %v442 = vld [vmem:[%s356 + $0x1] sm:$0xff]
      %v443 = vld [vmem:[%s356 + $0x9] sm:$0xff]
      %v444 = vlaneseq
      %v445 = vshrl.u32 %v444, 7
      %v446 = vsub.s32 4, %v445
      %v447 = vrot.slane %v366, %v446
      %v448 = vmul.f32 %v442, %v447
      %v449 = vmul.f32 %v443, %v447
      %v450 = vadd.f32 %v432, %v448
      %v451 = vadd.f32 %v433, %v449
      %v452 = vlaneseq
      %v453 = vshrl.u32 %v452, 7
      %v454 = vsub.s32 4, %v453
      %v455 = vrot.slane %v368, %v454
      %v456 = vmul.f32 %v442, %v455
      %v457 = vmul.f32 %v443, %v455
      %v458 = vadd.f32 %v440, %v456
      %v459 = vadd.f32 %v441, %v457
      %v460 = vld [vmem:[%s361 + $0x1] sm:$0xff]
      %v461 = vld [vmem:[%s361 + $0x9] sm:$0xff]
      %v462 = vlaneseq
      %v463 = vshrl.u32 %v462, 7
      %v464 = vsub.s32 5, %v463
      %v465 = vrot.slane %v366, %v464
      %v466 = vmul.f32 %v460, %v465
      %v467 = vmul.f32 %v461, %v465
      %v468 = vadd.f32 %v450, %v466
      %v469 = vadd.f32 %v451, %v467
      %v470 = vlaneseq
      %v471 = vshrl.u32 %v470, 7
      %v472 = vsub.s32 5, %v471
      %v473 = vrot.slane %v368, %v472
      %v474 = vmul.f32 %v460, %v473
      %v475 = vmul.f32 %v461, %v473
      %v476 = vadd.f32 %v458, %v474
      %v477 = vadd.f32 %v459, %v475
      %v478 = vld [vmem:[#allocation2 + $0x2] sm:$0xff]
      %v479 = vld [vmem:[#allocation2 + $0xa] sm:$0xff]
      %v480 = vlaneseq
      %v481 = vshrl.u32 %v480, 7
      %v482 = vsub.s32 6, %v481
      %v483 = vrot.slane %v366, %v482
      %v484 = vmul.f32 %v478, %v483
      %v485 = vmul.f32 %v479, %v483
      %v486 = vadd.f32 %v468, %v484
      %v487 = vadd.f32 %v469, %v485
      %v488 = vlaneseq
      %v489 = vshrl.u32 %v488, 7
      %v490 = vsub.s32 6, %v489
      %v491 = vrot.slane %v368, %v490
      %v492 = vmul.f32 %v478, %v491
      %v493 = vmul.f32 %v479, %v491
      %v494 = vadd.f32 %v476, %v492
      %v495 = vadd.f32 %v477, %v493
      %v496 = vld [vmem:[%s356 + $0x2] sm:$0xff]
      %v497 = vld [vmem:[%s356 + $0xa] sm:$0xff]
      %v498 = vlaneseq
      %v499 = vshrl.u32 %v498, 7
      %v500 = vsub.s32 7, %v499
      %v501 = vrot.slane %v366, %v500
      %v502 = vmul.f32 %v496, %v501
      %v503 = vmul.f32 %v497, %v501
      %v504 = vadd.f32 %v486, %v502
      %v505 = vadd.f32 %v487, %v503
      %v506 = vlaneseq
      %v507 = vshrl.u32 %v506, 7
      %v508 = vsub.s32 7, %v507
      %v509 = vrot.slane %v368, %v508
      %v510 = vmul.f32 %v496, %v509
      %v511 = vmul.f32 %v497, %v509
      %v512 = vadd.f32 %v494, %v510
      %v513 = vadd.f32 %v495, %v511
      %v514 = vld [vmem:[%s361 + $0x2] sm:$0xff]
      %v515 = vld [vmem:[%s361 + $0xa] sm:$0xff]
      %v516 = vlaneseq
      %v517 = vshrl.u32 %v516, 7
      %v518 = vsub.s32 0, %v517
      %v519 = vrot.slane %v367, %v518
      %v520 = vmul.f32 %v514, %v519
      %v521 = vmul.f32 %v515, %v519
      %v522 = vadd.f32 %v504, %v520
      %v523 = vadd.f32 %v505, %v521
      %v524 = vlaneseq
      %v525 = vshrl.u32 %v524, 7
      %v526 = vsub.s32 0, %v525
      %v527 = vrot.slane %v369, %v526
      %v528 = vmul.f32 %v514, %v527
      %v529 = vmul.f32 %v515, %v527
      %v530 = vadd.f32 %v512, %v528
      %v531 = vadd.f32 %v513, %v529
      %532 = vst [vmem:[%s292] sm:$0xff] %v522
      %533 = vst [vmem:[%s292 + $0x8] sm:$0xff] %v523
      %534 = vst [vmem:[%s297] sm:$0xff] %v530
      %535 = vst [vmem:[%s297 + $0x8] sm:$0xff] %v531
      %v536 = vadd.f32 %v522, %v523
      %v537 = vrot.slane %v536, 4
      %v538 = vadd.f32 %v536, %v537
      %v539 = vrot.slane %v538, 2
      %v540 = vadd.f32 %v538, %v539
      %v541 = vrot.slane %v540, 1
      %v542 = vadd.f32 %v540, %v541
      %543 = vst [vmem:[%s301] sm:$0x1] %v542
      %v544 = vmul.f32 %v522, %v522
      %v545 = vmul.f32 %v523, %v523
      %v546 = vadd.f32 %v544, %v545
      %v547 = vrot.slane %v546, 4
      %v548 = vadd.f32 %v546, %v547
      %v549 = vrot.slane %v548, 2
      %v550 = vadd.f32 %v548, %v549
      %v551 = vrot.slane %v550, 1
      %v552 = vadd.f32 %v550, %v551
      %553 = vst [vmem:[%s301 + $0x1] sm:$0x1] %v552
      %v554 = vadd.f32 %v530, %v531
      %v555 = vrot.slane %v554, 4
      %v556 = vadd.f32 %v554, %v555
      %v557 = vrot.slane %v556, 2
      %v558 = vadd.f32 %v556, %v557
      %v559 = vrot.slane %v558, 1
      %v560 = vadd.f32 %v558, %v559
      %561 = vst [vmem:[%s301 + $0x2] sm:$0x1] %v560
      %v562 = vmul.f32 %v530, %v530
      %v563 = vmul.f32 %v531, %v531
      %v564 = vadd.f32 %v562, %v563
      %v565 = vrot.slane %v564, 4
      %v566 = vadd.f32 %v564, %v565
      %v567 = vrot.slane %v566, 2
      %v568 = vadd.f32 %v566, %v567
      %v569 = vrot.slane %v568, 1
      %v570 = vadd.f32 %v568, %v569
      %571 = vst [vmem:[%s301 + $0x3] sm:$0x1] %v570
      %p572 = scmp.lt.s32.totalorder %s19, 1
      %s573 = scalar_select %p572, %s19, 1
      %s574 = smul.addr %s573, 2
      %s575 = smul.addr %s574, 8
      %s576 = scalar_lea.vmem %s5, %s575
      %p577 = scmp.lt.s32.totalorder %s19, 1
      %s578 = scalar_select %p577, %s19, 1
      %s579 = smul.addr %s578, 2
      %s580 = smul.addr %s579, 8
      %s581 = scalar_lea.vmem %s6, %s580
      %p582 = scmp.lt.s32.totalorder %s19, 1
      %s583 = scalar_select %p582, %s19, 1
      %s584 = smul.addr %s583, 4
      %s585 = scalar_lea.vmem %s7, %s584
      // Predicated region
      $region41: #{tca_forward.5} parent=39 // pred_check
        %p586 = pneg %p147
      $region42: #{tca_forward.5} parent=39 // pred_check_branch
        %588 = sbr.rel (%p586) target = $region44
      $region43: #{tca_forward.5} parent=39 // pred_region
        _
      $region44: #{tca_forward.5} parent=39 // pred_fallthru
        _
      // Predicated region
      $region45: #{tca_forward.5} parent=39 // pred_check
        %p589 = pneg %p173
      $region46: #{tca_forward.5} parent=39 // pred_check_branch
        %591 = sbr.rel (%p589) target = $region48
      $region47: #{tca_forward.5} parent=39 // pred_region
        _
      $region48: #{tca_forward.5} parent=39 // pred_fallthru
        _
      // Predicated region
      $region49: #{tca_forward.5} parent=39 // pred_check
        %p592 = pneg %p199
      $region50: #{tca_forward.5} parent=39 // pred_check_branch
        %594 = sbr.rel (%p592) target = $region52
      $region51: #{tca_forward.5} parent=39 // pred_region
        _
      $region52: #{tca_forward.5} parent=39 // pred_fallthru
        _
    $region40: #{tca_forward.5} parent=5 // pred_fallthru
      _
    %p595 = scmp.le.s32.totalorder 2, %s14
    // Predicated region
    $region53: #{tca_forward.5} parent=5 // pred_check
      %p596 = pneg %p595
    $region54: #{tca_forward.5} parent=5 // pred_check_branch
      %598 = sbr.rel (%p596) target = $region56
    $region55: #{tca_forward.5} parent=5 // pred_region
      %s599 = ssub.s32 %s14, 2
      // Predicated region
      $region57: #{tca_forward.5} parent=55 // pred_check
        %p600 = pneg %p153
      $region58: #{tca_forward.5} parent=55 // pred_check_branch
        %602 = sbr.rel (%p600) target = $region60
      $region59: #{tca_forward.5} parent=55 // pred_region
        %p603 = scmp.lt.s32.totalorder %s20, 1
        %s604 = scalar_select %p603, %s20, 1
        %s605 = smul.addr %s604, 2
        %s606 = smul.addr %s605, 8
        %s607 = scalar_lea.vmem %s5, %s606
      $region60: #{tca_forward.5} parent=55 // pred_fallthru
        _
      // Predicated region
      $region61: #{tca_forward.5} parent=55 // pred_check
        %p608 = pneg %p179
      $region62: #{tca_forward.5} parent=55 // pred_check_branch
        %610 = sbr.rel (%p608) target = $region64
      $region63: #{tca_forward.5} parent=55 // pred_region
        %p611 = scmp.lt.s32.totalorder %s20, 1
        %s612 = scalar_select %p611, %s20, 1
        %s613 = smul.addr %s612, 2
        %s614 = smul.addr %s613, 8
        %s615 = scalar_lea.vmem %s6, %s614
      $region64: #{tca_forward.5} parent=55 // pred_fallthru
        _
      // Predicated region
      $region65: #{tca_forward.5} parent=55 // pred_check
        %p616 = pneg %p205
      $region66: #{tca_forward.5} parent=55 // pred_check_branch
        %618 = sbr.rel (%p616) target = $region68
      $region67: #{tca_forward.5} parent=55 // pred_region
        %p619 = scmp.lt.s32.totalorder %s20, 1
        %s620 = scalar_select %p619, %s20, 1
        %s621 = smul.addr %s620, 4
        %s622 = scalar_lea.vmem %s7, %s621
      $region68: #{tca_forward.5} parent=55 // pred_fallthru
        _
    $region56: #{tca_forward.5} parent=5 // pred_fallthru
      _
  $region6: #{tca_forward.5} parent=0 // loop_footer
    %s18 = sadd.s32 1, %s14
  $region7: #{tca_forward.5} parent=0 // loop_footer_branch
    %13 = sbr.rel target = $region3
  $region8: #{tca_forward.5} parent=0 // loop_exit
    _

// kernel: tca_forward.7
$region0: #{tca_forward.7}
  #allocation0 [shape = 'u32[]', space=smem, size = 0x4, offset = 0x4, fixed_abs, tag = 'smem constant byte address 0x4 - core index']
  #allocation1 [shape = 'u32[144,128]{1,0:T(1,128)}', space=vmem, size = 0x12000, scoped, tag = 'internal scratch']
  %s0 = inlined_call_operand.vmem [shape: f32[32,128], index: 0, kind: input, shape index: {}]
  %s1 = inlined_call_operand.vmem [shape: f32[1,128], index: 1, kind: input, shape index: {}]
  %s2 = inlined_call_operand.vmem [shape: f32[1,128], index: 2, kind: input, shape index: {}]
  %s3 = inlined_call_operand.vmem [shape: f32[32,128], index: 3, kind: output, shape index: {}]
  %s4 = sld [smem:[#allocation0]]
  $region45: #{tca_forward.7} parent=0
    _
  %s6 = ssub.s32 1, %s4
  %s7 = scalar_select 0, %s6, %s4
  loop: start=0, step=1, limit=4
  $region2: #{tca_forward.7} parent=0 // loop_pre_header
    _
  $region3: #{tca_forward.7} parent=0 // loop_header
    %s9 = sphi 0, %s13
    %p10 = scmp.ge.s32.totalorder %s9, 4
    %s19 = sphi 0, %s21
    %s22 = sphi 0, %s19
    %s23 = sphi 0, %s22
    %s39 = sphi 0, %s23
    %s43 = sphi 0, %s43
    %s45 = sphi 0, %s43
    %s46 = sphi 0, %s45
    %s60 = sphi 0, %s46
    %s64 = sphi 0, %s64
    %s66 = sphi 0, %s64
    %s67 = sphi 0, %s66
    %s81 = sphi 0, %s67
    %s87 = sphi 0, %s89
    %s90 = sphi 0, %s87
    %s91 = sphi 0, %s90
    %s107 = sphi 0, %s91
  $region4: #{tca_forward.7} parent=0 // loop_header_branch
    %12 = sbr.rel (%p10) target = $region8
  $region5: #{tca_forward.7} parent=0 // loop_body
    %s14 = ssub.s32 %s9, 1
    %s15 = ssub.s32 %s9, 2
    %s16 = sadd.s32 %s9, 1
    %s17 = ssub.s32 %s9, %s16
    %p18 = scmp.eq.s32.totalorder %s17, 0
    %s20 = sadd.s32 %s19, 1
    %s21 = scalar_select %p18, %s19, %s20
    %p24 = pneg %p18
    %p25 = scmp.eq.s32.totalorder %s9, 1
    %p26 = por %p24, %p25
    %p27 = scmp.ne.s32.totalorder %s19, %s22
    %p28 = scmp.eq.s32.totalorder %s9, 0
    %p29 = por %p27, %p28
    %p30 = scmp.ne.s32.totalorder %s19, %s22
    %p31 = scmp.eq.s32.totalorder %s14, 1
    %p32 = por %p30, %p31
    %p33 = scmp.ne.s32.totalorder %s22, %s23
    %p34 = scmp.eq.s32.totalorder %s14, 0
    %p35 = por %p33, %p34
    %p36 = scmp.ne.s32.totalorder %s22, %s23
    %p37 = scmp.eq.s32.totalorder %s15, 1
    %p38 = por %p36, %p37
    %p40 = scmp.ne.s32.totalorder %s23, %s39
    %p41 = scmp.eq.s32.totalorder %s15, 0
    %p42 = por %p40, %p41
    %s44 = sadd.s32 %s43, 1
    %p47 = scmp.eq.s32.totalorder %s9, 1
    %p48 = scmp.ne.s32.totalorder %s43, %s45
    %p49 = scmp.eq.s32.totalorder %s9, 0
    %p50 = por %p48, %p49
    %p51 = scmp.ne.s32.totalorder %s43, %s45
    %p52 = scmp.eq.s32.totalorder %s14, 1
    %p53 = por %p51, %p52
    %p54 = scmp.ne.s32.totalorder %s45, %s46
    %p55 = scmp.eq.s32.totalorder %s14, 0
    %p56 = por %p54, %p55
    %p57 = scmp.ne.s32.totalorder %s45, %s46
    %p58 = scmp.eq.s32.totalorder %s15, 1
    %p59 = por %p57, %p58
    %p61 = scmp.ne.s32.totalorder %s46, %s60
    %p62 = scmp.eq.s32.totalorder %s15, 0
    %p63 = por %p61, %p62
    %s65 = sadd.s32 %s64, 1
    %p68 = scmp.eq.s32.totalorder %s9, 1
    %p69 = scmp.ne.s32.totalorder %s64, %s66
    %p70 = scmp.eq.s32.totalorder %s9, 0
    %p71 = por %p69, %p70
    %p72 = scmp.ne.s32.totalorder %s64, %s66
    %p73 = scmp.eq.s32.totalorder %s14, 1
    %p74 = por %p72, %p73
    %p75 = scmp.ne.s32.totalorder %s66, %s67
    %p76 = scmp.eq.s32.totalorder %s14, 0
    %p77 = por %p75, %p76
    %p78 = scmp.ne.s32.totalorder %s66, %s67
    %p79 = scmp.eq.s32.totalorder %s15, 1
    %p80 = por %p78, %p79
    %p82 = scmp.ne.s32.totalorder %s67, %s81
    %p83 = scmp.eq.s32.totalorder %s15, 0
    %p84 = por %p82, %p83
    %s85 = ssub.s32 %s9, %s16
    %p86 = scmp.eq.s32.totalorder %s85, 0
    %s88 = sadd.s32 %s87, 1
    %s89 = scalar_select %p86, %s87, %s88
    %p92 = pneg %p86
    %p93 = scmp.eq.s32.totalorder %s9, 1
    %p94 = por %p92, %p93
    %p95 = scmp.ne.s32.totalorder %s87, %s90
    %p96 = scmp.eq.s32.totalorder %s9, 0
    %p97 = por %p95, %p96
    %p98 = scmp.ne.s32.totalorder %s87, %s90
    %p99 = scmp.eq.s32.totalorder %s14, 1
    %p100 = por %p98, %p99
    %p101 = scmp.ne.s32.totalorder %s90, %s91
    %p102 = scmp.eq.s32.totalorder %s14, 0
    %p103 = por %p101, %p102
    %p104 = scmp.ne.s32.totalorder %s90, %s91
    %p105 = scmp.eq.s32.totalorder %s15, 1
    %p106 = por %p104, %p105
    %p108 = scmp.ne.s32.totalorder %s91, %s107
    %p109 = scmp.eq.s32.totalorder %s15, 0
    %p110 = por %p108, %p109
    %p111 = scmp.le.s32.totalorder 1, %s9
    %p112 = scmp.lt.s32.totalorder %s9, 3
    %p113 = pnand %p111, %p112
    %p114 = pneg %p113
    // Predicated region
    $region9: #{tca_forward.7} parent=5 // pred_check
      _
    $region10: #{tca_forward.7} parent=5 // pred_check_branch
      %116 = sbr.rel (%p113) target = $region12
    $region11: #{tca_forward.7} parent=5 // pred_region
      %s117 = ssub.s32 %s9, 1
      // Predicated region
      $region13: #{tca_forward.7} parent=11 // pred_check
        %p118 = pneg %p56
      $region14: #{tca_forward.7} parent=11 // pred_check_branch
        %120 = sbr.rel (%p118) target = $region16
      $region15: #{tca_forward.7} parent=11 // pred_region
        _
      $region16: #{tca_forward.7} parent=11 // pred_fallthru
        _
      // Predicated region
      $region17: #{tca_forward.7} parent=11 // pred_check
        %p121 = pneg %p77
      $region18: #{tca_forward.7} parent=11 // pred_check_branch
        %123 = sbr.rel (%p121) target = $region20
      $region19: #{tca_forward.7} parent=11 // pred_region
        _
      $region20: #{tca_forward.7} parent=11 // pred_fallthru
        _
    $region12: #{tca_forward.7} parent=5 // pred_fallthru
      _
    %p124 = scmp.lt.s32.totalorder %s9, 2
    // Predicated region
    $region21: #{tca_forward.7} parent=5 // pred_check
      %p125 = pneg %p124
    $region22: #{tca_forward.7} parent=5 // pred_check_branch
      %127 = sbr.rel (%p125) target = $region24
    $region23: #{tca_forward.7} parent=5 // pred_region
      // Predicated region
      $region25: #{tca_forward.7} parent=23 // pred_check
        %p128 = pneg %p29
      $region26: #{tca_forward.7} parent=23 // pred_check_branch
        %130 = sbr.rel (%p128) target = $region28
      $region27: #{tca_forward.7} parent=23 // pred_region
        %s131 = smul.u32 2, %s9
        %p132 = scmp.lt.s32.totalorder %s131, 3
        %s133 = scalar_select %p132, %s131, 3
        %s134 = smul.addr %s133, 8
        %s135 = scalar_lea.vmem %s0, %s134
        %s136 = smul.u32 2, %s9
      $region28: #{tca_forward.7} parent=23 // pred_fallthru
        _
    $region24: #{tca_forward.7} parent=5 // pred_fallthru
      _
    %p137 = scmp.le.s32.totalorder 1, %s9
    %p138 = scmp.lt.s32.totalorder %s9, 3
    %p139 = pnand %p137, %p138
    %p140 = pneg %p139
    // Predicated region
    $region29: #{tca_forward.7} parent=5 // pred_check
      _
    $region30: #{tca_forward.7} parent=5 // pred_check_branch
      %142 = sbr.rel (%p139) target = $region32
    $region31: #{tca_forward.7} parent=5 // pred_region
      %s143 = ssub.s32 %s9, 1
      %s144 = smul.u32 2, %s14
      %p145 = scmp.lt.s32.totalorder %s144, 3
      %s146 = scalar_select %p145, %s144, 3
      %s147 = smul.addr %s146, 8
      %s148 = scalar_lea.vmem %s0, %s147
      %p149 = pneg %p35
      %p150 = pneg %p32
      %p151 = pneg %p56
      %p152 = pneg %p53
      %p153 = pneg %p77
      %p154 = pneg %p74
      %p155 = pneg %p103
      %p156 = pneg %p100
      %s157 = smul.u32 2, %s14
      %p158 = scmp.lt.s32.totalorder %s157, 3
      %s159 = scalar_select %p158, %s157, 3
      %s160 = smul.addr %s159, 8
      %s161 = scalar_lea.vmem %s3, %s160
      %s162 = smul.u32 2, %s14
      %p163 = scmp.lt.s32.totalorder %s162, 3
      %s164 = scalar_select %p163, %s162, 3
      %s165 = smul.addr %s164, 8
      %s166 = scalar_lea.vmem %s0, %s165
      %s167 = smul.u32 2, %s14
      %s168 = smul.u32 2, %s14
      %p169 = scmp.lt.s32.totalorder %s168, 3
      %s170 = scalar_select %p169, %s168, 3
      %s171 = smul.addr %s170, 8
      %s172 = scalar_lea.vmem %s3, %s171
      %s173 = smul.u32 2, %s14
      %v174 = vld [vmem:[%s1] sm:$0x1]
      %v175 = vld [vmem:[%s166] sm:$0xff]
      %v176 = vld [vmem:[%s166 + $0x8] sm:$0xff]
      %v178 = vlaneseq
      %v179 = vshrl.u32 %v178, 7
      %v180 = vsub.s32 0, %v179
      %v181 = vrot.slane %v174, %v180
      %v183 = vmul.f32 %v181, %v175
      %v184 = vmul.f32 %v181, %v176
      %v185 = vld [vmem:[%s2] sm:$0x1]
      %v187 = vlaneseq
      %v188 = vshrl.u32 %v187, 7
      %v189 = vsub.s32 0, %v188
      %v190 = vrot.slane %v185, %v189
      %v192 = vadd.f32 %v183, %v190
      %v193 = vadd.f32 %v184, %v190
      %vm194 = vcmp.gt.f32.partialorder %v192, 0.0
      %vm195 = vcmp.gt.f32.partialorder %v193, 0.0
      %v196 = vmul.f32 %v192, 1.442695
      %v197 = vpow.pop %v196
      %v198 = vmul.f32 %v193, 1.442695
      %v199 = vpow.pop %v198
      %v200 = vsub.f32 %v197, 1.0
      %v201 = vsub.f32 %v199, 1.0
      %v202 = vmul.f32 %v200, 1.6732632
      %v203 = vmul.f32 %v201, 1.6732632
      %v204 = vsel %vm194, %v192, %v202
      %v205 = vsel %vm195, %v193, %v203
      %v206 = vmul.f32 %v204, 1.050701
      %v207 = vmul.f32 %v205, 1.050701
      %208 = vst [vmem:[%s172] sm:$0xff] %v206
      %209 = vst [vmem:[%s172 + $0x8] sm:$0xff] %v207
      %s210 = smul.u32 2, %s14
      %p211 = scmp.lt.s32.totalorder %s210, 3
      %s212 = scalar_select %p211, %s210, 3
      %s213 = smul.addr %s212, 8
      %s214 = scalar_lea.vmem %s3, %s213
      // Predicated region
      $region33: #{tca_forward.7} parent=31 // pred_check
        %p215 = pneg %p100
      $region34: #{tca_forward.7} parent=31 // pred_check_branch
        %217 = sbr.rel (%p215) target = $region36
      $region35: #{tca_forward.7} parent=31 // pred_region
        %s218 = smul.u32 2, %s14
      $region36: #{tca_forward.7} parent=31 // pred_fallthru
        _
    $region32: #{tca_forward.7} parent=5 // pred_fallthru
      _
    %p219 = scmp.le.s32.totalorder 2, %s9
    // Predicated region
    $region37: #{tca_forward.7} parent=5 // pred_check
      %p220 = pneg %p219
    $region38: #{tca_forward.7} parent=5 // pred_check_branch
      %222 = sbr.rel (%p220) target = $region40
    $region39: #{tca_forward.7} parent=5 // pred_region
      %s223 = ssub.s32 %s9, 2
      // Predicated region
      $region41: #{tca_forward.7} parent=39 // pred_check
        %p224 = pneg %p106
      $region42: #{tca_forward.7} parent=39 // pred_check_branch
        %226 = sbr.rel (%p224) target = $region44
      $region43: #{tca_forward.7} parent=39 // pred_region
        %s227 = smul.u32 2, %s15
        %p228 = scmp.lt.s32.totalorder %s227, 3
        %s229 = scalar_select %p228, %s227, 3
        %s230 = smul.addr %s229, 8
        %s231 = scalar_lea.vmem %s3, %s230
      $region44: #{tca_forward.7} parent=39 // pred_fallthru
        _
    $region40: #{tca_forward.7} parent=5 // pred_fallthru
      _
  $region6: #{tca_forward.7} parent=0 // loop_footer
    %s13 = sadd.s32 1, %s9
  $region7: #{tca_forward.7} parent=0 // loop_footer_branch
    %8 = sbr.rel target = $region3
  $region8: #{tca_forward.7} parent=0 // loop_exit
    _

// kernel: tca_forward.6
$region0: #{tca_forward.6}
  #allocation0 [shape = 'u32[]', space=smem, size = 0x4, offset = 0x4, fixed_abs, tag = 'smem constant byte address 0x4 - core index']
  #allocation1 [shape = 'u32[144,128]{1,0:T(1,128)}', space=vmem, size = 0x12000, scoped, tag = 'internal scratch']
  %s0 = inlined_call_operand.vmem [shape: f32[32,128], index: 0, kind: input, shape index: {}]
  %s1 = inlined_call_operand.vmem [shape: f32[32,128], index: 1, kind: input, shape index: {}]
  %s2 = inlined_call_operand.vmem [shape: f32[32,128], index: 2, kind: input, shape index: {}]
  %s3 = inlined_call_operand.vmem [shape: f32[1,128], index: 3, kind: input, shape index: {}]
  %s4 = inlined_call_operand.vmem [shape: f32[1,128], index: 4, kind: input, shape index: {}]
  %s5 = inlined_call_operand.vmem [shape: f32[1,128], index: 5, kind: input, shape index: {}]
  %s6 = inlined_call_operand.vmem [shape: f32[1,128], index: 6, kind: input, shape index: {}]
  %s7 = inlined_call_operand.vmem [shape: f32[1,128], index: 7, kind: input, shape index: {}]
  %s8 = inlined_call_operand.vmem [shape: f32[1,128], index: 8, kind: input, shape index: {}]
  %s9 = inlined_call_operand.vmem [shape: f32[32,128], index: 9, kind: output, shape index: {0}]
  %s10 = inlined_call_operand.vmem [shape: f32[2,2,128], index: 10, kind: output, shape index: {1}]
  %11 = xla_tuple %s9, %s10
  %s12 = sld [smem:[#allocation0]]
  $region77: #{tca_forward.6} parent=0
    _
  %s14 = ssub.s32 1, %s12
  %s15 = scalar_select 0, %s14, %s12
  loop: start=0, step=1, limit=4
  $region2: #{tca_forward.6} parent=0 // loop_pre_header
    _
  $region3: #{tca_forward.6} parent=0 // loop_header
    %s17 = sphi 0, %s21
    %p18 = scmp.ge.s32.totalorder %s17, 4
    %s27 = sphi 0, %s29
    %s30 = sphi 0, %s27
    %s31 = sphi 0, %s30
    %s47 = sphi 0, %s31
    %s53 = sphi 0, %s55
    %s56 = sphi 0, %s53
    %s57 = sphi 0, %s56
    %s73 = sphi 0, %s57
    %s79 = sphi 0, %s81
    %s82 = sphi 0, %s79
    %s83 = sphi 0, %s82
    %s99 = sphi 0, %s83
    %s103 = sphi 0, %s103
    %s105 = sphi 0, %s103
    %s106 = sphi 0, %s105
    %s120 = sphi 0, %s106
    %s124 = sphi 0, %s124
    %s126 = sphi 0, %s124
    %s127 = sphi 0, %s126
    %s141 = sphi 0, %s127
    %s145 = sphi 0, %s145
    %s147 = sphi 0, %s145
    %s148 = sphi 0, %s147
    %s162 = sphi 0, %s148
    %s166 = sphi 0, %s166
    %s168 = sphi 0, %s166
    %s169 = sphi 0, %s168
    %s183 = sphi 0, %s169
    %s187 = sphi 0, %s187
    %s189 = sphi 0, %s187
    %s190 = sphi 0, %s189
    %s204 = sphi 0, %s190
    %s208 = sphi 0, %s208
    %s210 = sphi 0, %s208
    %s211 = sphi 0, %s210
    %s225 = sphi 0, %s211
    %s231 = sphi 0, %s233
    %s234 = sphi 0, %s231
    %s235 = sphi 0, %s234
    %s251 = sphi 0, %s235
    %s257 = sphi 0, %s259
    %s260 = sphi 0, %s257
    %s261 = sphi 0, %s260
    %s277 = sphi 0, %s261
  $region4: #{tca_forward.6} parent=0 // loop_header_branch
    %20 = sbr.rel (%p18) target = $region8
  $region5: #{tca_forward.6} parent=0 // loop_body
    %s22 = ssub.s32 %s17, 1
    %s23 = ssub.s32 %s17, 2
    %s24 = sadd.s32 %s17, 1
    %s25 = ssub.s32 %s17, %s24
    %p26 = scmp.eq.s32.totalorder %s25, 0
    %s28 = sadd.s32 %s27, 1
    %s29 = scalar_select %p26, %s27, %s28
    %p32 = pneg %p26
    %p33 = scmp.eq.s32.totalorder %s17, 1
    %p34 = por %p32, %p33
    %p35 = scmp.ne.s32.totalorder %s27, %s30
    %p36 = scmp.eq.s32.totalorder %s17, 0
    %p37 = por %p35, %p36
    %p38 = scmp.ne.s32.totalorder %s27, %s30
    %p39 = scmp.eq.s32.totalorder %s22, 1
    %p40 = por %p38, %p39
    %p41 = scmp.ne.s32.totalorder %s30, %s31
    %p42 = scmp.eq.s32.totalorder %s22, 0
    %p43 = por %p41, %p42
    %p44 = scmp.ne.s32.totalorder %s30, %s31
    %p45 = scmp.eq.s32.totalorder %s23, 1
    %p46 = por %p44, %p45
    %p48 = scmp.ne.s32.totalorder %s31, %s47
    %p49 = scmp.eq.s32.totalorder %s23, 0
    %p50 = por %p48, %p49
    %s51 = ssub.s32 %s17, %s24
    %p52 = scmp.eq.s32.totalorder %s51, 0
    %s54 = sadd.s32 %s53, 1
    %s55 = scalar_select %p52, %s53, %s54
    %p58 = pneg %p52
    %p59 = scmp.eq.s32.totalorder %s17, 1
    %p60 = por %p58, %p59
    %p61 = scmp.ne.s32.totalorder %s53, %s56
    %p62 = scmp.eq.s32.totalorder %s17, 0
    %p63 = por %p61, %p62
    %p64 = scmp.ne.s32.totalorder %s53, %s56
    %p65 = scmp.eq.s32.totalorder %s22, 1
    %p66 = por %p64, %p65
    %p67 = scmp.ne.s32.totalorder %s56, %s57
    %p68 = scmp.eq.s32.totalorder %s22, 0
    %p69 = por %p67, %p68
    %p70 = scmp.ne.s32.totalorder %s56, %s57
    %p71 = scmp.eq.s32.totalorder %s23, 1
    %p72 = por %p70, %p71
    %p74 = scmp.ne.s32.totalorder %s57, %s73
    %p75 = scmp.eq.s32.totalorder %s23, 0
    %p76 = por %p74, %p75
    %s77 = ssub.s32 %s17, %s24
    %p78 = scmp.eq.s32.totalorder %s77, 0
    %s80 = sadd.s32 %s79, 1
    %s81 = scalar_select %p78, %s79, %s80
    %p84 = pneg %p78
    %p85 = scmp.eq.s32.totalorder %s17, 1
    %p86 = por %p84, %p85
    %p87 = scmp.ne.s32.totalorder %s79, %s82
    %p88 = scmp.eq.s32.totalorder %s17, 0
    %p89 = por %p87, %p88
    %p90 = scmp.ne.s32.totalorder %s79, %s82
    %p91 = scmp.eq.s32.totalorder %s22, 1
    %p92 = por %p90, %p91
    %p93 = scmp.ne.s32.totalorder %s82, %s83
    %p94 = scmp.eq.s32.totalorder %s22, 0
    %p95 = por %p93, %p94
    %p96 = scmp.ne.s32.totalorder %s82, %s83
    %p97 = scmp.eq.s32.totalorder %s23, 1
    %p98 = por %p96, %p97
    %p100 = scmp.ne.s32.totalorder %s83, %s99
    %p101 = scmp.eq.s32.totalorder %s23, 0
    %p102 = por %p100, %p101
    %s104 = sadd.s32 %s103, 1
    %p107 = scmp.eq.s32.totalorder %s17, 1
    %p108 = scmp.ne.s32.totalorder %s103, %s105
    %p109 = scmp.eq.s32.totalorder %s17, 0
    %p110 = por %p108, %p109
    %p111 = scmp.ne.s32.totalorder %s103, %s105
    %p112 = scmp.eq.s32.totalorder %s22, 1
    %p113 = por %p111, %p112
    %p114 = scmp.ne.s32.totalorder %s105, %s106
    %p115 = scmp.eq.s32.totalorder %s22, 0
    %p116 = por %p114, %p115
    %p117 = scmp.ne.s32.totalorder %s105, %s106
    %p118 = scmp.eq.s32.totalorder %s23, 1
    %p119 = por %p117, %p118
    %p121 = scmp.ne.s32.totalorder %s106, %s120
    %p122 = scmp.eq.s32.totalorder %s23, 0
    %p123 = por %p121, %p122
    %s125 = sadd.s32 %s124, 1
    %p128 = scmp.eq.s32.totalorder %s17, 1
    %p129 = scmp.ne.s32.totalorder %s124, %s126
    %p130 = scmp.eq.s32.totalorder %s17, 0
    %p131 = por %p129, %p130
    %p132 = scmp.ne.s32.totalorder %s124, %s126
    %p133 = scmp.eq.s32.totalorder %s22, 1
    %p134 = por %p132, %p133
    %p135 = scmp.ne.s32.totalorder %s126, %s127
    %p136 = scmp.eq.s32.totalorder %s22, 0
    %p137 = por %p135, %p136
    %p138 = scmp.ne.s32.totalorder %s126, %s127
    %p139 = scmp.eq.s32.totalorder %s23, 1
    %p140 = por %p138, %p139
    %p142 = scmp.ne.s32.totalorder %s127, %s141
    %p143 = scmp.eq.s32.totalorder %s23, 0
    %p144 = por %p142, %p143
    %s146 = sadd.s32 %s145, 1
    %p149 = scmp.eq.s32.totalorder %s17, 1
    %p150 = scmp.ne.s32.totalorder %s145, %s147
    %p151 = scmp.eq.s32.totalorder %s17, 0
    %p152 = por %p150, %p151
    %p153 = scmp.ne.s32.totalorder %s145, %s147
    %p154 = scmp.eq.s32.totalorder %s22, 1
    %p155 = por %p153, %p154
    %p156 = scmp.ne.s32.totalorder %s147, %s148
    %p157 = scmp.eq.s32.totalorder %s22, 0
    %p158 = por %p156, %p157
    %p159 = scmp.ne.s32.totalorder %s147, %s148
    %p160 = scmp.eq.s32.totalorder %s23, 1
    %p161 = por %p159, %p160
    %p163 = scmp.ne.s32.totalorder %s148, %s162
    %p164 = scmp.eq.s32.totalorder %s23, 0
    %p165 = por %p163, %p164
    %s167 = sadd.s32 %s166, 1
    %p170 = scmp.eq.s32.totalorder %s17, 1
    %p171 = scmp.ne.s32.totalorder %s166, %s168
    %p172 = scmp.eq.s32.totalorder %s17, 0
    %p173 = por %p171, %p172
    %p174 = scmp.ne.s32.totalorder %s166, %s168
    %p175 = scmp.eq.s32.totalorder %s22, 1
    %p176 = por %p174, %p175
    %p177 = scmp.ne.s32.totalorder %s168, %s169
    %p178 = scmp.eq.s32.totalorder %s22, 0
    %p179 = por %p177, %p178
    %p180 = scmp.ne.s32.totalorder %s168, %s169
    %p181 = scmp.eq.s32.totalorder %s23, 1
    %p182 = por %p180, %p181
    %p184 = scmp.ne.s32.totalorder %s169, %s183
    %p185 = scmp.eq.s32.totalorder %s23, 0
    %p186 = por %p184, %p185
    %s188 = sadd.s32 %s187, 1
    %p191 = scmp.eq.s32.totalorder %s17, 1
    %p192 = scmp.ne.s32.totalorder %s187, %s189
    %p193 = scmp.eq.s32.totalorder %s17, 0
    %p194 = por %p192, %p193
    %p195 = scmp.ne.s32.totalorder %s187, %s189
    %p196 = scmp.eq.s32.totalorder %s22, 1
    %p197 = por %p195, %p196
    %p198 = scmp.ne.s32.totalorder %s189, %s190
    %p199 = scmp.eq.s32.totalorder %s22, 0
    %p200 = por %p198, %p199
    %p201 = scmp.ne.s32.totalorder %s189, %s190
    %p202 = scmp.eq.s32.totalorder %s23, 1
    %p203 = por %p201, %p202
    %p205 = scmp.ne.s32.totalorder %s190, %s204
    %p206 = scmp.eq.s32.totalorder %s23, 0
    %p207 = por %p205, %p206
    %s209 = sadd.s32 %s208, 1
    %p212 = scmp.eq.s32.totalorder %s17, 1
    %p213 = scmp.ne.s32.totalorder %s208, %s210
    %p214 = scmp.eq.s32.totalorder %s17, 0
    %p215 = por %p213, %p214
    %p216 = scmp.ne.s32.totalorder %s208, %s210
    %p217 = scmp.eq.s32.totalorder %s22, 1
    %p218 = por %p216, %p217
    %p219 = scmp.ne.s32.totalorder %s210, %s211
    %p220 = scmp.eq.s32.totalorder %s22, 0
    %p221 = por %p219, %p220
    %p222 = scmp.ne.s32.totalorder %s210, %s211
    %p223 = scmp.eq.s32.totalorder %s23, 1
    %p224 = por %p222, %p223
    %p226 = scmp.ne.s32.totalorder %s211, %s225
    %p227 = scmp.eq.s32.totalorder %s23, 0
    %p228 = por %p226, %p227
    %s229 = ssub.s32 %s17, %s24
    %p230 = scmp.eq.s32.totalorder %s229, 0
    %s232 = sadd.s32 %s231, 1
    %s233 = scalar_select %p230, %s231, %s232
    %p236 = pneg %p230
    %p237 = scmp.eq.s32.totalorder %s17, 1
    %p238 = por %p236, %p237
    %p239 = scmp.ne.s32.totalorder %s231, %s234
    %p240 = scmp.eq.s32.totalorder %s17, 0
    %p241 = por %p239, %p240
    %p242 = scmp.ne.s32.totalorder %s231, %s234
    %p243 = scmp.eq.s32.totalorder %s22, 1
    %p244 = por %p242, %p243
    %p245 = scmp.ne.s32.totalorder %s234, %s235
    %p246 = scmp.eq.s32.totalorder %s22, 0
    %p247 = por %p245, %p246
    %p248 = scmp.ne.s32.totalorder %s234, %s235
    %p249 = scmp.eq.s32.totalorder %s23, 1
    %p250 = por %p248, %p249
    %p252 = scmp.ne.s32.totalorder %s235, %s251
    %p253 = scmp.eq.s32.totalorder %s23, 0
    %p254 = por %p252, %p253
    %s255 = ssub.s32 %s17, %s24
    %p256 = scmp.eq.s32.totalorder %s255, 0
    %s258 = sadd.s32 %s257, 1
    %s259 = scalar_select %p256, %s257, %s258
    %p262 = pneg %p256
    %p263 = scmp.eq.s32.totalorder %s17, 1
    %p264 = por %p262, %p263
    %p265 = scmp.ne.s32.totalorder %s257, %s260
    %p266 = scmp.eq.s32.totalorder %s17, 0
    %p267 = por %p265, %p266
    %p268 = scmp.ne.s32.totalorder %s257, %s260
    %p269 = scmp.eq.s32.totalorder %s22, 1
    %p270 = por %p268, %p269
    %p271 = scmp.ne.s32.totalorder %s260, %s261
    %p272 = scmp.eq.s32.totalorder %s22, 0
    %p273 = por %p271, %p272
    %p274 = scmp.ne.s32.totalorder %s260, %s261
    %p275 = scmp.eq.s32.totalorder %s23, 1
    %p276 = por %p274, %p275
    %p278 = scmp.ne.s32.totalorder %s261, %s277
    %p279 = scmp.eq.s32.totalorder %s23, 0
    %p280 = por %p278, %p279
    %p281 = scmp.le.s32.totalorder 1, %s17
    %p282 = scmp.lt.s32.totalorder %s17, 3
    %p283 = pnand %p281, %p282
    %p284 = pneg %p283
    // Predicated region
    $region9: #{tca_forward.6} parent=5 // pred_check
      _
    $region10: #{tca_forward.6} parent=5 // pred_check_branch
      %286 = sbr.rel (%p283) target = $region12
    $region11: #{tca_forward.6} parent=5 // pred_region
      %s287 = ssub.s32 %s17, 1
      // Predicated region
      $region13: #{tca_forward.6} parent=11 // pred_check
        %p288 = pneg %p116
      $region14: #{tca_forward.6} parent=11 // pred_check_branch
        %290 = sbr.rel (%p288) target = $region16
      $region15: #{tca_forward.6} parent=11 // pred_region
        _
      $region16: #{tca_forward.6} parent=11 // pred_fallthru
        _
      // Predicated region
      $region17: #{tca_forward.6} parent=11 // pred_check
        %p291 = pneg %p137
      $region18: #{tca_forward.6} parent=11 // pred_check_branch
        %293 = sbr.rel (%p291) target = $region20
      $region19: #{tca_forward.6} parent=11 // pred_region
        _
      $region20: #{tca_forward.6} parent=11 // pred_fallthru
        _
      // Predicated region
      $region21: #{tca_forward.6} parent=11 // pred_check
        %p294 = pneg %p158
      $region22: #{tca_forward.6} parent=11 // pred_check_branch
        %296 = sbr.rel (%p294) target = $region24
      $region23: #{tca_forward.6} parent=11 // pred_region
        _
      $region24: #{tca_forward.6} parent=11 // pred_fallthru
        _
      // Predicated region
      $region25: #{tca_forward.6} parent=11 // pred_check
        %p297 = pneg %p179
      $region26: #{tca_forward.6} parent=11 // pred_check_branch
        %299 = sbr.rel (%p297) target = $region28
      $region27: #{tca_forward.6} parent=11 // pred_region
        _
      $region28: #{tca_forward.6} parent=11 // pred_fallthru
        _
      // Predicated region
      $region29: #{tca_forward.6} parent=11 // pred_check
        %p300 = pneg %p200
      $region30: #{tca_forward.6} parent=11 // pred_check_branch
        %302 = sbr.rel (%p300) target = $region32
      $region31: #{tca_forward.6} parent=11 // pred_region
        _
      $region32: #{tca_forward.6} parent=11 // pred_fallthru
        _
      // Predicated region
      $region33: #{tca_forward.6} parent=11 // pred_check
        %p303 = pneg %p221
      $region34: #{tca_forward.6} parent=11 // pred_check_branch
        %305 = sbr.rel (%p303) target = $region36
      $region35: #{tca_forward.6} parent=11 // pred_region
        _
      $region36: #{tca_forward.6} parent=11 // pred_fallthru
        _
    $region12: #{tca_forward.6} parent=5 // pred_fallthru
      _
    %p306 = scmp.lt.s32.totalorder %s17, 2
    // Predicated region
    $region37: #{tca_forward.6} parent=5 // pred_check
      %p307 = pneg %p306
    $region38: #{tca_forward.6} parent=5 // pred_check_branch
      %309 = sbr.rel (%p307) target = $region40
    $region39: #{tca_forward.6} parent=5 // pred_region
      // Predicated region
      $region41: #{tca_forward.6} parent=39 // pred_check
        %p310 = pneg %p37
      $region42: #{tca_forward.6} parent=39 // pred_check_branch
        %312 = sbr.rel (%p310) target = $region44
      $region43: #{tca_forward.6} parent=39 // pred_region
        %s313 = smul.u32 2, %s17
        %p314 = scmp.lt.s32.totalorder %s313, 3
        %s315 = scalar_select %p314, %s313, 3
        %s316 = smul.addr %s315, 8
        %s317 = scalar_lea.vmem %s0, %s316
        %s318 = smul.u32 2, %s17
      $region44: #{tca_forward.6} parent=39 // pred_fallthru
        _
      // Predicated region
      $region45: #{tca_forward.6} parent=39 // pred_check
        %p319 = pneg %p63
      $region46: #{tca_forward.6} parent=39 // pred_check_branch
        %321 = sbr.rel (%p319) target = $region48
      $region47: #{tca_forward.6} parent=39 // pred_region
        %s322 = smul.u32 2, %s17
        %p323 = scmp.lt.s32.totalorder %s322, 3
        %s324 = scalar_select %p323, %s322, 3
        %s325 = smul.addr %s324, 8
        %s326 = scalar_lea.vmem %s1, %s325
        %s327 = smul.u32 2, %s17
      $region48: #{tca_forward.6} parent=39 // pred_fallthru
        _
      // Predicated region
      $region49: #{tca_forward.6} parent=39 // pred_check
        %p328 = pneg %p89
      $region50: #{tca_forward.6} parent=39 // pred_check_branch
        %330 = sbr.rel (%p328) target = $region52
      $region51: #{tca_forward.6} parent=39 // pred_region
        %s331 = smul.u32 2, %s17
        %p332 = scmp.lt.s32.totalorder %s331, 3
        %s333 = scalar_select %p332, %s331, 3
        %s334 = smul.addr %s333, 8
        %s335 = scalar_lea.vmem %s2, %s334
        %s336 = smul.u32 2, %s17
      $region52: #{tca_forward.6} parent=39 // pred_fallthru
        _
    $region40: #{tca_forward.6} parent=5 // pred_fallthru
      _
    %p337 = scmp.le.s32.totalorder 1, %s17
    %p338 = scmp.lt.s32.totalorder %s17, 3
    %p339 = pnand %p337, %p338
    %p340 = pneg %p339
    // Predicated region
    $region53: #{tca_forward.6} parent=5 // pred_check
      _
    $region54: #{tca_forward.6} parent=5 // pred_check_branch
      %342 = sbr.rel (%p339) target = $region56
    $region55: #{tca_forward.6} parent=5 // pred_region
      %s343 = ssub.s32 %s17, 1
      %s344 = smul.u32 2, %s22
      %p345 = scmp.lt.s32.totalorder %s344, 3
      %s346 = scalar_select %p345, %s344, 3
      %s347 = smul.addr %s346, 8
      %s348 = scalar_lea.vmem %s0, %s347
      %p349 = pneg %p43
      %p350 = pneg %p40
      %s351 = smul.u32 2, %s22
      %p352 = scmp.lt.s32.totalorder %s351, 3
      %s353 = scalar_select %p352, %s351, 3
      %s354 = smul.addr %s353, 8
      %s355 = scalar_lea.vmem %s1, %s354
      %p356 = pneg %p69
      %p357 = pneg %p66
      %s358 = smul.u32 2, %s22
      %p359 = scmp.lt.s32.totalorder %s358, 3
      %s360 = scalar_select %p359, %s358, 3
      %s361 = smul.addr %s360, 8
      %s362 = scalar_lea.vmem %s2, %s361
      %p363 = pneg %p95
      %p364 = pneg %p92
      %p365 = pneg %p116
      %p366 = pneg %p113
      %p367 = pneg %p137
      %p368 = pneg %p134
      %p369 = pneg %p158
      %p370 = pneg %p155
      %p371 = pneg %p179
      %p372 = pneg %p176
      %p373 = pneg %p200
      %p374 = pneg %p197
      %p375 = pneg %p221
      %p376 = pneg %p218
      %p377 = pneg %p247
      %p378 = pneg %p244
      %s379 = smul.u32 2, %s22
      %p380 = scmp.lt.s32.totalorder %s379, 3
      %s381 = scalar_select %p380, %s379, 3
      %s382 = smul.addr %s381, 8
      %s383 = scalar_lea.vmem %s9, %s382
      %p384 = pneg %p273
      %p385 = pneg %p270
      %p386 = scmp.lt.s32.totalorder %s22, 1
      %s387 = scalar_select %p386, %s22, 1
      %s388 = smul.addr %s387, 2
      %s389 = scalar_lea.vmem %s10, %s388
      %s390 = smul.u32 2, %s22
      %p391 = scmp.lt.s32.totalorder %s390, 3
      %s392 = scalar_select %p391, %s390, 3
      %s393 = smul.addr %s392, 8
      %s394 = scalar_lea.vmem %s0, %s393
      %s395 = smul.u32 2, %s22
      %s396 = smul.u32 2, %s22
      %p397 = scmp.lt.s32.totalorder %s396, 3
      %s398 = scalar_select %p397, %s396, 3
      %s399 = smul.addr %s398, 8
      %s400 = scalar_lea.vmem %s1, %s399
      %s401 = smul.u32 2, %s22
      %s402 = smul.u32 2, %s22
      %p403 = scmp.lt.s32.totalorder %s402, 3
      %s404 = scalar_select %p403, %s402, 3
      %s405 = smul.addr %s404, 8
      %s406 = scalar_lea.vmem %s2, %s405
      %s407 = smul.u32 2, %s22
      %s408 = smul.u32 2, %s22
      %p409 = scmp.lt.s32.totalorder %s408, 3
      %s410 = scalar_select %p409, %s408, 3
      %s411 = smul.addr %s410, 8
      %s412 = scalar_lea.vmem %s9, %s411
      %s413 = smul.u32 2, %s22
      %p414 = scmp.lt.s32.totalorder %s22, 1
      %s415 = scalar_select %p414, %s22, 1
      %s416 = smul.addr %s415, 2
      %s417 = scalar_lea.vmem %s10, %s416
      %v418 = vld [vmem:[%s3] sm:$0x1]
      %v419 = vld [vmem:[%s394] sm:$0xff]
      %v420 = vld [vmem:[%s394 + $0x8] sm:$0xff]
      %v422 = vlaneseq
      %v423 = vshrl.u32 %v422, 7
      %v424 = vsub.s32 0, %v423
      %v425 = vrot.slane %v418, %v424
      %v427 = vmul.f32 %v425, %v419
      %v428 = vmul.f32 %v425, %v420
      %v429 = vld [vmem:[%s4] sm:$0x1]
      %v431 = vlaneseq
      %v432 = vshrl.u32 %v431, 7
      %v433 = vsub.s32 0, %v432
      %v434 = vrot.slane %v429, %v433
      %v436 = vadd.f32 %v427, %v434
      %v437 = vadd.f32 %v428, %v434
      %vm438 = vcmp.gt.f32.partialorder %v436, 0.0
      %vm439 = vcmp.gt.f32.partialorder %v437, 0.0
      %v440 = vmul.f32 %v436, 1.442695
      %v441 = vpow.pop %v440
      %v442 = vmul.f32 %v437, 1.442695
      %v443 = vpow.pop %v442
      %v444 = vsub.f32 %v441, 1.0
      %v445 = vsub.f32 %v443, 1.0
      %v446 = vmul.f32 %v444, 1.6732632
      %v447 = vmul.f32 %v445, 1.6732632
      %v448 = vsel %vm438, %v436, %v446
      %v449 = vsel %vm439, %v437, %v447
      %v450 = vmul.f32 %v448, 1.050701
      %v451 = vmul.f32 %v449, 1.050701
      %v452 = vld [vmem:[%s5] sm:$0x1]
      %v453 = vld [vmem:[%s400] sm:$0xff]
      %v454 = vld [vmem:[%s400 + $0x8] sm:$0xff]
      %v456 = vlaneseq
      %v457 = vshrl.u32 %v456, 7
      %v458 = vsub.s32 0, %v457
      %v459 = vrot.slane %v452, %v458
      %v461 = vmul.f32 %v459, %v453
      %v462 = vmul.f32 %v459, %v454
      %v463 = vld [vmem:[%s6] sm:$0x1]
      %v465 = vlaneseq
      %v466 = vshrl.u32 %v465, 7
      %v467 = vsub.s32 0, %v466
      %v468 = vrot.slane %v463, %v467
      %v470 = vadd.f32 %v461, %v468
      %v471 = vadd.f32 %v462, %v468
      %vm472 = vcmp.gt.f32.partialorder %v470, 0.0
      %vm473 = vcmp.gt.f32.partialorder %v471, 0.0
      %v474 = vmul.f32 %v470, 1.442695
      %v475 = vpow.pop %v474
      %v476 = vmul.f32 %v471, 1.442695
      %v477 = vpow.pop %v476
      %v478 = vsub.f32 %v475, 1.0
      %v479 = vsub.f32 %v477, 1.0
      %v480 = vmul.f32 %v478, 1.6732632
      %v481 = vmul.f32 %v479, 1.6732632
      %v482 = vsel %vm472, %v470, %v480
      %v483 = vsel %vm473, %v471, %v481
      %v484 = vmul.f32 %v482, 1.050701
      %v485 = vmul.f32 %v483, 1.050701
      %v486 = vld [vmem:[%s7] sm:$0x1]
      %v487 = vld [vmem:[%s406] sm:$0xff]
      %v488 = vld [vmem:[%s406 + $0x8] sm:$0xff]
      %v490 = vlaneseq
      %v491 = vshrl.u32 %v490, 7
      %v492 = vsub.s32 0, %v491
      %v493 = vrot.slane %v486, %v492
      %v495 = vmul.f32 %v493, %v487
      %v496 = vmul.f32 %v493, %v488
      %v497 = vld [vmem:[%s8] sm:$0x1]
      %v499 = vlaneseq
      %v500 = vshrl.u32 %v499, 7
      %v501 = vsub.s32 0, %v500
      %v502 = vrot.slane %v497, %v501
      %v504 = vadd.f32 %v495, %v502
      %v505 = vadd.f32 %v496, %v502
      %vm506 = vcmp.gt.f32.partialorder %v504, 0.0
      %vm507 = vcmp.gt.f32.partialorder %v505, 0.0
      %v508 = vmul.f32 %v504, 1.442695
      %v509 = vpow.pop %v508
      %v510 = vmul.f32 %v505, 1.442695
      %v511 = vpow.pop %v510
      %v512 = vsub.f32 %v509, 1.0
      %v513 = vsub.f32 %v511, 1.0
      %v514 = vmul.f32 %v512, 1.6732632
      %v515 = vmul.f32 %v513, 1.6732632
      %v516 = vsel %vm506, %v504, %v514
      %v517 = vsel %vm507, %v505, %v515
      %v518 = vmul.f32 %v516, 1.050701
      %v519 = vmul.f32 %v517, 1.050701
      %v520 = vadd.f32 %v450, %v484
      %v521 = vadd.f32 %v451, %v485
      %v522 = vadd.f32 %v520, %v518
      %v523 = vadd.f32 %v521, %v519
      %524 = vst [vmem:[%s412] sm:$0xff] %v522
      %525 = vst [vmem:[%s412 + $0x8] sm:$0xff] %v523
      %v526 = vadd.f32 %v522, %v523
      %v527 = vrot.slane %v526, 4
      %v528 = vadd.f32 %v526, %v527
      %v529 = vrot.slane %v528, 2
      %v530 = vadd.f32 %v528, %v529
      %v531 = vrot.slane %v530, 1
      %v532 = vadd.f32 %v530, %v531
      %533 = vst [vmem:[%s417] sm:$0x1] %v532
      %v534 = vmul.f32 %v522, %v522
      %v535 = vmul.f32 %v523, %v523
      %v536 = vadd.f32 %v534, %v535
      %v537 = vrot.slane %v536, 4
      %v538 = vadd.f32 %v536, %v537
      %v539 = vrot.slane %v538, 2
      %v540 = vadd.f32 %v538, %v539
      %v541 = vrot.slane %v540, 1
      %v542 = vadd.f32 %v540, %v541
      %543 = vst [vmem:[%s417 + $0x1] sm:$0x1] %v542
      %s544 = smul.u32 2, %s22
      %p545 = scmp.lt.s32.totalorder %s544, 3
      %s546 = scalar_select %p545, %s544, 3
      %s547 = smul.addr %s546, 8
      %s548 = scalar_lea.vmem %s9, %s547
      %p549 = scmp.lt.s32.totalorder %s22, 1
      %s550 = scalar_select %p549, %s22, 1
      %s551 = smul.addr %s550, 2
      %s552 = scalar_lea.vmem %s10, %s551
      // Predicated region
      $region57: #{tca_forward.6} parent=55 // pred_check
        %p553 = pneg %p244
      $region58: #{tca_forward.6} parent=55 // pred_check_branch
        %555 = sbr.rel (%p553) target = $region60
      $region59: #{tca_forward.6} parent=55 // pred_region
        %s556 = smul.u32 2, %s22
      $region60: #{tca_forward.6} parent=55 // pred_fallthru
        _
      // Predicated region
      $region61: #{tca_forward.6} parent=55 // pred_check
        %p557 = pneg %p270
      $region62: #{tca_forward.6} parent=55 // pred_check_branch
        %559 = sbr.rel (%p557) target = $region64
      $region63: #{tca_forward.6} parent=55 // pred_region
        _
      $region64: #{tca_forward.6} parent=55 // pred_fallthru
        _
    $region56: #{tca_forward.6} parent=5 // pred_fallthru
      _
    %p560 = scmp.le.s32.totalorder 2, %s17
    // Predicated region
    $region65: #{tca_forward.6} parent=5 // pred_check
      %p561 = pneg %p560
    $region66: #{tca_forward.6} parent=5 // pred_check_branch
      %563 = sbr.rel (%p561) target = $region68
    $region67: #{tca_forward.6} parent=5 // pred_region
      %s564 = ssub.s32 %s17, 2
      // Predicated region
      $region69: #{tca_forward.6} parent=67 // pred_check
        %p565 = pneg %p250
      $region70: #{tca_forward.6} parent=67 // pred_check_branch
        %567 = sbr.rel (%p565) target = $region72
      $region71: #{tca_forward.6} parent=67 // pred_region
        %s568 = smul.u32 2, %s23
        %p569 = scmp.lt.s32.totalorder %s568, 3
        %s570 = scalar_select %p569, %s568, 3
        %s571 = smul.addr %s570, 8
        %s572 = scalar_lea.vmem %s9, %s571
      $region72: #{tca_forward.6} parent=67 // pred_fallthru
        _
      // Predicated region
      $region73: #{tca_forward.6} parent=67 // pred_check
        %p573 = pneg %p276
      $region74: #{tca_forward.6} parent=67 // pred_check_branch
        %575 = sbr.rel (%p573) target = $region76
      $region75: #{tca_forward.6} parent=67 // pred_region
        %p576 = scmp.lt.s32.totalorder %s23, 1
        %s577 = scalar_select %p576, %s23, 1
        %s578 = smul.addr %s577, 2
        %s579 = scalar_lea.vmem %s10, %s578
      $region76: #{tca_forward.6} parent=67 // pred_fallthru
        _
    $region68: #{tca_forward.6} parent=5 // pred_fallthru
      _
  $region6: #{tca_forward.6} parent=0 // loop_footer
    %s21 = sadd.s32 1, %s17
  $region7: #{tca_forward.6} parent=0 // loop_footer_branch
    %16 = sbr.rel target = $region3
  $region8: #{tca_forward.6} parent=0 // loop_exit
    _

</llo_original>
